<compile_context>
chip_gen: v7x
topology: tpu7x:2x2x1
jax: 0.10.0
libtpu: 0.0.40
codegen_flags: <defaults>
</compile_context>

<pallas_src>
import functools

import jax
import jax.numpy as jnp
from jax.experimental import pallas as pl
from jax.experimental.pallas import tpu as pltpu

LEAKY_SLOPE = 0.3
BN_EPS = 1e-5

C1, C2, C3, C4 = 16, 32, 64, 32
K = 15
PAD1 = 1600          # padding of the first conv
S1 = 5               # stride of conv1; conv2..4 have stride 6
Q1 = 40              # deinterleave rows fed to layer 1 (max weight column = 5*5 + 14 = 39)


def _leaky(x):
    # LeakyReLU(0.3): max(x, 0.3*x) == x for x >= 0, 0.3*x for x < 0 (slope < 1).
    return jnp.maximum(x, LEAKY_SLOPE * x)


def _fused_wav_encoder_kernel(x40_ref, w1_ref, b1_ref, w2_ref, b2_ref,
                              w3_ref, b3_ref, sel3_ref, w4_ref, b4_ref, sel4_ref,
                              o_ref, *, L2, Ld3, Ld4):
    f32, bf16 = jnp.float32, jnp.bfloat16

    # ---- Layer 1: Conv1d(1->16, K=15, stride=5) + BN + LeakyReLU -----------------
    # One fused GEMM.  x40[q, m] = xp[30*m + q];  output row p1*16+ci at column m is
    # conv1[ci, 6*m + p1]  (phase-major by 6, ready for layer 2's stride-6 conv).
    y1 = jnp.dot(w1_ref[...], x40_ref[0], preferred_element_type=f32) + b1_ref[...]
    a1 = _leaky(y1).astype(bf16)                                        # (96, M1)

    # ---- Layer 2: Conv1d(16->32, K=15, stride=6) + BN + LeakyReLU ----------------
    # Phase-major input -> 3 contiguous shifted matmuls with contraction 96.
    y2 = jnp.dot(w2_ref[0], a1[:, 0:L2], preferred_element_type=f32)
    y2 = y2 + jnp.dot(w2_ref[1], a1[:, 1:L2 + 1], preferred_element_type=f32)
    y2 = y2 + jnp.dot(w2_ref[2], a1[:, 2:L2 + 2], preferred_element_type=f32)
    y2 = y2 + b2_ref[...]
    a2 = _leaky(y2).astype(bf16)                                        # (32, L2)

    # ---- Layer 3: Conv1d(32->64, K=15, stride=6) + BN + LeakyReLU ----------------
    # im2col (sublane concat), then decimate the bf16 columns with the host-built 0/1
    # selector BEFORE the conv GEMM, so the conv computes only the L3 needed columns.
    p3 = jnp.concatenate([a2[:, k:k + Ld3] for k in range(K)], axis=0)       # (480, Ld3)
    p3s = jnp.dot(p3, sel3_ref[...], preferred_element_type=f32).astype(bf16)  # (480, L3)
    y3 = jnp.dot(w3_ref[...], p3s, preferred_element_type=f32) + b3_ref[...]   # (64, L3)
    a3 = _leaky(y3).astype(bf16)

    # ---- Layer 4: Conv1d(64->32, K=15, stride=6), no BN / no activation ----------
    p4 = jnp.concatenate([a3[:, k:k + Ld4] for k in range(K)], axis=0)       # (960, Ld4)
    p4s = jnp.dot(p4, sel4_ref[...], preferred_element_type=f32).astype(bf16)  # (960, L4)
    y4 = jnp.dot(w4_ref[...], p4s, preferred_element_type=f32) + b4_ref[...]   # (32, L4)

    o_ref[0] = y4.astype(o_ref.dtype)


def _fold_bn(w, b, bn):
    """Fold conv bias + eval-mode BatchNorm into (scaled weights, per-channel shift)."""
    gamma, beta, mean, var = bn
    scale = gamma / jnp.sqrt(var + BN_EPS)
    return w * scale[:, None, None], (b - mean) * scale + beta


def wav_encoder_forward(wav, params):
    """wav: (B, T) float32  ->  (B, L_out, 32) float32 (== PyTorch out.transpose(1, 2))."""
    B, T = wav.shape
    Lp = T + 2 * PAD1
    L1 = (Lp - K) // S1 + 1
    L2 = (L1 - K) // 6 + 1
    L3 = (L2 - K) // 6 + 1
    L4 = (L3 - K) // 6 + 1
    assert L1 >= K and L2 >= K and L3 >= K and L4 >= 1, "input too short"
    M1 = L2 + 2                 # phase-major layer-1 output width (per phase)
    Ld3 = L2 - (K - 1)          # dense (stride-1) im2col positions for layer 3
    Ld4 = L3 - (K - 1)          # dense (stride-1) im2col positions for layer 4

    # ---- host-side weight prep: fold BN scales, reorder for in-kernel layouts -------
    w1f, sh1 = _fold_bn(params["conv1_w"], params["conv1_b"], params["bn1"])
    w2f, sh2 = _fold_bn(params["conv2_w"], params["conv2_b"], params["bn2"])
    w3f, sh3 = _fold_bn(params["conv3_w"], params["conv3_b"], params["bn3"])
    w4f, sh4 = params["conv4_w"], params["conv4_b"]

    # Layer-1 fused weight: row p1*16+ci holds w1[ci, :] at column offset 5*p1.
    cols = 5 * jnp.arange(6)[:, None] + jnp.arange(K)[None, :]            # (6, 15), < 40
    onehot = jax.nn.one_hot(cols, Q1, dtype=jnp.float32)                  # (6, 15, 40)
    w1k = (jnp.einsum("ck,pkq->pcq", w1f[:, 0, :], onehot)
              .reshape(6 * C1, Q1).astype(jnp.bfloat16))                  # (96, 40)
    b1r = jnp.tile(sh1, 6).reshape(6 * C1, 1).astype(jnp.float32)         # (96, 1)

    # Layer-2 weight, phase-major (taps padded 15 -> 18 = 3*6).
    w2p = jnp.pad(w2f, ((0, 0), (0, 0), (0, 3)))
    w2s = (w2p.reshape(C2, C1, 3, 6).transpose(2, 0, 3, 1)
               .reshape(3, C2, 6 * C1)).astype(jnp.bfloat16)              # [jj, co, p1*16+ci]

    # Layer-3/4 im2col weights and host-built bf16 0/1 decimation selectors.
    w3c = w3f.transpose(0, 2, 1).reshape(C3, K * C2).astype(jnp.bfloat16)  # [co, k*32+ci]
    w4c = w4f.transpose(0, 2, 1).reshape(C4, K * C3).astype(jnp.bfloat16)  # [co, k*64+ci]
    sel3 = (jnp.arange(Ld3)[:, None] == 6 * jnp.arange(L3)[None, :]).astype(jnp.bfloat16)
    sel4 = (jnp.arange(Ld4)[:, None] == 6 * jnp.arange(L4)[None, :]).astype(jnp.bfloat16)

    sh2 = sh2.reshape(C2, 1).astype(jnp.float32)
    sh3 = sh3.reshape(C3, 1).astype(jnp.float32)
    sh4 = sh4.reshape(C4, 1).astype(jnp.float32)

    # ---- single pad + overlapped stride-30 deinterleave (one pass over the input) ----
    # x40[b, q, m] = xp[b, 30*m + q] for q in [0, 40); total = 30*(M1+1) >= Lp always.
    total = 30 * (M1 + 1)
    xp = jnp.pad(wav, ((0, 0), (PAD1, PAD1 + total - Lp)))
    xr = xp.reshape(B, M1 + 1, 30)
    x40 = jnp.concatenate([xr[:, :M1, :], xr[:, 1:M1 + 1, :Q1 - 30]], axis=2)
    x40 = x40.transpose(0, 2, 1).astype(jnp.bfloat16)                     # (B, 40, M1)

    kern = functools.partial(_fused_wav_encoder_kernel, L2=L2, Ld3=Ld3, Ld4=Ld4)

    # VMEM budget derived from the actual per-grid-step buffers (x4 headroom for
    # compiler temporaries / relayouts), floored at 32 MiB, capped at 128 MiB.
    bf2, f4 = 2, 4
    est = (2 * Q1 * M1 * bf2 + 2 * C4 * L4 * f4
           + 2 * ((6 * C1 * Q1 + 3 * C2 * 6 * C1 + C3 * K * C2 + C4 * K * C3) * bf2
                  + (6 * C1 + C2 + C3 + C4) * f4
                  + (Ld3 * L3 + Ld4 * L4) * bf2)
           + 6 * C1 * M1 * (f4 + bf2)
           + C2 * L2 * (f4 + bf2)
           + K * C2 * Ld3 * bf2 + K * C2 * L3 * (f4 + bf2) + C3 * L3 * (f4 + bf2)
           + K * C3 * Ld4 * bf2 + K * C3 * L4 * (f4 + bf2) + C4 * L4 * f4)
    vmem_limit = int(min(128 * 1024 * 1024, max(32 * 1024 * 1024, 4 * est)))

    idx2 = lambda b: (0, 0)
    idx3 = lambda b: (0, 0, 0)
    out = pl.pallas_call(
        kern,
        out_shape=jax.ShapeDtypeStruct((B, C4, L4), jnp.float32),
        grid=(B,),
        in_specs=[
            pl.BlockSpec((1, Q1, M1), lambda b: (b, 0, 0)),
            pl.BlockSpec(w1k.shape, idx2), pl.BlockSpec(b1r.shape, idx2),
            pl.BlockSpec(w2s.shape, idx3), pl.BlockSpec(sh2.shape, idx2),
            pl.BlockSpec(w3c.shape, idx2), pl.BlockSpec(sh3.shape, idx2),
            pl.BlockSpec(sel3.shape, idx2),
            pl.BlockSpec(w4c.shape, idx2), pl.BlockSpec(sh4.shape, idx2),
            pl.BlockSpec(sel4.shape, idx2),
        ],
        out_specs=pl.BlockSpec((1, C4, L4), lambda b: (b, 0, 0)),
        compiler_params=pltpu.CompilerParams(
            dimension_semantics=("parallel",),
            vmem_limit_bytes=vmem_limit),
    )(x40, w1k, b1r, w2s, sh2, w3c, sh3, sel3, w4c, sh4, sel4)

    return jnp.swapaxes(out, 1, 2)        # (B, L4, 32) == PyTorch out.transpose(1, 2)


def _reference_forward(wav, params):
    """Pure-XLA f32 reference (eval-mode BN), used only for a loose numeric check."""
    def conv(x, w, b, stride, pad):
        y = jax.lax.conv_general_dilated(
            x, w, window_strides=(stride,), padding=[(pad, pad)],
            dimension_numbers=("NCH", "OIH", "NCH"))
        return y + b[None, :, None]

    def bn(x, p):
        g, bta, m, v = p
        return (x - m[None, :, None]) / jnp.sqrt(v[None, :, None] + BN_EPS) \
            * g[None, :, None] + bta[None, :, None]

    def lrelu(x):
        return jnp.where(x >= 0, x, LEAKY_SLOPE * x)

    x = wav[:, None, :]
    x = lrelu(bn(conv(x, params["conv1_w"], params["conv1_b"], 5, PAD1), params["bn1"]))
    x = lrelu(bn(conv(x, params["conv2_w"], params["conv2_b"], 6, 0), params["bn2"]))
    x = lrelu(bn(conv(x, params["conv3_w"], params["conv3_b"], 6, 0), params["bn3"]))
    x = conv(x, params["conv4_w"], params["conv4_b"], 6, 0)
    return jnp.swapaxes(x, 1, 2)


def init_params(key):
    """Deterministic synthetic parameters matching the PyTorch module shapes."""
    def conv_init(k, cout, cin, ksz):
        kw, kb = jax.random.split(k)
        bound = 1.0 / jnp.sqrt(cin * ksz)
        w = jax.random.uniform(kw, (cout, cin, ksz), jnp.float32, -bound, bound)
        b = jax.random.uniform(kb, (cout,), jnp.float32, -bound, bound)
        return w, b

    def bn_init(k, c):
        k1, k2, k3, k4 = jax.random.split(k, 4)
        gamma = 1.0 + 0.1 * jax.random.normal(k1, (c,), jnp.float32)
        beta = 0.1 * jax.random.normal(k2, (c,), jnp.float32)
        mean = 0.1 * jax.random.normal(k3, (c,), jnp.float32)
        var = 1.0 + 0.1 * jax.random.uniform(k4, (c,), jnp.float32)
        return gamma, beta, mean, var

    keys = jax.random.split(key, 7)
    p = {}
    p["conv1_w"], p["conv1_b"] = conv_init(keys[0], 16, 1, 15)
    p["bn1"] = bn_init(keys[1], 16)
    p["conv2_w"], p["conv2_b"] = conv_init(keys[2], 32, 16, 15)
    p["bn2"] = bn_init(keys[3], 32)
    p["conv3_w"], p["conv3_b"] = conv_init(keys[4], 64, 32, 15)
    p["bn3"] = bn_init(keys[5], 64)
    p["conv4_w"], p["conv4_b"] = conv_init(keys[6], 32, 64, 15)
    return p


if __name__ == "__main__":
    key = jax.random.PRNGKey(0)
    k_param, k_data = jax.random.split(key)

    B, T = 2, 1600                                    # small mono waveform
    wav = jax.random.normal(k_data, (B, T), jnp.float32)
    params = init_params(k_param)

    out = jax.jit(wav_encoder_forward)(wav, params)
    out = jax.block_until_ready(out)

    # Conv arithmetic: L1=958, L2=158, L3=24, L4=2  ->  (2, 2, 32)
    assert out.shape == (B, 2, 32), out.shape
    assert out.dtype == jnp.float32
    assert bool(jnp.all(jnp.isfinite(out)))

    # Loose correctness check vs. an f32 XLA reference (kernel matmuls run in bf16).
    ref = jax.block_until_ready(jax.jit(_reference_forward)(wav, params))
    rel_l2 = float(jnp.linalg.norm(out - ref) / (jnp.linalg.norm(ref) + 1e-6))
    assert rel_l2 < 0.1, rel_l2

    print("KERNEL_OK")
</pallas_src>

<mosaic_0001>
module attributes {stable_mosaic.version = 11 : i64} {
  func.func @_fused_wav_encoder_kernel(%arg0: i32, %arg1: memref<1x40x160xbf16, #tpu.memory_space<vmem>>, %arg2: memref<96x40xbf16, #tpu.memory_space<vmem>>, %arg3: memref<96x1xf32, #tpu.memory_space<vmem>>, %arg4: memref<3x32x96xbf16, #tpu.memory_space<vmem>>, %arg5: memref<32x1xf32, #tpu.memory_space<vmem>>, %arg6: memref<64x480xbf16, #tpu.memory_space<vmem>>, %arg7: memref<64x1xf32, #tpu.memory_space<vmem>>, %arg8: memref<144x24xbf16, #tpu.memory_space<vmem>>, %arg9: memref<32x960xbf16, #tpu.memory_space<vmem>>, %arg10: memref<32x1xf32, #tpu.memory_space<vmem>>, %arg11: memref<10x2xbf16, #tpu.memory_space<vmem>>, %arg12: memref<1x32x2xf32, #tpu.memory_space<vmem>>) attributes {dimension_semantics = [#tpu.dimension_semantics<parallel>], iteration_bounds = array<i64: 2>, scalar_prefetch = 0 : i64, scratch_operands = 0 : i64, tpu.core_type = #tpu.core_type<tc>, window_params = [{transform_indices = @transform_0, window_bounds = array<i64: 1, 40, 160>}, {pipeline_mode = #tpu.pipeline_mode<synchronous>, transform_indices = @transform_1, window_bounds = array<i64: 96, 40>}, {pipeline_mode = #tpu.pipeline_mode<synchronous>, transform_indices = @transform_2, window_bounds = array<i64: 96, 1>}, {pipeline_mode = #tpu.pipeline_mode<synchronous>, transform_indices = @transform_3, window_bounds = array<i64: 3, 32, 96>}, {pipeline_mode = #tpu.pipeline_mode<synchronous>, transform_indices = @transform_4, window_bounds = array<i64: 32, 1>}, {pipeline_mode = #tpu.pipeline_mode<synchronous>, transform_indices = @transform_5, window_bounds = array<i64: 64, 480>}, {pipeline_mode = #tpu.pipeline_mode<synchronous>, transform_indices = @transform_6, window_bounds = array<i64: 64, 1>}, {pipeline_mode = #tpu.pipeline_mode<synchronous>, transform_indices = @transform_7, window_bounds = array<i64: 144, 24>}, {pipeline_mode = #tpu.pipeline_mode<synchronous>, transform_indices = @transform_8, window_bounds = array<i64: 32, 960>}, {pipeline_mode = #tpu.pipeline_mode<synchronous>, transform_indices = @transform_9, window_bounds = array<i64: 32, 1>}, {pipeline_mode = #tpu.pipeline_mode<synchronous>, transform_indices = @transform_10, window_bounds = array<i64: 10, 2>}, {transform_indices = @transform_11, window_bounds = array<i64: 1, 32, 2>}]} {
    %c0 = arith.constant 0 : index
    %c0_0 = arith.constant 0 : index
    %0 = vector.load %arg2[%c0, %c0_0] : memref<96x40xbf16, #tpu.memory_space<vmem>>, vector<96x40xbf16>
    %c0_1 = arith.constant 0 : index
    %c0_2 = arith.constant 0 : index
    %c0_3 = arith.constant 0 : index
    %1 = vector.load %arg1[%c0_1, %c0_2, %c0_3] : memref<1x40x160xbf16, #tpu.memory_space<vmem>>, vector<1x40x160xbf16>
    %2 = vector.shape_cast %1 : vector<1x40x160xbf16> to vector<40x160xbf16>
    %cst = arith.constant dense<0.000000e+00> : vector<96x160xf32>
    %3 = tpu.matmul %0, %2, %cst {dimension_numbers = #tpu.dot_dimension_numbers<[1], [0], [0], [1], [0, 0, 1, 1], [], []>} : vector<96x40xbf16>, vector<40x160xbf16>, vector<96x160xf32> -> vector<96x160xf32>
    %c0_4 = arith.constant 0 : index
    %c0_5 = arith.constant 0 : index
    %4 = vector.load %arg3[%c0_4, %c0_5] : memref<96x1xf32, #tpu.memory_space<vmem>>, vector<96x1xf32>
    %5 = vector.broadcast %4 : vector<96x1xf32> to vector<96x160xf32>
    %6 = arith.addf %3, %5 : vector<96x160xf32>
    %cst_6 = arith.constant 3.000000e-01 : f32
    %7 = vector.broadcast %cst_6 : f32 to vector<96x160xf32>
    %8 = arith.mulf %7, %6 : vector<96x160xf32>
    %9 = arith.maximumf %6, %8 : vector<96x160xf32>
    %10 = arith.truncf %9 : vector<96x160xf32> to vector<96x160xbf16>
    %c0_7 = arith.constant 0 : index
    %c0_8 = arith.constant 0 : index
    %c0_9 = arith.constant 0 : index
    %11 = vector.load %arg4[%c0_7, %c0_8, %c0_9] : memref<3x32x96xbf16, #tpu.memory_space<vmem>>, vector<1x32x96xbf16>
    %12 = vector.shape_cast %11 : vector<1x32x96xbf16> to vector<32x96xbf16>
    %13 = vector.extract_strided_slice %10 {offsets = [0, 0], sizes = [96, 158], strides = [1, 1]} : vector<96x160xbf16> to vector<96x158xbf16>
    %cst_10 = arith.constant dense<0.000000e+00> : vector<32x158xf32>
    %14 = tpu.matmul %12, %13, %cst_10 {dimension_numbers = #tpu.dot_dimension_numbers<[1], [0], [0], [1], [0, 0, 1, 1], [], []>} : vector<32x96xbf16>, vector<96x158xbf16>, vector<32x158xf32> -> vector<32x158xf32>
    %c1 = arith.constant 1 : index
    %c0_11 = arith.constant 0 : index
    %c0_12 = arith.constant 0 : index
    %15 = vector.load %arg4[%c1, %c0_11, %c0_12] : memref<3x32x96xbf16, #tpu.memory_space<vmem>>, vector<1x32x96xbf16>
    %16 = vector.shape_cast %15 : vector<1x32x96xbf16> to vector<32x96xbf16>
    %17 = vector.extract_strided_slice %10 {offsets = [0, 1], sizes = [96, 158], strides = [1, 1]} : vector<96x160xbf16> to vector<96x158xbf16>
    %cst_13 = arith.constant dense<0.000000e+00> : vector<32x158xf32>
    %18 = tpu.matmul %16, %17, %cst_13 {dimension_numbers = #tpu.dot_dimension_numbers<[1], [0], [0], [1], [0, 0, 1, 1], [], []>} : vector<32x96xbf16>, vector<96x158xbf16>, vector<32x158xf32> -> vector<32x158xf32>
    %19 = arith.addf %14, %18 : vector<32x158xf32>
    %c2 = arith.constant 2 : index
    %c0_14 = arith.constant 0 : index
    %c0_15 = arith.constant 0 : index
    %20 = vector.load %arg4[%c2, %c0_14, %c0_15] : memref<3x32x96xbf16, #tpu.memory_space<vmem>>, vector<1x32x96xbf16>
    %21 = vector.shape_cast %20 : vector<1x32x96xbf16> to vector<32x96xbf16>
    %22 = vector.extract_strided_slice %10 {offsets = [0, 2], sizes = [96, 158], strides = [1, 1]} : vector<96x160xbf16> to vector<96x158xbf16>
    %cst_16 = arith.constant dense<0.000000e+00> : vector<32x158xf32>
    %23 = tpu.matmul %21, %22, %cst_16 {dimension_numbers = #tpu.dot_dimension_numbers<[1], [0], [0], [1], [0, 0, 1, 1], [], []>} : vector<32x96xbf16>, vector<96x158xbf16>, vector<32x158xf32> -> vector<32x158xf32>
    %24 = arith.addf %19, %23 : vector<32x158xf32>
    %c0_17 = arith.constant 0 : index
    %c0_18 = arith.constant 0 : index
    %25 = vector.load %arg5[%c0_17, %c0_18] : memref<32x1xf32, #tpu.memory_space<vmem>>, vector<32x1xf32>
    %26 = vector.broadcast %25 : vector<32x1xf32> to vector<32x158xf32>
    %27 = arith.addf %24, %26 : vector<32x158xf32>
    %cst_19 = arith.constant 3.000000e-01 : f32
    %28 = vector.broadcast %cst_19 : f32 to vector<32x158xf32>
    %29 = arith.mulf %28, %27 : vector<32x158xf32>
    %30 = arith.maximumf %27, %29 : vector<32x158xf32>
    %31 = arith.truncf %30 : vector<32x158xf32> to vector<32x158xbf16>
    %32 = vector.extract_strided_slice %31 {offsets = [0, 0], sizes = [32, 144], strides = [1, 1]} : vector<32x158xbf16> to vector<32x144xbf16>
    %33 = vector.extract_strided_slice %31 {offsets = [0, 1], sizes = [32, 144], strides = [1, 1]} : vector<32x158xbf16> to vector<32x144xbf16>
    %34 = vector.extract_strided_slice %31 {offsets = [0, 2], sizes = [32, 144], strides = [1, 1]} : vector<32x158xbf16> to vector<32x144xbf16>
    %35 = vector.extract_strided_slice %31 {offsets = [0, 3], sizes = [32, 144], strides = [1, 1]} : vector<32x158xbf16> to vector<32x144xbf16>
    %36 = vector.extract_strided_slice %31 {offsets = [0, 4], sizes = [32, 144], strides = [1, 1]} : vector<32x158xbf16> to vector<32x144xbf16>
    %37 = vector.extract_strided_slice %31 {offsets = [0, 5], sizes = [32, 144], strides = [1, 1]} : vector<32x158xbf16> to vector<32x144xbf16>
    %38 = vector.extract_strided_slice %31 {offsets = [0, 6], sizes = [32, 144], strides = [1, 1]} : vector<32x158xbf16> to vector<32x144xbf16>
    %39 = vector.extract_strided_slice %31 {offsets = [0, 7], sizes = [32, 144], strides = [1, 1]} : vector<32x158xbf16> to vector<32x144xbf16>
    %40 = vector.extract_strided_slice %31 {offsets = [0, 8], sizes = [32, 144], strides = [1, 1]} : vector<32x158xbf16> to vector<32x144xbf16>
    %41 = vector.extract_strided_slice %31 {offsets = [0, 9], sizes = [32, 144], strides = [1, 1]} : vector<32x158xbf16> to vector<32x144xbf16>
    %42 = vector.extract_strided_slice %31 {offsets = [0, 10], sizes = [32, 144], strides = [1, 1]} : vector<32x158xbf16> to vector<32x144xbf16>
    %43 = vector.extract_strided_slice %31 {offsets = [0, 11], sizes = [32, 144], strides = [1, 1]} : vector<32x158xbf16> to vector<32x144xbf16>
    %44 = vector.extract_strided_slice %31 {offsets = [0, 12], sizes = [32, 144], strides = [1, 1]} : vector<32x158xbf16> to vector<32x144xbf16>
    %45 = vector.extract_strided_slice %31 {offsets = [0, 13], sizes = [32, 144], strides = [1, 1]} : vector<32x158xbf16> to vector<32x144xbf16>
    %46 = vector.extract_strided_slice %31 {offsets = [0, 14], sizes = [32, 144], strides = [1, 1]} : vector<32x158xbf16> to vector<32x144xbf16>
    %47 = tpu.concatenate %32, %33, %34, %35, %36, %37, %38, %39, %40, %41, %42, %43, %44, %45, %46 in 0 : vector<32x144xbf16>, vector<32x144xbf16>, vector<32x144xbf16>, vector<32x144xbf16>, vector<32x144xbf16>, vector<32x144xbf16>, vector<32x144xbf16>, vector<32x144xbf16>, vector<32x144xbf16>, vector<32x144xbf16>, vector<32x144xbf16>, vector<32x144xbf16>, vector<32x144xbf16>, vector<32x144xbf16>, vector<32x144xbf16> -> vector<480x144xbf16>
    %c0_20 = arith.constant 0 : index
    %c0_21 = arith.constant 0 : index
    %48 = vector.load %arg8[%c0_20, %c0_21] : memref<144x24xbf16, #tpu.memory_space<vmem>>, vector<144x24xbf16>
    %cst_22 = arith.constant dense<0.000000e+00> : vector<480x24xf32>
    %49 = tpu.matmul %47, %48, %cst_22 {dimension_numbers = #tpu.dot_dimension_numbers<[1], [0], [0], [1], [0, 0, 1, 1], [], []>} : vector<480x144xbf16>, vector<144x24xbf16>, vector<480x24xf32> -> vector<480x24xf32>
    %50 = arith.truncf %49 : vector<480x24xf32> to vector<480x24xbf16>
    %c0_23 = arith.constant 0 : index
    %c0_24 = arith.constant 0 : index
    %51 = vector.load %arg6[%c0_23, %c0_24] : memref<64x480xbf16, #tpu.memory_space<vmem>>, vector<64x480xbf16>
    %cst_25 = arith.constant dense<0.000000e+00> : vector<64x24xf32>
    %52 = tpu.matmul %51, %50, %cst_25 {dimension_numbers = #tpu.dot_dimension_numbers<[1], [0], [0], [1], [0, 0, 1, 1], [], []>} : vector<64x480xbf16>, vector<480x24xbf16>, vector<64x24xf32> -> vector<64x24xf32>
    %c0_26 = arith.constant 0 : index
    %c0_27 = arith.constant 0 : index
    %53 = vector.load %arg7[%c0_26, %c0_27] : memref<64x1xf32, #tpu.memory_space<vmem>>, vector<64x1xf32>
    %54 = vector.broadcast %53 : vector<64x1xf32> to vector<64x24xf32>
    %55 = arith.addf %52, %54 : vector<64x24xf32>
    %cst_28 = arith.constant 3.000000e-01 : f32
    %56 = vector.broadcast %cst_28 : f32 to vector<64x24xf32>
    %57 = arith.mulf %56, %55 : vector<64x24xf32>
    %58 = arith.maximumf %55, %57 : vector<64x24xf32>
    %59 = arith.truncf %58 : vector<64x24xf32> to vector<64x24xbf16>
    %60 = vector.extract_strided_slice %59 {offsets = [0, 0], sizes = [64, 10], strides = [1, 1]} : vector<64x24xbf16> to vector<64x10xbf16>
    %61 = vector.extract_strided_slice %59 {offsets = [0, 1], sizes = [64, 10], strides = [1, 1]} : vector<64x24xbf16> to vector<64x10xbf16>
    %62 = vector.extract_strided_slice %59 {offsets = [0, 2], sizes = [64, 10], strides = [1, 1]} : vector<64x24xbf16> to vector<64x10xbf16>
    %63 = vector.extract_strided_slice %59 {offsets = [0, 3], sizes = [64, 10], strides = [1, 1]} : vector<64x24xbf16> to vector<64x10xbf16>
    %64 = vector.extract_strided_slice %59 {offsets = [0, 4], sizes = [64, 10], strides = [1, 1]} : vector<64x24xbf16> to vector<64x10xbf16>
    %65 = vector.extract_strided_slice %59 {offsets = [0, 5], sizes = [64, 10], strides = [1, 1]} : vector<64x24xbf16> to vector<64x10xbf16>
    %66 = vector.extract_strided_slice %59 {offsets = [0, 6], sizes = [64, 10], strides = [1, 1]} : vector<64x24xbf16> to vector<64x10xbf16>
    %67 = vector.extract_strided_slice %59 {offsets = [0, 7], sizes = [64, 10], strides = [1, 1]} : vector<64x24xbf16> to vector<64x10xbf16>
    %68 = vector.extract_strided_slice %59 {offsets = [0, 8], sizes = [64, 10], strides = [1, 1]} : vector<64x24xbf16> to vector<64x10xbf16>
    %69 = vector.extract_strided_slice %59 {offsets = [0, 9], sizes = [64, 10], strides = [1, 1]} : vector<64x24xbf16> to vector<64x10xbf16>
    %70 = vector.extract_strided_slice %59 {offsets = [0, 10], sizes = [64, 10], strides = [1, 1]} : vector<64x24xbf16> to vector<64x10xbf16>
    %71 = vector.extract_strided_slice %59 {offsets = [0, 11], sizes = [64, 10], strides = [1, 1]} : vector<64x24xbf16> to vector<64x10xbf16>
    %72 = vector.extract_strided_slice %59 {offsets = [0, 12], sizes = [64, 10], strides = [1, 1]} : vector<64x24xbf16> to vector<64x10xbf16>
    %73 = vector.extract_strided_slice %59 {offsets = [0, 13], sizes = [64, 10], strides = [1, 1]} : vector<64x24xbf16> to vector<64x10xbf16>
    %74 = vector.extract_strided_slice %59 {offsets = [0, 14], sizes = [64, 10], strides = [1, 1]} : vector<64x24xbf16> to vector<64x10xbf16>
    %75 = tpu.concatenate %60, %61, %62, %63, %64, %65, %66, %67, %68, %69, %70, %71, %72, %73, %74 in 0 : vector<64x10xbf16>, vector<64x10xbf16>, vector<64x10xbf16>, vector<64x10xbf16>, vector<64x10xbf16>, vector<64x10xbf16>, vector<64x10xbf16>, vector<64x10xbf16>, vector<64x10xbf16>, vector<64x10xbf16>, vector<64x10xbf16>, vector<64x10xbf16>, vector<64x10xbf16>, vector<64x10xbf16>, vector<64x10xbf16> -> vector<960x10xbf16>
    %c0_29 = arith.constant 0 : index
    %c0_30 = arith.constant 0 : index
    %76 = vector.load %arg11[%c0_29, %c0_30] : memref<10x2xbf16, #tpu.memory_space<vmem>>, vector<10x2xbf16>
    %cst_31 = arith.constant dense<0.000000e+00> : vector<960x2xf32>
    %77 = tpu.matmul %75, %76, %cst_31 {dimension_numbers = #tpu.dot_dimension_numbers<[1], [0], [0], [1], [0, 0, 1, 1], [], []>} : vector<960x10xbf16>, vector<10x2xbf16>, vector<960x2xf32> -> vector<960x2xf32>
    %78 = arith.truncf %77 : vector<960x2xf32> to vector<960x2xbf16>
    %c0_32 = arith.constant 0 : index
    %c0_33 = arith.constant 0 : index
    %79 = vector.load %arg9[%c0_32, %c0_33] : memref<32x960xbf16, #tpu.memory_space<vmem>>, vector<32x960xbf16>
    %cst_34 = arith.constant dense<0.000000e+00> : vector<32x2xf32>
    %80 = tpu.matmul %79, %78, %cst_34 {dimension_numbers = #tpu.dot_dimension_numbers<[1], [0], [0], [1], [0, 0, 1, 1], [], []>} : vector<32x960xbf16>, vector<960x2xbf16>, vector<32x2xf32> -> vector<32x2xf32>
    %c0_35 = arith.constant 0 : index
    %c0_36 = arith.constant 0 : index
    %81 = vector.load %arg10[%c0_35, %c0_36] : memref<32x1xf32, #tpu.memory_space<vmem>>, vector<32x1xf32>
    %82 = vector.broadcast %81 : vector<32x1xf32> to vector<32x2xf32>
    %83 = arith.addf %80, %82 : vector<32x2xf32>
    %c0_37 = arith.constant 0 : index
    %c0_38 = arith.constant 0 : index
    %c0_39 = arith.constant 0 : index
    %84 = vector.load %arg12[%c0_37, %c0_38, %c0_39] : memref<1x32x2xf32, #tpu.memory_space<vmem>>, vector<1x32x2xf32>
    %85 = vector.shape_cast %84 : vector<1x32x2xf32> to vector<32x2xf32>
    %86 = vector.shape_cast %83 : vector<32x2xf32> to vector<1x32x2xf32>
    tpu.vector_store %arg12[%c0_37, %c0_38, %c0_39], %86 {strides = array<i32>} : memref<1x32x2xf32, #tpu.memory_space<vmem>>, vector<1x32x2xf32>,
    return
  }
  func.func @transform_0(%arg0: i32) -> (i32, i32, i32) {
    %c0_i32 = arith.constant 0 : i32
    %c0_i32_0 = arith.constant 0 : i32
    %c0_i32_1 = arith.constant 0 : i32
    return %arg0, %c0_i32, %c0_i32_0 : i32, i32, i32
  }
  func.func @transform_1(%arg0: i32) -> (i32, i32) {
    %c0_i32 = arith.constant 0 : i32
    %c0_i32_0 = arith.constant 0 : i32
    %c0_i32_1 = arith.constant 0 : i32
    return %c0_i32, %c0_i32_0 : i32, i32
  }
  func.func @transform_2(%arg0: i32) -> (i32, i32) {
    %c0_i32 = arith.constant 0 : i32
    %c0_i32_0 = arith.constant 0 : i32
    %c0_i32_1 = arith.constant 0 : i32
    return %c0_i32, %c0_i32_0 : i32, i32
  }
  func.func @transform_3(%arg0: i32) -> (i32, i32, i32) {
    %c0_i32 = arith.constant 0 : i32
    %c0_i32_0 = arith.constant 0 : i32
    %c0_i32_1 = arith.constant 0 : i32
    %c0_i32_2 = arith.constant 0 : i32
    return %c0_i32, %c0_i32_0, %c0_i32_1 : i32, i32, i32
  }
  func.func @transform_4(%arg0: i32) -> (i32, i32) {
    %c0_i32 = arith.constant 0 : i32
    %c0_i32_0 = arith.constant 0 : i32
    %c0_i32_1 = arith.constant 0 : i32
    return %c0_i32, %c0_i32_0 : i32, i32
  }
  func.func @transform_5(%arg0: i32) -> (i32, i32) {
    %c0_i32 = arith.constant 0 : i32
    %c0_i32_0 = arith.constant 0 : i32
    %c0_i32_1 = arith.constant 0 : i32
    return %c0_i32, %c0_i32_0 : i32, i32
  }
  func.func @transform_6(%arg0: i32) -> (i32, i32) {
    %c0_i32 = arith.constant 0 : i32
    %c0_i32_0 = arith.constant 0 : i32
    %c0_i32_1 = arith.constant 0 : i32
    return %c0_i32, %c0_i32_0 : i32, i32
  }
  func.func @transform_7(%arg0: i32) -> (i32, i32) {
    %c0_i32 = arith.constant 0 : i32
    %c0_i32_0 = arith.constant 0 : i32
    %c0_i32_1 = arith.constant 0 : i32
    return %c0_i32, %c0_i32_0 : i32, i32
  }
  func.func @transform_8(%arg0: i32) -> (i32, i32) {
    %c0_i32 = arith.constant 0 : i32
    %c0_i32_0 = arith.constant 0 : i32
    %c0_i32_1 = arith.constant 0 : i32
    return %c0_i32, %c0_i32_0 : i32, i32
  }
  func.func @transform_9(%arg0: i32) -> (i32, i32) {
    %c0_i32 = arith.constant 0 : i32
    %c0_i32_0 = arith.constant 0 : i32
    %c0_i32_1 = arith.constant 0 : i32
    return %c0_i32, %c0_i32_0 : i32, i32
  }
  func.func @transform_10(%arg0: i32) -> (i32, i32) {
    %c0_i32 = arith.constant 0 : i32
    %c0_i32_0 = arith.constant 0 : i32
    %c0_i32_1 = arith.constant 0 : i32
    return %c0_i32, %c0_i32_0 : i32, i32
  }
  func.func @transform_11(%arg0: i32) -> (i32, i32, i32) {
    %c0_i32 = arith.constant 0 : i32
    %c0_i32_0 = arith.constant 0 : i32
    %c0_i32_1 = arith.constant 0 : i32
    return %arg0, %c0_i32, %c0_i32_0 : i32, i32, i32
  }
}

</mosaic_0001>

<llo_original>
// kernel: tile.8
$region0: #{tile.8}
  #allocation0 [shape = 's32[1]{0}', space=sflag, size = 0x4, scoped, tag = 'scoped memory for tile.8']
  %s0 = inlined_call_operand.vmem [shape: f32[16], index: 0, kind: input, shape index: {}]
  %s1 = inlined_call_operand.vmem [shape: f32[6,16], index: 1, kind: output, shape index: {}]
  // Predicated region
  $region2: #{tile.8} parent=0 // pred_check
    _
  $region3: #{tile.8} parent=0 // pred_check_branch
    %3 = sbr.rel (0) target = $region5
  $region4: #{tile.8} parent=0 // pred_region
    _
  $region5: #{tile.8} parent=0 // pred_fallthru
    _
  %v4 = vld [vmem:[%s0] ss:$0 sm:$0xff]
  %5 = vst [vmem:[%s1] sm:$0xff] %v4

// kernel: tile.0
$region0: #{tile.0}
  %s0 = inlined_call_operand.vmem [shape: f32[6,16], index: 0, kind: input, shape index: {}]
  %s1 = inlined_call_operand.vmem [shape: f32[96,1], index: 1, kind: output, shape index: {}]
  %v2 = vld [vmem:[%s0] sm:$0x3f]
  %vm3 = vcmask 7168
  %4 = vst.msk [vmem:[%s1] ss:$16 sm:$0x3] %vm3, %v2
  %5 = vst.msk [vmem:[%s1] ss:$16 sm:$0xc] %vm3, %v2
  %6 = vst.msk [vmem:[%s1] ss:$16 sm:$0x30] %vm3, %v2
  %v7 = vld [vmem:[%s0] sm:$0x3f]
  %8 = vrot.lane.b32.xlu0 %v7, 127
  %v9 = vpop.permute.xlu0 %8
  %vm10 = vcmask 7168
  %s11 = scalar_lea.vmem %s1, 1
  %12 = vst.msk [vmem:[%s11] ss:$16 sm:$0x3] %vm10, %v9
  %s13 = scalar_lea.vmem %s1, 1
  %14 = vst.msk [vmem:[%s13] ss:$16 sm:$0xc] %vm10, %v9
  %s15 = scalar_lea.vmem %s1, 1
  %16 = vst.msk [vmem:[%s15] ss:$16 sm:$0x30] %vm10, %v9
  %v17 = vld [vmem:[%s0] sm:$0x3f]
  %18 = vrot.lane.b32.xlu0 %v17, 126
  %v19 = vpop.permute.xlu0 %18
  %vm20 = vcmask 7168
  %s21 = scalar_lea.vmem %s1, 2
  %22 = vst.msk [vmem:[%s21] ss:$16 sm:$0x3] %vm20, %v19
  %s23 = scalar_lea.vmem %s1, 2
  %24 = vst.msk [vmem:[%s23] ss:$16 sm:$0xc] %vm20, %v19
  %s25 = scalar_lea.vmem %s1, 2
  %26 = vst.msk [vmem:[%s25] ss:$16 sm:$0x30] %vm20, %v19
  %v27 = vld [vmem:[%s0] sm:$0x3f]
  %28 = vrot.lane.b32.xlu0 %v27, 125
  %v29 = vpop.permute.xlu0 %28
  %vm30 = vcmask 7168
  %s31 = scalar_lea.vmem %s1, 3
  %32 = vst.msk [vmem:[%s31] ss:$16 sm:$0x3] %vm30, %v29
  %s33 = scalar_lea.vmem %s1, 3
  %34 = vst.msk [vmem:[%s33] ss:$16 sm:$0xc] %vm30, %v29
  %s35 = scalar_lea.vmem %s1, 3
  %36 = vst.msk [vmem:[%s35] ss:$16 sm:$0x30] %vm30, %v29
  %v37 = vld [vmem:[%s0] sm:$0x3f]
  %38 = vrot.lane.b32.xlu0 %v37, 124
  %v39 = vpop.permute.xlu0 %38
  %vm40 = vcmask 7168
  %s41 = scalar_lea.vmem %s1, 4
  %42 = vst.msk [vmem:[%s41] ss:$16 sm:$0x3] %vm40, %v39
  %s43 = scalar_lea.vmem %s1, 4
  %44 = vst.msk [vmem:[%s43] ss:$16 sm:$0xc] %vm40, %v39
  %s45 = scalar_lea.vmem %s1, 4
  %46 = vst.msk [vmem:[%s45] ss:$16 sm:$0x30] %vm40, %v39
  %v47 = vld [vmem:[%s0] sm:$0x3f]
  %48 = vrot.lane.b32.xlu0 %v47, 123
  %v49 = vpop.permute.xlu0 %48
  %vm50 = vcmask 7168
  %s51 = scalar_lea.vmem %s1, 5
  %52 = vst.msk [vmem:[%s51] ss:$16 sm:$0x3] %vm50, %v49
  %s53 = scalar_lea.vmem %s1, 5
  %54 = vst.msk [vmem:[%s53] ss:$16 sm:$0xc] %vm50, %v49
  %s55 = scalar_lea.vmem %s1, 5
  %56 = vst.msk [vmem:[%s55] ss:$16 sm:$0x30] %vm50, %v49
  %v57 = vld [vmem:[%s0] sm:$0x3f]
  %58 = vrot.lane.b32.xlu0 %v57, 122
  %v59 = vpop.permute.xlu0 %58
  %vm60 = vcmask 7168
  %s61 = scalar_lea.vmem %s1, 6
  %62 = vst.msk [vmem:[%s61] ss:$16 sm:$0x3] %vm60, %v59
  %s63 = scalar_lea.vmem %s1, 6
  %64 = vst.msk [vmem:[%s63] ss:$16 sm:$0xc] %vm60, %v59
  %s65 = scalar_lea.vmem %s1, 6
  %66 = vst.msk [vmem:[%s65] ss:$16 sm:$0x30] %vm60, %v59
  %v67 = vld [vmem:[%s0] sm:$0x3f]
  %68 = vrot.lane.b32.xlu0 %v67, 121
  %v69 = vpop.permute.xlu0 %68
  %vm70 = vcmask 7168
  %s71 = scalar_lea.vmem %s1, 7
  %72 = vst.msk [vmem:[%s71] ss:$16 sm:$0x3] %vm70, %v69
  %s73 = scalar_lea.vmem %s1, 7
  %74 = vst.msk [vmem:[%s73] ss:$16 sm:$0xc] %vm70, %v69
  %s75 = scalar_lea.vmem %s1, 7
  %76 = vst.msk [vmem:[%s75] ss:$16 sm:$0x30] %vm70, %v69
  %v77 = vld [vmem:[%s0] sm:$0x3f]
  %78 = vrot.lane.b32.xlu0 %v77, 120
  %v79 = vpop.permute.xlu0 %78
  %vm80 = vcmask 7168
  %s81 = scalar_lea.vmem %s1, 8
  %82 = vst.msk [vmem:[%s81] ss:$16 sm:$0x3] %vm80, %v79
  %s83 = scalar_lea.vmem %s1, 8
  %84 = vst.msk [vmem:[%s83] ss:$16 sm:$0xc] %vm80, %v79
  %s85 = scalar_lea.vmem %s1, 8
  %86 = vst.msk [vmem:[%s85] ss:$16 sm:$0x30] %vm80, %v79
  %v87 = vld [vmem:[%s0] sm:$0x3f]
  %88 = vrot.lane.b32.xlu0 %v87, 119
  %v89 = vpop.permute.xlu0 %88
  %vm90 = vcmask 7168
  %s91 = scalar_lea.vmem %s1, 9
  %92 = vst.msk [vmem:[%s91] ss:$16 sm:$0x3] %vm90, %v89
  %s93 = scalar_lea.vmem %s1, 9
  %94 = vst.msk [vmem:[%s93] ss:$16 sm:$0xc] %vm90, %v89
  %s95 = scalar_lea.vmem %s1, 9
  %96 = vst.msk [vmem:[%s95] ss:$16 sm:$0x30] %vm90, %v89
  %v97 = vld [vmem:[%s0] sm:$0x3f]
  %98 = vrot.lane.b32.xlu0 %v97, 118
  %v99 = vpop.permute.xlu0 %98
  %vm100 = vcmask 7168
  %s101 = scalar_lea.vmem %s1, 10
  %102 = vst.msk [vmem:[%s101] ss:$16 sm:$0x3] %vm100, %v99
  %s103 = scalar_lea.vmem %s1, 10
  %104 = vst.msk [vmem:[%s103] ss:$16 sm:$0xc] %vm100, %v99
  %s105 = scalar_lea.vmem %s1, 10
  %106 = vst.msk [vmem:[%s105] ss:$16 sm:$0x30] %vm100, %v99
  %v107 = vld [vmem:[%s0] sm:$0x3f]
  %108 = vrot.lane.b32.xlu0 %v107, 117
  %v109 = vpop.permute.xlu0 %108
  %vm110 = vcmask 7168
  %s111 = scalar_lea.vmem %s1, 11
  %112 = vst.msk [vmem:[%s111] ss:$16 sm:$0x3] %vm110, %v109
  %s113 = scalar_lea.vmem %s1, 11
  %114 = vst.msk [vmem:[%s113] ss:$16 sm:$0xc] %vm110, %v109
  %s115 = scalar_lea.vmem %s1, 11
  %116 = vst.msk [vmem:[%s115] ss:$16 sm:$0x30] %vm110, %v109
  %v117 = vld [vmem:[%s0] sm:$0x3f]
  %118 = vrot.lane.b32.xlu0 %v117, 116
  %v119 = vpop.permute.xlu0 %118
  %vm120 = vcmask 7168
  %s121 = scalar_lea.vmem %s1, 12
  %122 = vst.msk [vmem:[%s121] ss:$16 sm:$0x3] %vm120, %v119
  %s123 = scalar_lea.vmem %s1, 12
  %124 = vst.msk [vmem:[%s123] ss:$16 sm:$0xc] %vm120, %v119
  %s125 = scalar_lea.vmem %s1, 12
  %126 = vst.msk [vmem:[%s125] ss:$16 sm:$0x30] %vm120, %v119
  %v127 = vld [vmem:[%s0] sm:$0x3f]
  %128 = vrot.lane.b32.xlu0 %v127, 115
  %v129 = vpop.permute.xlu0 %128
  %vm130 = vcmask 7168
  %s131 = scalar_lea.vmem %s1, 13
  %132 = vst.msk [vmem:[%s131] ss:$16 sm:$0x3] %vm130, %v129
  %s133 = scalar_lea.vmem %s1, 13
  %134 = vst.msk [vmem:[%s133] ss:$16 sm:$0xc] %vm130, %v129
  %s135 = scalar_lea.vmem %s1, 13
  %136 = vst.msk [vmem:[%s135] ss:$16 sm:$0x30] %vm130, %v129
  %v137 = vld [vmem:[%s0] sm:$0x3f]
  %138 = vrot.lane.b32.xlu0 %v137, 114
  %v139 = vpop.permute.xlu0 %138
  %vm140 = vcmask 7168
  %s141 = scalar_lea.vmem %s1, 14
  %142 = vst.msk [vmem:[%s141] ss:$16 sm:$0x3] %vm140, %v139
  %s143 = scalar_lea.vmem %s1, 14
  %144 = vst.msk [vmem:[%s143] ss:$16 sm:$0xc] %vm140, %v139
  %s145 = scalar_lea.vmem %s1, 14
  %146 = vst.msk [vmem:[%s145] ss:$16 sm:$0x30] %vm140, %v139
  %v147 = vld [vmem:[%s0] sm:$0x3f]
  %148 = vrot.lane.b32.xlu0 %v147, 113
  %v149 = vpop.permute.xlu0 %148
  %vm150 = vcmask 7168
  %s151 = scalar_lea.vmem %s1, 15
  %152 = vst.msk [vmem:[%s151] ss:$16 sm:$0x3] %vm150, %v149
  %s153 = scalar_lea.vmem %s1, 15
  %154 = vst.msk [vmem:[%s153] ss:$16 sm:$0xc] %vm150, %v149
  %s155 = scalar_lea.vmem %s1, 15
  %156 = vst.msk [vmem:[%s155] ss:$16 sm:$0x30] %vm150, %v149

// kernel: wav_encoder_forward.1
$region0: #{wav_encoder_forward.1}
  #allocation0 [shape = 'u32[]', space=smem, size = 0x4, offset = 0x4, fixed_abs, tag = 'smem constant byte address 0x4 - core index']
  #allocation1 [shape = 'u32[144,128]{1,0:T(1,128)}', space=vmem, size = 0x12000, scoped, tag = 'internal scratch']
  %s0 = inlined_call_operand.vmem [shape: bf16[2,40,160], index: 0, kind: input, shape index: {}]
  %s1 = inlined_call_operand.vmem [shape: bf16[96,40], index: 1, kind: input, shape index: {}]
  %s2 = inlined_call_operand.vmem [shape: f32[96,1], index: 2, kind: input, shape index: {}]
  %s3 = inlined_call_operand.vmem [shape: bf16[3,32,96], index: 3, kind: input, shape index: {}]
  %s4 = inlined_call_operand.vmem [shape: f32[32,1], index: 4, kind: input, shape index: {}]
  %s5 = inlined_call_operand.vmem [shape: bf16[64,480], index: 5, kind: input, shape index: {}]
  %s6 = inlined_call_operand.vmem [shape: f32[64,1], index: 6, kind: input, shape index: {}]
  %s7 = inlined_call_operand.vmem [shape: bf16[144,24], index: 7, kind: input, shape index: {}]
  %s8 = inlined_call_operand.vmem [shape: bf16[32,960], index: 8, kind: input, shape index: {}]
  %s9 = inlined_call_operand.vmem [shape: f32[32,1], index: 9, kind: input, shape index: {}]
  %s10 = inlined_call_operand.vmem [shape: bf16[10,2], index: 10, kind: input, shape index: {}]
  %s11 = inlined_call_operand.vmem [shape: f32[2,32,2], index: 11, kind: output, shape index: {}]
  %s12 = sld [smem:[#allocation0]]
  $region77: #{wav_encoder_forward.1} parent=0
    _
  %s14 = ssub.s32 1, %s12
  %s15 = scalar_select 0, %s14, %s12
  loop: start=0, step=1, limit=4
  $region2: #{wav_encoder_forward.1} parent=0 // loop_pre_header
    _
  $region3: #{wav_encoder_forward.1} parent=0 // loop_header
    %s17 = sphi 0, %s21
    %p18 = scmp.ge.s32.totalorder %s17, 4
    %s27 = sphi 0, %s29
    %s30 = sphi 0, %s27
    %s31 = sphi 0, %s30
    %s47 = sphi 0, %s31
    %s51 = sphi 0, %s51
    %s53 = sphi 0, %s51
    %s54 = sphi 0, %s53
    %s68 = sphi 0, %s54
    %s72 = sphi 0, %s72
    %s74 = sphi 0, %s72
    %s75 = sphi 0, %s74
    %s89 = sphi 0, %s75
    %s93 = sphi 0, %s93
    %s95 = sphi 0, %s93
    %s96 = sphi 0, %s95
    %s110 = sphi 0, %s96
    %s114 = sphi 0, %s114
    %s116 = sphi 0, %s114
    %s117 = sphi 0, %s116
    %s131 = sphi 0, %s117
    %s135 = sphi 0, %s135
    %s137 = sphi 0, %s135
    %s138 = sphi 0, %s137
    %s152 = sphi 0, %s138
    %s156 = sphi 0, %s156
    %s158 = sphi 0, %s156
    %s159 = sphi 0, %s158
    %s173 = sphi 0, %s159
    %s177 = sphi 0, %s177
    %s179 = sphi 0, %s177
    %s180 = sphi 0, %s179
    %s194 = sphi 0, %s180
    %s198 = sphi 0, %s198
    %s200 = sphi 0, %s198
    %s201 = sphi 0, %s200
    %s215 = sphi 0, %s201
    %s219 = sphi 0, %s219
    %s221 = sphi 0, %s219
    %s222 = sphi 0, %s221
    %s236 = sphi 0, %s222
    %s240 = sphi 0, %s240
    %s242 = sphi 0, %s240
    %s243 = sphi 0, %s242
    %s257 = sphi 0, %s243
    %s263 = sphi 0, %s265
    %s266 = sphi 0, %s263
    %s267 = sphi 0, %s266
    %s283 = sphi 0, %s267
  $region4: #{wav_encoder_forward.1} parent=0 // loop_header_branch
    %20 = sbr.rel (%p18) target = $region8
  $region5: #{wav_encoder_forward.1} parent=0 // loop_body
    %s22 = ssub.s32 %s17, 1
    %s23 = ssub.s32 %s17, 2
    %s24 = sadd.s32 %s17, 1
    %s25 = ssub.s32 %s17, %s24
    %p26 = scmp.eq.s32.totalorder %s25, 0
    %s28 = sadd.s32 %s27, 1
    %s29 = scalar_select %p26, %s27, %s28
    %p32 = pneg %p26
    %p33 = scmp.eq.s32.totalorder %s17, 1
    %p34 = por %p32, %p33
    %p35 = scmp.ne.s32.totalorder %s27, %s30
    %p36 = scmp.eq.s32.totalorder %s17, 0
    %p37 = por %p35, %p36
    %p38 = scmp.ne.s32.totalorder %s27, %s30
    %p39 = scmp.eq.s32.totalorder %s22, 1
    %p40 = por %p38, %p39
    %p41 = scmp.ne.s32.totalorder %s30, %s31
    %p42 = scmp.eq.s32.totalorder %s22, 0
    %p43 = por %p41, %p42
    %p44 = scmp.ne.s32.totalorder %s30, %s31
    %p45 = scmp.eq.s32.totalorder %s23, 1
    %p46 = por %p44, %p45
    %p48 = scmp.ne.s32.totalorder %s31, %s47
    %p49 = scmp.eq.s32.totalorder %s23, 0
    %p50 = por %p48, %p49
    %s52 = sadd.s32 %s51, 1
    %p55 = scmp.eq.s32.totalorder %s17, 1
    %p56 = scmp.ne.s32.totalorder %s51, %s53
    %p57 = scmp.eq.s32.totalorder %s17, 0
    %p58 = por %p56, %p57
    %p59 = scmp.ne.s32.totalorder %s51, %s53
    %p60 = scmp.eq.s32.totalorder %s22, 1
    %p61 = por %p59, %p60
    %p62 = scmp.ne.s32.totalorder %s53, %s54
    %p63 = scmp.eq.s32.totalorder %s22, 0
    %p64 = por %p62, %p63
    %p65 = scmp.ne.s32.totalorder %s53, %s54
    %p66 = scmp.eq.s32.totalorder %s23, 1
    %p67 = por %p65, %p66
    %p69 = scmp.ne.s32.totalorder %s54, %s68
    %p70 = scmp.eq.s32.totalorder %s23, 0
    %p71 = por %p69, %p70
    %s73 = sadd.s32 %s72, 1
    %p76 = scmp.eq.s32.totalorder %s17, 1
    %p77 = scmp.ne.s32.totalorder %s72, %s74
    %p78 = scmp.eq.s32.totalorder %s17, 0
    %p79 = por %p77, %p78
    %p80 = scmp.ne.s32.totalorder %s72, %s74
    %p81 = scmp.eq.s32.totalorder %s22, 1
    %p82 = por %p80, %p81
    %p83 = scmp.ne.s32.totalorder %s74, %s75
    %p84 = scmp.eq.s32.totalorder %s22, 0
    %p85 = por %p83, %p84
    %p86 = scmp.ne.s32.totalorder %s74, %s75
    %p87 = scmp.eq.s32.totalorder %s23, 1
    %p88 = por %p86, %p87
    %p90 = scmp.ne.s32.totalorder %s75, %s89
    %p91 = scmp.eq.s32.totalorder %s23, 0
    %p92 = por %p90, %p91
    %s94 = sadd.s32 %s93, 1
    %p97 = scmp.eq.s32.totalorder %s17, 1
    %p98 = scmp.ne.s32.totalorder %s93, %s95
    %p99 = scmp.eq.s32.totalorder %s17, 0
    %p100 = por %p98, %p99
    %p101 = scmp.ne.s32.totalorder %s93, %s95
    %p102 = scmp.eq.s32.totalorder %s22, 1
    %p103 = por %p101, %p102
    %p104 = scmp.ne.s32.totalorder %s95, %s96
    %p105 = scmp.eq.s32.totalorder %s22, 0
    %p106 = por %p104, %p105
    %p107 = scmp.ne.s32.totalorder %s95, %s96
    %p108 = scmp.eq.s32.totalorder %s23, 1
    %p109 = por %p107, %p108
    %p111 = scmp.ne.s32.totalorder %s96, %s110
    %p112 = scmp.eq.s32.totalorder %s23, 0
    %p113 = por %p111, %p112
    %s115 = sadd.s32 %s114, 1
    %p118 = scmp.eq.s32.totalorder %s17, 1
    %p119 = scmp.ne.s32.totalorder %s114, %s116
    %p120 = scmp.eq.s32.totalorder %s17, 0
    %p121 = por %p119, %p120
    %p122 = scmp.ne.s32.totalorder %s114, %s116
    %p123 = scmp.eq.s32.totalorder %s22, 1
    %p124 = por %p122, %p123
    %p125 = scmp.ne.s32.totalorder %s116, %s117
    %p126 = scmp.eq.s32.totalorder %s22, 0
    %p127 = por %p125, %p126
    %p128 = scmp.ne.s32.totalorder %s116, %s117
    %p129 = scmp.eq.s32.totalorder %s23, 1
    %p130 = por %p128, %p129
    %p132 = scmp.ne.s32.totalorder %s117, %s131
    %p133 = scmp.eq.s32.totalorder %s23, 0
    %p134 = por %p132, %p133
    %s136 = sadd.s32 %s135, 1
    %p139 = scmp.eq.s32.totalorder %s17, 1
    %p140 = scmp.ne.s32.totalorder %s135, %s137
    %p141 = scmp.eq.s32.totalorder %s17, 0
    %p142 = por %p140, %p141
    %p143 = scmp.ne.s32.totalorder %s135, %s137
    %p144 = scmp.eq.s32.totalorder %s22, 1
    %p145 = por %p143, %p144
    %p146 = scmp.ne.s32.totalorder %s137, %s138
    %p147 = scmp.eq.s32.totalorder %s22, 0
    %p148 = por %p146, %p147
    %p149 = scmp.ne.s32.totalorder %s137, %s138
    %p150 = scmp.eq.s32.totalorder %s23, 1
    %p151 = por %p149, %p150
    %p153 = scmp.ne.s32.totalorder %s138, %s152
    %p154 = scmp.eq.s32.totalorder %s23, 0
    %p155 = por %p153, %p154
    %s157 = sadd.s32 %s156, 1
    %p160 = scmp.eq.s32.totalorder %s17, 1
    %p161 = scmp.ne.s32.totalorder %s156, %s158
    %p162 = scmp.eq.s32.totalorder %s17, 0
    %p163 = por %p161, %p162
    %p164 = scmp.ne.s32.totalorder %s156, %s158
    %p165 = scmp.eq.s32.totalorder %s22, 1
    %p166 = por %p164, %p165
    %p167 = scmp.ne.s32.totalorder %s158, %s159
    %p168 = scmp.eq.s32.totalorder %s22, 0
    %p169 = por %p167, %p168
    %p170 = scmp.ne.s32.totalorder %s158, %s159
    %p171 = scmp.eq.s32.totalorder %s23, 1
    %p172 = por %p170, %p171
    %p174 = scmp.ne.s32.totalorder %s159, %s173
    %p175 = scmp.eq.s32.totalorder %s23, 0
    %p176 = por %p174, %p175
    %s178 = sadd.s32 %s177, 1
    %p181 = scmp.eq.s32.totalorder %s17, 1
    %p182 = scmp.ne.s32.totalorder %s177, %s179
    %p183 = scmp.eq.s32.totalorder %s17, 0
    %p184 = por %p182, %p183
    %p185 = scmp.ne.s32.totalorder %s177, %s179
    %p186 = scmp.eq.s32.totalorder %s22, 1
    %p187 = por %p185, %p186
    %p188 = scmp.ne.s32.totalorder %s179, %s180
    %p189 = scmp.eq.s32.totalorder %s22, 0
    %p190 = por %p188, %p189
    %p191 = scmp.ne.s32.totalorder %s179, %s180
    %p192 = scmp.eq.s32.totalorder %s23, 1
    %p193 = por %p191, %p192
    %p195 = scmp.ne.s32.totalorder %s180, %s194
    %p196 = scmp.eq.s32.totalorder %s23, 0
    %p197 = por %p195, %p196
    %s199 = sadd.s32 %s198, 1
    %p202 = scmp.eq.s32.totalorder %s17, 1
    %p203 = scmp.ne.s32.totalorder %s198, %s200
    %p204 = scmp.eq.s32.totalorder %s17, 0
    %p205 = por %p203, %p204
    %p206 = scmp.ne.s32.totalorder %s198, %s200
    %p207 = scmp.eq.s32.totalorder %s22, 1
    %p208 = por %p206, %p207
    %p209 = scmp.ne.s32.totalorder %s200, %s201
    %p210 = scmp.eq.s32.totalorder %s22, 0
    %p211 = por %p209, %p210
    %p212 = scmp.ne.s32.totalorder %s200, %s201
    %p213 = scmp.eq.s32.totalorder %s23, 1
    %p214 = por %p212, %p213
    %p216 = scmp.ne.s32.totalorder %s201, %s215
    %p217 = scmp.eq.s32.totalorder %s23, 0
    %p218 = por %p216, %p217
    %s220 = sadd.s32 %s219, 1
    %p223 = scmp.eq.s32.totalorder %s17, 1
    %p224 = scmp.ne.s32.totalorder %s219, %s221
    %p225 = scmp.eq.s32.totalorder %s17, 0
    %p226 = por %p224, %p225
    %p227 = scmp.ne.s32.totalorder %s219, %s221
    %p228 = scmp.eq.s32.totalorder %s22, 1
    %p229 = por %p227, %p228
    %p230 = scmp.ne.s32.totalorder %s221, %s222
    %p231 = scmp.eq.s32.totalorder %s22, 0
    %p232 = por %p230, %p231
    %p233 = scmp.ne.s32.totalorder %s221, %s222
    %p234 = scmp.eq.s32.totalorder %s23, 1
    %p235 = por %p233, %p234
    %p237 = scmp.ne.s32.totalorder %s222, %s236
    %p238 = scmp.eq.s32.totalorder %s23, 0
    %p239 = por %p237, %p238
    %s241 = sadd.s32 %s240, 1
    %p244 = scmp.eq.s32.totalorder %s17, 1
    %p245 = scmp.ne.s32.totalorder %s240, %s242
    %p246 = scmp.eq.s32.totalorder %s17, 0
    %p247 = por %p245, %p246
    %p248 = scmp.ne.s32.totalorder %s240, %s242
    %p249 = scmp.eq.s32.totalorder %s22, 1
    %p250 = por %p248, %p249
    %p251 = scmp.ne.s32.totalorder %s242, %s243
    %p252 = scmp.eq.s32.totalorder %s22, 0
    %p253 = por %p251, %p252
    %p254 = scmp.ne.s32.totalorder %s242, %s243
    %p255 = scmp.eq.s32.totalorder %s23, 1
    %p256 = por %p254, %p255
    %p258 = scmp.ne.s32.totalorder %s243, %s257
    %p259 = scmp.eq.s32.totalorder %s23, 0
    %p260 = por %p258, %p259
    %s261 = ssub.s32 %s17, %s24
    %p262 = scmp.eq.s32.totalorder %s261, 0
    %s264 = sadd.s32 %s263, 1
    %s265 = scalar_select %p262, %s263, %s264
    %p268 = pneg %p262
    %p269 = scmp.eq.s32.totalorder %s17, 1
    %p270 = por %p268, %p269
    %p271 = scmp.ne.s32.totalorder %s263, %s266
    %p272 = scmp.eq.s32.totalorder %s17, 0
    %p273 = por %p271, %p272
    %p274 = scmp.ne.s32.totalorder %s263, %s266
    %p275 = scmp.eq.s32.totalorder %s22, 1
    %p276 = por %p274, %p275
    %p277 = scmp.ne.s32.totalorder %s266, %s267
    %p278 = scmp.eq.s32.totalorder %s22, 0
    %p279 = por %p277, %p278
    %p280 = scmp.ne.s32.totalorder %s266, %s267
    %p281 = scmp.eq.s32.totalorder %s23, 1
    %p282 = por %p280, %p281
    %p284 = scmp.ne.s32.totalorder %s267, %s283
    %p285 = scmp.eq.s32.totalorder %s23, 0
    %p286 = por %p284, %p285
    %p287 = scmp.le.s32.totalorder 1, %s17
    %p288 = scmp.lt.s32.totalorder %s17, 3
    %p289 = pnand %p287, %p288
    %p290 = pneg %p289
    // Predicated region
    $region9: #{wav_encoder_forward.1} parent=5 // pred_check
      _
    $region10: #{wav_encoder_forward.1} parent=5 // pred_check_branch
      %292 = sbr.rel (%p289) target = $region12
    $region11: #{wav_encoder_forward.1} parent=5 // pred_region
      %s293 = ssub.s32 %s17, 1
      // Predicated region
      $region13: #{wav_encoder_forward.1} parent=11 // pred_check
        %p294 = pneg %p64
      $region14: #{wav_encoder_forward.1} parent=11 // pred_check_branch
        %296 = sbr.rel (%p294) target = $region16
      $region15: #{wav_encoder_forward.1} parent=11 // pred_region
        _
      $region16: #{wav_encoder_forward.1} parent=11 // pred_fallthru
        _
      // Predicated region
      $region17: #{wav_encoder_forward.1} parent=11 // pred_check
        %p297 = pneg %p85
      $region18: #{wav_encoder_forward.1} parent=11 // pred_check_branch
        %299 = sbr.rel (%p297) target = $region20
      $region19: #{wav_encoder_forward.1} parent=11 // pred_region
        _
      $region20: #{wav_encoder_forward.1} parent=11 // pred_fallthru
        _
      // Predicated region
      $region21: #{wav_encoder_forward.1} parent=11 // pred_check
        %p300 = pneg %p106
      $region22: #{wav_encoder_forward.1} parent=11 // pred_check_branch
        %302 = sbr.rel (%p300) target = $region24
      $region23: #{wav_encoder_forward.1} parent=11 // pred_region
        _
      $region24: #{wav_encoder_forward.1} parent=11 // pred_fallthru
        _
      // Predicated region
      $region25: #{wav_encoder_forward.1} parent=11 // pred_check
        %p303 = pneg %p127
      $region26: #{wav_encoder_forward.1} parent=11 // pred_check_branch
        %305 = sbr.rel (%p303) target = $region28
      $region27: #{wav_encoder_forward.1} parent=11 // pred_region
        _
      $region28: #{wav_encoder_forward.1} parent=11 // pred_fallthru
        _
      // Predicated region
      $region29: #{wav_encoder_forward.1} parent=11 // pred_check
        %p306 = pneg %p148
      $region30: #{wav_encoder_forward.1} parent=11 // pred_check_branch
        %308 = sbr.rel (%p306) target = $region32
      $region31: #{wav_encoder_forward.1} parent=11 // pred_region
        _
      $region32: #{wav_encoder_forward.1} parent=11 // pred_fallthru
        _
      // Predicated region
      $region33: #{wav_encoder_forward.1} parent=11 // pred_check
        %p309 = pneg %p169
      $region34: #{wav_encoder_forward.1} parent=11 // pred_check_branch
        %311 = sbr.rel (%p309) target = $region36
      $region35: #{wav_encoder_forward.1} parent=11 // pred_region
        _
      $region36: #{wav_encoder_forward.1} parent=11 // pred_fallthru
        _
      // Predicated region
      $region37: #{wav_encoder_forward.1} parent=11 // pred_check
        %p312 = pneg %p190
      $region38: #{wav_encoder_forward.1} parent=11 // pred_check_branch
        %314 = sbr.rel (%p312) target = $region40
      $region39: #{wav_encoder_forward.1} parent=11 // pred_region
        _
      $region40: #{wav_encoder_forward.1} parent=11 // pred_fallthru
        _
      // Predicated region
      $region41: #{wav_encoder_forward.1} parent=11 // pred_check
        %p315 = pneg %p211
      $region42: #{wav_encoder_forward.1} parent=11 // pred_check_branch
        %317 = sbr.rel (%p315) target = $region44
      $region43: #{wav_encoder_forward.1} parent=11 // pred_region
        _
      $region44: #{wav_encoder_forward.1} parent=11 // pred_fallthru
        _
      // Predicated region
      $region45: #{wav_encoder_forward.1} parent=11 // pred_check
        %p318 = pneg %p232
      $region46: #{wav_encoder_forward.1} parent=11 // pred_check_branch
        %320 = sbr.rel (%p318) target = $region48
      $region47: #{wav_encoder_forward.1} parent=11 // pred_region
        _
      $region48: #{wav_encoder_forward.1} parent=11 // pred_fallthru
        _
      // Predicated region
      $region49: #{wav_encoder_forward.1} parent=11 // pred_check
        %p321 = pneg %p253
      $region50: #{wav_encoder_forward.1} parent=11 // pred_check_branch
        %323 = sbr.rel (%p321) target = $region52
      $region51: #{wav_encoder_forward.1} parent=11 // pred_region
        _
      $region52: #{wav_encoder_forward.1} parent=11 // pred_fallthru
        _
    $region12: #{wav_encoder_forward.1} parent=5 // pred_fallthru
      _
    %p324 = scmp.lt.s32.totalorder %s17, 2
    // Predicated region
    $region53: #{wav_encoder_forward.1} parent=5 // pred_check
      %p325 = pneg %p324
    $region54: #{wav_encoder_forward.1} parent=5 // pred_check_branch
      %327 = sbr.rel (%p325) target = $region56
    $region55: #{wav_encoder_forward.1} parent=5 // pred_region
      // Predicated region
      $region57: #{wav_encoder_forward.1} parent=55 // pred_check
        %p328 = pneg %p37
      $region58: #{wav_encoder_forward.1} parent=55 // pred_check_branch
        %330 = sbr.rel (%p328) target = $region60
      $region59: #{wav_encoder_forward.1} parent=55 // pred_region
        %p331 = scmp.lt.s32.totalorder %s17, 1
        %s332 = scalar_select %p331, %s17, 1
        %s333 = smul.addr %s332, 10
        %s334 = smul.addr %s333, 4
        %s335 = scalar_lea.vmem %s0, %s334
      $region60: #{wav_encoder_forward.1} parent=55 // pred_fallthru
        _
    $region56: #{wav_encoder_forward.1} parent=5 // pred_fallthru
      _
    %p336 = scmp.le.s32.totalorder 1, %s17
    %p337 = scmp.lt.s32.totalorder %s17, 3
    %p338 = pnand %p336, %p337
    %p339 = pneg %p338
    // Predicated region
    $region61: #{wav_encoder_forward.1} parent=5 // pred_check
      _
    $region62: #{wav_encoder_forward.1} parent=5 // pred_check_branch
      %341 = sbr.rel (%p338) target = $region64
    $region63: #{wav_encoder_forward.1} parent=5 // pred_region
      %s342 = ssub.s32 %s17, 1
      %p343 = scmp.lt.s32.totalorder %s22, 1
      %s344 = scalar_select %p343, %s22, 1
      %s345 = smul.addr %s344, 10
      %s346 = smul.addr %s345, 4
      %s347 = scalar_lea.vmem %s0, %s346
      %p348 = pneg %p43
      %p349 = pneg %p40
      %p350 = pneg %p64
      %p351 = pneg %p61
      %p352 = pneg %p85
      %p353 = pneg %p82
      %p354 = pneg %p106
      %p355 = pneg %p103
      %p356 = pneg %p127
      %p357 = pneg %p124
      %p358 = pneg %p148
      %p359 = pneg %p145
      %p360 = pneg %p169
      %p361 = pneg %p166
      %p362 = pneg %p190
      %p363 = pneg %p187
      %p364 = pneg %p211
      %p365 = pneg %p208
      %p366 = pneg %p232
      %p367 = pneg %p229
      %p368 = pneg %p253
      %p369 = pneg %p250
      %p370 = pneg %p279
      %p371 = pneg %p276
      %p372 = scmp.lt.s32.totalorder %s22, 1
      %s373 = scalar_select %p372, %s22, 1
      %s374 = smul.addr %s373, 4
      %s375 = smul.addr %s374, 8
      %s376 = scalar_lea.vmem %s11, %s375
      %p377 = scmp.lt.s32.totalorder %s22, 1
      %s378 = scalar_select %p377, %s22, 1
      %s379 = smul.addr %s378, 10
      %s380 = smul.addr %s379, 4
      %s381 = scalar_lea.vmem %s0, %s380
      %p382 = scmp.lt.s32.totalorder %s22, 1
      %s383 = scalar_select %p382, %s22, 1
      %s384 = smul.addr %s383, 4
      %s385 = smul.addr %s384, 8
      %s386 = scalar_lea.vmem %s11, %s385
      %v388 = vld [vmem:[%s1] sm:$0xf]
      %v389 = vld [vmem:[%s1 + $0x4] sm:$0xf]
      %v390 = vld [vmem:[%s1 + $0x8] sm:$0xf]
      %v391 = vld [vmem:[%s1 + $0xc] sm:$0xf]
      %v392 = vld [vmem:[%s1 + $0x10] sm:$0xf]
      %v393 = vld [vmem:[%s1 + $0x14] sm:$0xf]
      %v394 = vld [vmem:[%s1 + $0x18] sm:$0xf]
      %v395 = vld [vmem:[%s1 + $0x1c] sm:$0xf]
      %v396 = vld [vmem:[%s1 + $0x20] sm:$0xf]
      %v397 = vld [vmem:[%s1 + $0x24] sm:$0xf]
      %v398 = vld [vmem:[%s1 + $0x28] sm:$0xf]
      %v399 = vld [vmem:[%s1 + $0x2c] sm:$0xf]
      %v400 = vld [vmem:[%s381] sm:$0xff]
      %v401 = vld [vmem:[%s381 + $0x8] sm:$0xff]
      %v402 = vld [vmem:[%s381 + $0x10] sm:$0xff]
      %v403 = vld [vmem:[%s381 + $0x18] sm:$0xff]
      %v404 = vld [vmem:[%s381 + $0x20] sm:$0xff]
      %v405 = vld [vmem:[%s2] sm:$0xff]
      %v406 = vld [vmem:[%s2 + $0x8] sm:$0xff]
      %v407 = vld [vmem:[%s2 + $0x10] sm:$0xff]
      %v408 = vld [vmem:[%s2 + $0x18] sm:$0xff]
      %v409 = vld [vmem:[%s2 + $0x20] sm:$0xff]
      %v410 = vld [vmem:[%s2 + $0x28] sm:$0xff]
      %v411 = vld [vmem:[%s2 + $0x30] sm:$0xff]
      %v412 = vld [vmem:[%s2 + $0x38] sm:$0xff]
      %v413 = vld [vmem:[%s2 + $0x40] sm:$0xff]
      %v414 = vld [vmem:[%s2 + $0x48] sm:$0xff]
      %v415 = vld [vmem:[%s2 + $0x50] sm:$0xff]
      %v416 = vld [vmem:[%s2 + $0x58] sm:$0xff]
      %418 = vset.pattern.permute.xlu0 0
      %419 = vperm.xlu0 %418, %v405
      %v420 = vpop.permute.xlu0 %419
      %423 = vset.pattern.permute.xlu0 0
      %424 = vperm.xlu0 %423, %v406
      %v425 = vpop.permute.xlu0 %424
      %428 = vset.pattern.permute.xlu0 0
      %429 = vperm.xlu0 %428, %v407
      %v430 = vpop.permute.xlu0 %429
      %433 = vset.pattern.permute.xlu0 0
      %434 = vperm.xlu0 %433, %v408
      %v435 = vpop.permute.xlu0 %434
      %438 = vset.pattern.permute.xlu0 0
      %439 = vperm.xlu0 %438, %v409
      %v440 = vpop.permute.xlu0 %439
      %443 = vset.pattern.permute.xlu0 0
      %444 = vperm.xlu0 %443, %v410
      %v445 = vpop.permute.xlu0 %444
      %448 = vset.pattern.permute.xlu0 0
      %449 = vperm.xlu0 %448, %v411
      %v450 = vpop.permute.xlu0 %449
      %453 = vset.pattern.permute.xlu0 0
      %454 = vperm.xlu0 %453, %v412
      %v455 = vpop.permute.xlu0 %454
      %458 = vset.pattern.permute.xlu0 0
      %459 = vperm.xlu0 %458, %v413
      %v460 = vpop.permute.xlu0 %459
      %463 = vset.pattern.permute.xlu0 0
      %464 = vperm.xlu0 %463, %v414
      %v465 = vpop.permute.xlu0 %464
      %468 = vset.pattern.permute.xlu0 0
      %469 = vperm.xlu0 %468, %v415
      %v470 = vpop.permute.xlu0 %469
      %473 = vset.pattern.permute.xlu0 0
      %474 = vperm.xlu0 %473, %v416
      %v475 = vpop.permute.xlu0 %474
      %v489 = vunpack.c.l.b16 %v388
      %v490 = vunpack.c.l.b16 %v389
      %v491 = vunpack.c.l.b16 %v390
      %v492 = vunpack.c.l.b16 %v391
      %v493 = vunpack.c.l.b16 %v392
      %v494 = vunpack.c.l.b16 %v393
      %v495 = vunpack.c.l.b16 %v394
      %v496 = vunpack.c.l.b16 %v395
      %v497 = vunpack.c.l.b16 %v396
      %v498 = vunpack.c.l.b16 %v397
      %v499 = vunpack.c.l.b16 %v398
      %v500 = vunpack.c.l.b16 %v399
      %v501 = vpack.c.b16 %v490, %v489
      %v502 = vpack.c.b16 %v492, %v491
      %v503 = vpack.c.b16 %v494, %v493
      %v504 = vpack.c.b16 %v496, %v495
      %v505 = vpack.c.b16 %v498, %v497
      %v506 = vpack.c.b16 %v500, %v499
      %v512 = vunpack.c.l.b16 %v400
      %v513 = vunpack.c.h.b16 %v400
      %v514 = vunpack.c.l.b16 %v401
      %v515 = vunpack.c.h.b16 %v401
      %v516 = vunpack.c.l.b16 %v402
      %v517 = vunpack.c.h.b16 %v402
      %v518 = vunpack.c.l.b16 %v403
      %v519 = vunpack.c.h.b16 %v403
      %v520 = vunpack.c.l.b16 %v404
      %v521 = vunpack.c.h.b16 %v404
      %v522 = vpack.c.b16 %v514, %v512
      %v523 = vpack.c.b16 %v515, %v513
      %v524 = vpack.c.b16 %v518, %v516
      %v525 = vpack.c.b16 %v519, %v517
      %v526 = vpack.c.b16 %v520, %v520
      %v527 = vpack.c.b16 %v521, %v521
      %vm532 = vcmask 326656
      %v534 = vsel %vm532, %v501, 0
      %v537 = vsel %vm532, %v502, 0
      %v540 = vsel %vm532, %v503, 0
      %v543 = vsel %vm532, %v504, 0
      %v546 = vsel %vm532, %v505, 0
      %v549 = vsel %vm532, %v506, 0
      %vm551 = vcmask 1043456
      %v553 = vsel %vm551, %v526, 0
      %v556 = vsel %vm551, %v527, 0
      %558 = vmatprep.subr.bf16.mxu0 %v523
      %559 = vmatpush1.bf16.msra.mxu0 %v522
      %560 = vmatprep.subr.bf16.mxu0 %v525
      %561 = vmatpush1.bf16.msra.mxu0 %v524
      %562 = vmatprep.subr.bf16.mxu0 %v556
      %563 = vmatpush1.bf16.msra.mxu0 %v553
      %564 = vmatprep.subr.bf16.mxu0 0
      %565 = vmatpush1.bf16.msra.mxu0 0
      %566 = vmatprep.subr.bf16.mxu0 0
      %567 = vmatpush1.bf16.msra.mxu0 0
      %568 = vmatprep.subr.bf16.mxu0 0
      %569 = vmatpush1.bf16.msra.mxu0 0
      %570 = vmatprep.subr.bf16.mxu0 0
      %571 = vmatpush1.bf16.msra.mxu0 0
      %572 = vmatprep.subr.bf16.mxu0 0
      %573 = vmatpush1.bf16.msra.mxu0 0
      %574 = vmatprep.subr.bf16.mxu0 0
      %575 = vmatpush1.bf16.msra.mxu0 0
      %576 = vmatprep.subr.bf16.mxu0 0
      %577 = vmatpush1.bf16.msra.mxu0 0
      %578 = vmatprep.subr.bf16.mxu0 0
      %579 = vmatpush1.bf16.msra.mxu0 0
      %580 = vmatprep.subr.bf16.mxu0 0
      %581 = vmatpush1.bf16.msra.mxu0 0
      %582 = vmatprep.subr.bf16.mxu0 0
      %583 = vmatpush1.bf16.msra.mxu0 0
      %584 = vmatprep.subr.bf16.mxu0 0
      %585 = vmatpush1.bf16.msra.mxu0 0
      %586 = vmatprep.subr.bf16.mxu0 0
      %587 = vmatpush1.bf16.msra.mxu0 0
      %588 = vmatprep.subr.bf16.mxu0 0
      %589 = vmatpush1.bf16.msra.mxu0 0
      %590 = vmatprep.mubr.bf16.mxu0 0
      %591 = vmatmul.mubr.bf16.gmra.mrb[0].mxu0 %v534
      %v592 = vpop.f32.mrb[0].mxu0
      %v593 = vadd.f32 %v420, %v592
      %v594 = vpop.f32.mrb[0].mxu0
      %v595 = vadd.f32 %v420, %v594
      %v596 = vpop.f32.mrb[0].mxu0
      %v597 = vadd.f32 %v425, %v596
      %v598 = vpop.f32.mrb[0].mxu0
      %v599 = vadd.f32 %v425, %v598
      %600 = vmatprep.mubr.bf16.mxu0 0
      %601 = vmatmul.mubr.bf16.gmra.mrb[0].mxu0 %v537
      %v602 = vpop.f32.mrb[0].mxu0
      %v603 = vadd.f32 %v430, %v602
      %v604 = vpop.f32.mrb[0].mxu0
      %v605 = vadd.f32 %v430, %v604
      %v606 = vpop.f32.mrb[0].mxu0
      %v607 = vadd.f32 %v435, %v606
      %v608 = vpop.f32.mrb[0].mxu0
      %v609 = vadd.f32 %v435, %v608
      %610 = vmatprep.mubr.bf16.mxu0 0
      %611 = vmatmul.mubr.bf16.gmra.mrb[0].mxu0 %v540
      %v612 = vpop.f32.mrb[0].mxu0
      %v613 = vadd.f32 %v440, %v612
      %v614 = vpop.f32.mrb[0].mxu0
      %v615 = vadd.f32 %v440, %v614
      %v616 = vpop.f32.mrb[0].mxu0
      %v617 = vadd.f32 %v445, %v616
      %v618 = vpop.f32.mrb[0].mxu0
      %v619 = vadd.f32 %v445, %v618
      %620 = vmatprep.mubr.bf16.mxu0 0
      %621 = vmatmul.mubr.bf16.gmra.mrb[0].mxu0 %v543
      %v622 = vpop.f32.mrb[0].mxu0
      %v623 = vadd.f32 %v450, %v622
      %v624 = vpop.f32.mrb[0].mxu0
      %v625 = vadd.f32 %v450, %v624
      %v626 = vpop.f32.mrb[0].mxu0
      %v627 = vadd.f32 %v455, %v626
      %v628 = vpop.f32.mrb[0].mxu0
      %v629 = vadd.f32 %v455, %v628
      %630 = vmatprep.mubr.bf16.mxu0 0
      %631 = vmatmul.mubr.bf16.gmra.mrb[0].mxu0 %v546
      %v632 = vpop.f32.mrb[0].mxu0
      %v633 = vadd.f32 %v460, %v632
      %v634 = vpop.f32.mrb[0].mxu0
      %v635 = vadd.f32 %v460, %v634
      %v636 = vpop.f32.mrb[0].mxu0
      %v637 = vadd.f32 %v465, %v636
      %v638 = vpop.f32.mrb[0].mxu0
      %v639 = vadd.f32 %v465, %v638
      %640 = vmatprep.mubr.bf16.mxu0 0
      %641 = vmatmul.mubr.bf16.gmra.mrb[0].mxu0 %v549
      %v642 = vpop.f32.mrb[0].mxu0
      %v643 = vadd.f32 %v470, %v642
      %v644 = vpop.f32.mrb[0].mxu0
      %v645 = vadd.f32 %v470, %v644
      %v646 = vpop.f32.mrb[0].mxu0
      %v647 = vadd.f32 %v475, %v646
      %v648 = vpop.f32.mrb[0].mxu0
      %v649 = vadd.f32 %v475, %v648
      %650 = vdwg.mxu0
      %v651 = vmul.f32 %v593, 0.3
      %v652 = vmul.f32 %v595, 0.3
      %v653 = vmul.f32 %v597, 0.3
      %v654 = vmul.f32 %v599, 0.3
      %v655 = vmul.f32 %v603, 0.3
      %v656 = vmul.f32 %v605, 0.3
      %v657 = vmul.f32 %v607, 0.3
      %v658 = vmul.f32 %v609, 0.3
      %v659 = vmul.f32 %v613, 0.3
      %v660 = vmul.f32 %v615, 0.3
      %v661 = vmul.f32 %v617, 0.3
      %v662 = vmul.f32 %v619, 0.3
      %v663 = vmul.f32 %v623, 0.3
      %v664 = vmul.f32 %v625, 0.3
      %v665 = vmul.f32 %v627, 0.3
      %v666 = vmul.f32 %v629, 0.3
      %v667 = vmul.f32 %v633, 0.3
      %v668 = vmul.f32 %v635, 0.3
      %v669 = vmul.f32 %v637, 0.3
      %v670 = vmul.f32 %v639, 0.3
      %v671 = vmul.f32 %v643, 0.3
      %v672 = vmul.f32 %v645, 0.3
      %v673 = vmul.f32 %v647, 0.3
      %v674 = vmul.f32 %v649, 0.3
      %v675 = vmax.f32 %v593, %v651
      %v676 = vmax.f32 %v595, %v652
      %v677 = vmax.f32 %v597, %v653
      %v678 = vmax.f32 %v599, %v654
      %v679 = vmax.f32 %v603, %v655
      %v680 = vmax.f32 %v605, %v656
      %v681 = vmax.f32 %v607, %v657
      %v682 = vmax.f32 %v609, %v658
      %v683 = vmax.f32 %v613, %v659
      %v684 = vmax.f32 %v615, %v660
      %v685 = vmax.f32 %v617, %v661
      %v686 = vmax.f32 %v619, %v662
      %v687 = vmax.f32 %v623, %v663
      %v688 = vmax.f32 %v625, %v664
      %v689 = vmax.f32 %v627, %v665
      %v690 = vmax.f32 %v629, %v666
      %v691 = vmax.f32 %v633, %v667
      %v692 = vmax.f32 %v635, %v668
      %v693 = vmax.f32 %v637, %v669
      %v694 = vmax.f32 %v639, %v670
      %v695 = vmax.f32 %v643, %v671
      %v696 = vmax.f32 %v645, %v672
      %v697 = vmax.f32 %v647, %v673
      %v698 = vmax.f32 %v649, %v674
      %v699 = vpack.c.bf16 %v677, %v675
      %v700 = vpack.c.bf16 %v678, %v676
      %v701 = vpack.c.bf16 %v681, %v679
      %v702 = vpack.c.bf16 %v682, %v680
      %v703 = vpack.c.bf16 %v685, %v683
      %v704 = vpack.c.bf16 %v686, %v684
      %v705 = vpack.c.bf16 %v689, %v687
      %v706 = vpack.c.bf16 %v690, %v688
      %v707 = vpack.c.bf16 %v693, %v691
      %v708 = vpack.c.bf16 %v694, %v692
      %v709 = vpack.c.bf16 %v697, %v695
      %v710 = vpack.c.bf16 %v698, %v696
      %v711 = vld [vmem:[%s3] sm:$0xf]
      %v712 = vld [vmem:[%s3 + $0x4] sm:$0xf]
      %v713 = vld [vmem:[%s3 + $0x8] sm:$0xf]
      %v714 = vld [vmem:[%s3 + $0xc] sm:$0xf]
      %s715 = scalar_lea.vmem %s3, 16
      %v716 = vld [vmem:[%s715] sm:$0xf]
      %v717 = vld [vmem:[%s715 + $0x4] sm:$0xf]
      %v718 = vld [vmem:[%s715 + $0x8] sm:$0xf]
      %v719 = vld [vmem:[%s715 + $0xc] sm:$0xf]
      %v724 = vunpack.c.l.b16 %v716
      %v725 = vunpack.c.l.b16 %v717
      %v726 = vunpack.c.l.b16 %v718
      %v727 = vunpack.c.l.b16 %v719
      %v728 = vpack.c.b16 %v725, %v724
      %v729 = vpack.c.b16 %v727, %v726
      %742 = vrot.lane.b32.xlu0 %v699, 127
      %v743 = vpop.permute.xlu0 %742
      %744 = vrot.lane.b32.xlu0 %v700, 127
      %v745 = vpop.permute.xlu0 %744
      %746 = vrot.lane.b32.xlu0 %v701, 127
      %v747 = vpop.permute.xlu0 %746
      %748 = vrot.lane.b32.xlu0 %v702, 127
      %v749 = vpop.permute.xlu0 %748
      %750 = vrot.lane.b32.xlu0 %v703, 127
      %v751 = vpop.permute.xlu0 %750
      %752 = vrot.lane.b32.xlu0 %v704, 127
      %v753 = vpop.permute.xlu0 %752
      %754 = vrot.lane.b32.xlu0 %v705, 127
      %v755 = vpop.permute.xlu0 %754
      %756 = vrot.lane.b32.xlu0 %v706, 127
      %v757 = vpop.permute.xlu0 %756
      %758 = vrot.lane.b32.xlu0 %v707, 127
      %v759 = vpop.permute.xlu0 %758
      %760 = vrot.lane.b32.xlu0 %v708, 127
      %v761 = vpop.permute.xlu0 %760
      %762 = vrot.lane.b32.xlu0 %v709, 127
      %v763 = vpop.permute.xlu0 %762
      %764 = vrot.lane.b32.xlu0 %v710, 127
      %v765 = vpop.permute.xlu0 %764
      %vm766 = vcmask 1039360
      %v767 = vsel %vm766, %v743, %v745
      %v768 = vsel %vm766, %v747, %v749
      %v769 = vsel %vm766, %v751, %v753
      %v770 = vsel %vm766, %v755, %v757
      %v771 = vsel %vm766, %v759, %v761
      %v772 = vsel %vm766, %v763, %v765
      %vm785 = vcmask 785408
      %v787 = vsel %vm785, %v728, 0
      %v790 = vsel %vm785, %v729, 0
      %792 = vmatprep.subr.bf16.mxu0 %v745
      %793 = vmatpush1.bf16.msra.mxu0 %v767
      %794 = vmatprep.subr.bf16.mxu0 %v749
      %795 = vmatpush1.bf16.msra.mxu0 %v768
      %796 = vmatprep.subr.bf16.mxu0 %v753
      %797 = vmatpush1.bf16.msra.mxu0 %v769
      %798 = vmatprep.subr.bf16.mxu0 %v757
      %799 = vmatpush1.bf16.msra.mxu0 %v770
      %800 = vmatprep.subr.bf16.mxu0 %v761
      %801 = vmatpush1.bf16.msra.mxu0 %v771
      %802 = vmatprep.subr.bf16.mxu0 %v765
      %803 = vmatpush1.bf16.msra.mxu0 %v772
      %804 = vmatprep.subr.bf16.mxu0 0
      %805 = vmatpush1.bf16.msra.mxu0 0
      %806 = vmatprep.subr.bf16.mxu0 0
      %807 = vmatpush1.bf16.msra.mxu0 0
      %808 = vmatprep.subr.bf16.mxu0 0
      %809 = vmatpush1.bf16.msra.mxu0 0
      %810 = vmatprep.subr.bf16.mxu0 0
      %811 = vmatpush1.bf16.msra.mxu0 0
      %812 = vmatprep.subr.bf16.mxu0 0
      %813 = vmatpush1.bf16.msra.mxu0 0
      %814 = vmatprep.subr.bf16.mxu0 0
      %815 = vmatpush1.bf16.msra.mxu0 0
      %816 = vmatprep.subr.bf16.mxu0 0
      %817 = vmatpush1.bf16.msra.mxu0 0
      %818 = vmatprep.subr.bf16.mxu0 0
      %819 = vmatpush1.bf16.msra.mxu0 0
      %820 = vmatprep.subr.bf16.mxu0 0
      %821 = vmatpush1.bf16.msra.mxu0 0
      %822 = vmatprep.subr.bf16.mxu0 0
      %823 = vmatpush1.bf16.msra.mxu0 0
      %824 = vmatprep.mubr.bf16.mxu0 0
      %825 = vmatmul.mubr.bf16.gmra.mrb[0].mxu0 %v787
      %v826 = vpop.f32.mrb[0].mxu0
      %v827 = vadd.f32 0.0, %v826
      %v828 = vpop.f32.mrb[0].mxu0
      %v829 = vadd.f32 0.0, %v828
      %v830 = vpop.f32.mrb[0].mxu0
      %v831 = vadd.f32 0.0, %v830
      %v832 = vpop.f32.mrb[0].mxu0
      %v833 = vadd.f32 0.0, %v832
      %834 = vmatprep.mubr.bf16.mxu0 0
      %835 = vmatmul.mubr.bf16.gmra.mrb[0].mxu0 %v790
      %v836 = vpop.f32.mrb[0].mxu0
      %v837 = vadd.f32 0.0, %v836
      %v838 = vpop.f32.mrb[0].mxu0
      %v839 = vadd.f32 0.0, %v838
      %v840 = vpop.f32.mrb[0].mxu0
      %v841 = vadd.f32 0.0, %v840
      %v842 = vpop.f32.mrb[0].mxu0
      %v843 = vadd.f32 0.0, %v842
      %844 = vdwg.mxu0
      %v849 = vunpack.c.l.b16 %v711
      %v850 = vunpack.c.l.b16 %v712
      %v851 = vunpack.c.l.b16 %v713
      %v852 = vunpack.c.l.b16 %v714
      %v853 = vpack.c.b16 %v850, %v849
      %v854 = vpack.c.b16 %v852, %v851
      %v856 = vsel %vm785, %v853, 0
      %v859 = vsel %vm785, %v854, 0
      %861 = vmatprep.subr.bf16.mxu0 %v700
      %862 = vmatpush1.bf16.msra.mxu0 %v699
      %863 = vmatprep.subr.bf16.mxu0 %v702
      %864 = vmatpush1.bf16.msra.mxu0 %v701
      %865 = vmatprep.subr.bf16.mxu0 %v704
      %866 = vmatpush1.bf16.msra.mxu0 %v703
      %867 = vmatprep.subr.bf16.mxu0 %v706
      %868 = vmatpush1.bf16.msra.mxu0 %v705
      %869 = vmatprep.subr.bf16.mxu0 %v708
      %870 = vmatpush1.bf16.msra.mxu0 %v707
      %871 = vmatprep.subr.bf16.mxu0 %v710
      %872 = vmatpush1.bf16.msra.mxu0 %v709
      %873 = vmatprep.subr.bf16.mxu0 0
      %874 = vmatpush1.bf16.msra.mxu0 0
      %875 = vmatprep.subr.bf16.mxu0 0
      %876 = vmatpush1.bf16.msra.mxu0 0
      %877 = vmatprep.subr.bf16.mxu0 0
      %878 = vmatpush1.bf16.msra.mxu0 0
      %879 = vmatprep.subr.bf16.mxu0 0
      %880 = vmatpush1.bf16.msra.mxu0 0
      %881 = vmatprep.subr.bf16.mxu0 0
      %882 = vmatpush1.bf16.msra.mxu0 0
      %883 = vmatprep.subr.bf16.mxu0 0
      %884 = vmatpush1.bf16.msra.mxu0 0
      %885 = vmatprep.subr.bf16.mxu0 0
      %886 = vmatpush1.bf16.msra.mxu0 0
      %887 = vmatprep.subr.bf16.mxu0 0
      %888 = vmatpush1.bf16.msra.mxu0 0
      %889 = vmatprep.subr.bf16.mxu0 0
      %890 = vmatpush1.bf16.msra.mxu0 0
      %891 = vmatprep.subr.bf16.mxu0 0
      %892 = vmatpush1.bf16.msra.mxu0 0
      %893 = vmatprep.mubr.bf16.mxu0 0
      %894 = vmatmul.mubr.bf16.gmra.mrb[0].mxu0 %v856
      %v895 = vpop.f32.mrb[0].mxu0
      %v896 = vadd.f32 %v827, %v895
      %v897 = vpop.f32.mrb[0].mxu0
      %v898 = vadd.f32 %v829, %v897
      %v899 = vpop.f32.mrb[0].mxu0
      %v900 = vadd.f32 %v831, %v899
      %v901 = vpop.f32.mrb[0].mxu0
      %v902 = vadd.f32 %v833, %v901
      %903 = vmatprep.mubr.bf16.mxu0 0
      %904 = vmatmul.mubr.bf16.gmra.mrb[0].mxu0 %v859
      %v905 = vpop.f32.mrb[0].mxu0
      %v906 = vadd.f32 %v837, %v905
      %v907 = vpop.f32.mrb[0].mxu0
      %v908 = vadd.f32 %v839, %v907
      %v909 = vpop.f32.mrb[0].mxu0
      %v910 = vadd.f32 %v841, %v909
      %v911 = vpop.f32.mrb[0].mxu0
      %v912 = vadd.f32 %v843, %v911
      %913 = vdwg.mxu0
      %s914 = scalar_lea.vmem %s3, 32
      %v915 = vld [vmem:[%s914] sm:$0xf]
      %v916 = vld [vmem:[%s914 + $0x4] sm:$0xf]
      %v917 = vld [vmem:[%s914 + $0x8] sm:$0xf]
      %v918 = vld [vmem:[%s914 + $0xc] sm:$0xf]
      %v923 = vunpack.c.l.b16 %v915
      %v924 = vunpack.c.l.b16 %v916
      %v925 = vunpack.c.l.b16 %v917
      %v926 = vunpack.c.l.b16 %v918
      %v927 = vpack.c.b16 %v924, %v923
      %v928 = vpack.c.b16 %v926, %v925
      %929 = vrot.lane.b32.xlu0 %v699, 126
      %v930 = vpop.permute.xlu0 %929
      %931 = vrot.lane.b32.xlu0 %v700, 126
      %v932 = vpop.permute.xlu0 %931
      %933 = vrot.lane.b32.xlu0 %v701, 126
      %v934 = vpop.permute.xlu0 %933
      %935 = vrot.lane.b32.xlu0 %v702, 126
      %v936 = vpop.permute.xlu0 %935
      %937 = vrot.lane.b32.xlu0 %v703, 126
      %v938 = vpop.permute.xlu0 %937
      %939 = vrot.lane.b32.xlu0 %v704, 126
      %v940 = vpop.permute.xlu0 %939
      %941 = vrot.lane.b32.xlu0 %v705, 126
      %v942 = vpop.permute.xlu0 %941
      %943 = vrot.lane.b32.xlu0 %v706, 126
      %v944 = vpop.permute.xlu0 %943
      %945 = vrot.lane.b32.xlu0 %v707, 126
      %v946 = vpop.permute.xlu0 %945
      %947 = vrot.lane.b32.xlu0 %v708, 126
      %v948 = vpop.permute.xlu0 %947
      %949 = vrot.lane.b32.xlu0 %v709, 126
      %v950 = vpop.permute.xlu0 %949
      %951 = vrot.lane.b32.xlu0 %v710, 126
      %v952 = vpop.permute.xlu0 %951
      %vm953 = vcmask 1031168
      %v954 = vsel %vm953, %v930, %v932
      %v955 = vsel %vm953, %v934, %v936
      %v956 = vsel %vm953, %v938, %v940
      %v957 = vsel %vm953, %v942, %v944
      %v958 = vsel %vm953, %v946, %v948
      %v959 = vsel %vm953, %v950, %v952
      %v973 = vsel %vm785, %v927, 0
      %v976 = vsel %vm785, %v928, 0
      %978 = vmatprep.subr.bf16.mxu0 %v932
      %979 = vmatpush1.bf16.msra.mxu0 %v954
      %980 = vmatprep.subr.bf16.mxu0 %v936
      %981 = vmatpush1.bf16.msra.mxu0 %v955
      %982 = vmatprep.subr.bf16.mxu0 %v940
      %983 = vmatpush1.bf16.msra.mxu0 %v956
      %984 = vmatprep.subr.bf16.mxu0 %v944
      %985 = vmatpush1.bf16.msra.mxu0 %v957
      %986 = vmatprep.subr.bf16.mxu0 %v948
      %987 = vmatpush1.bf16.msra.mxu0 %v958
      %988 = vmatprep.subr.bf16.mxu0 %v952
      %989 = vmatpush1.bf16.msra.mxu0 %v959
      %990 = vmatprep.subr.bf16.mxu0 0
      %991 = vmatpush1.bf16.msra.mxu0 0
      %992 = vmatprep.subr.bf16.mxu0 0
      %993 = vmatpush1.bf16.msra.mxu0 0
      %994 = vmatprep.subr.bf16.mxu0 0
      %995 = vmatpush1.bf16.msra.mxu0 0
      %996 = vmatprep.subr.bf16.mxu0 0
      %997 = vmatpush1.bf16.msra.mxu0 0
      %998 = vmatprep.subr.bf16.mxu0 0
      %999 = vmatpush1.bf16.msra.mxu0 0
      %1000 = vmatprep.subr.bf16.mxu0 0
      %1001 = vmatpush1.bf16.msra.mxu0 0
      %1002 = vmatprep.subr.bf16.mxu0 0
      %1003 = vmatpush1.bf16.msra.mxu0 0
      %1004 = vmatprep.subr.bf16.mxu0 0
      %1005 = vmatpush1.bf16.msra.mxu0 0
      %1006 = vmatprep.subr.bf16.mxu0 0
      %1007 = vmatpush1.bf16.msra.mxu0 0
      %1008 = vmatprep.subr.bf16.mxu0 0
      %1009 = vmatpush1.bf16.msra.mxu0 0
      %1010 = vmatprep.mubr.bf16.mxu0 0
      %1011 = vmatmul.mubr.bf16.gmra.mrb[0].mxu0 %v973
      %v1012 = vpop.f32.mrb[0].mxu0
      %v1013 = vadd.f32 0.0, %v1012
      %v1014 = vpop.f32.mrb[0].mxu0
      %v1015 = vadd.f32 0.0, %v1014
      %v1016 = vpop.f32.mrb[0].mxu0
      %v1017 = vadd.f32 0.0, %v1016
      %v1018 = vpop.f32.mrb[0].mxu0
      %v1019 = vadd.f32 0.0, %v1018
      %1020 = vmatprep.mubr.bf16.mxu0 0
      %1021 = vmatmul.mubr.bf16.gmra.mrb[0].mxu0 %v976
      %v1022 = vpop.f32.mrb[0].mxu0
      %v1023 = vadd.f32 0.0, %v1022
      %v1024 = vpop.f32.mrb[0].mxu0
      %v1025 = vadd.f32 0.0, %v1024
      %v1026 = vpop.f32.mrb[0].mxu0
      %v1027 = vadd.f32 0.0, %v1026
      %v1028 = vpop.f32.mrb[0].mxu0
      %v1029 = vadd.f32 0.0, %v1028
      %1030 = vdwg.mxu0
      %v1031 = vadd.f32 %v896, %v1013
      %v1032 = vadd.f32 %v898, %v1015
      %v1033 = vadd.f32 %v900, %v1017
      %v1034 = vadd.f32 %v902, %v1019
      %v1035 = vadd.f32 %v906, %v1023
      %v1036 = vadd.f32 %v908, %v1025
      %v1037 = vadd.f32 %v910, %v1027
      %v1038 = vadd.f32 %v912, %v1029
      %v1039 = vld [vmem:[%s4] sm:$0xff]
      %v1040 = vld [vmem:[%s4 + $0x8] sm:$0xff]
      %v1041 = vld [vmem:[%s4 + $0x10] sm:$0xff]
      %v1042 = vld [vmem:[%s4 + $0x18] sm:$0xff]
      %1044 = vset.pattern.permute.xlu0 0
      %1045 = vperm.xlu0 %1044, %v1039
      %v1046 = vpop.permute.xlu0 %1045
      %1049 = vset.pattern.permute.xlu0 0
      %1050 = vperm.xlu0 %1049, %v1040
      %v1051 = vpop.permute.xlu0 %1050
      %1054 = vset.pattern.permute.xlu0 0
      %1055 = vperm.xlu0 %1054, %v1041
      %v1056 = vpop.permute.xlu0 %1055
      %1059 = vset.pattern.permute.xlu0 0
      %1060 = vperm.xlu0 %1059, %v1042
      %v1061 = vpop.permute.xlu0 %1060
      %v1063 = vadd.f32 %v1031, %v1046
      %v1064 = vadd.f32 %v1032, %v1046
      %v1065 = vadd.f32 %v1033, %v1051
      %v1066 = vadd.f32 %v1034, %v1051
      %v1067 = vadd.f32 %v1035, %v1056
      %v1068 = vadd.f32 %v1036, %v1056
      %v1069 = vadd.f32 %v1037, %v1061
      %v1070 = vadd.f32 %v1038, %v1061
      %v1071 = vmul.f32 %v1063, 0.3
      %v1072 = vmul.f32 %v1064, 0.3
      %v1073 = vmul.f32 %v1065, 0.3
      %v1074 = vmul.f32 %v1066, 0.3
      %v1075 = vmul.f32 %v1067, 0.3
      %v1076 = vmul.f32 %v1068, 0.3
      %v1077 = vmul.f32 %v1069, 0.3
      %v1078 = vmul.f32 %v1070, 0.3
      %v1079 = vmax.f32 %v1063, %v1071
      %v1080 = vmax.f32 %v1064, %v1072
      %v1081 = vmax.f32 %v1065, %v1073
      %v1082 = vmax.f32 %v1066, %v1074
      %v1083 = vmax.f32 %v1067, %v1075
      %v1084 = vmax.f32 %v1068, %v1076
      %v1085 = vmax.f32 %v1069, %v1077
      %v1086 = vmax.f32 %v1070, %v1078
      %v1087 = vpack.c.bf16 %v1081, %v1079
      %v1088 = vpack.c.bf16 %v1082, %v1080
      %v1089 = vpack.c.bf16 %v1085, %v1083
      %v1090 = vpack.c.bf16 %v1086, %v1084
      %1095 = vrot.lane.b32.xlu0 %v1087, 127
      %v1096 = vpop.permute.xlu0 %1095
      %1097 = vrot.lane.b32.xlu0 %v1088, 127
      %v1098 = vpop.permute.xlu0 %1097
      %1099 = vrot.lane.b32.xlu0 %v1089, 127
      %v1100 = vpop.permute.xlu0 %1099
      %1101 = vrot.lane.b32.xlu0 %v1090, 127
      %v1102 = vpop.permute.xlu0 %1101
      %v1103 = vsel %vm766, %v1096, %v1098
      %v1104 = vsel %vm766, %v1100, %v1102
      %1107 = vrot.lane.b32.xlu0 %v1087, 126
      %v1108 = vpop.permute.xlu0 %1107
      %1109 = vrot.lane.b32.xlu0 %v1088, 126
      %v1110 = vpop.permute.xlu0 %1109
      %1111 = vrot.lane.b32.xlu0 %v1089, 126
      %v1112 = vpop.permute.xlu0 %1111
      %1113 = vrot.lane.b32.xlu0 %v1090, 126
      %v1114 = vpop.permute.xlu0 %1113
      %v1115 = vsel %vm953, %v1108, %v1110
      %v1116 = vsel %vm953, %v1112, %v1114
      %1119 = vrot.lane.b32.xlu0 %v1087, 125
      %v1120 = vpop.permute.xlu0 %1119
      %1121 = vrot.lane.b32.xlu0 %v1088, 125
      %v1122 = vpop.permute.xlu0 %1121
      %1123 = vrot.lane.b32.xlu0 %v1089, 125
      %v1124 = vpop.permute.xlu0 %1123
      %1125 = vrot.lane.b32.xlu0 %v1090, 125
      %v1126 = vpop.permute.xlu0 %1125
      %vm1127 = vcmask 1022976
      %v1128 = vsel %vm1127, %v1120, %v1122
      %v1129 = vsel %vm1127, %v1124, %v1126
      %1132 = vrot.lane.b32.xlu0 %v1087, 124
      %v1133 = vpop.permute.xlu0 %1132
      %1134 = vrot.lane.b32.xlu0 %v1088, 124
      %v1135 = vpop.permute.xlu0 %1134
      %1136 = vrot.lane.b32.xlu0 %v1089, 124
      %v1137 = vpop.permute.xlu0 %1136
      %1138 = vrot.lane.b32.xlu0 %v1090, 124
      %v1139 = vpop.permute.xlu0 %1138
      %vm1140 = vcmask 1014784
      %v1141 = vsel %vm1140, %v1133, %v1135
      %v1142 = vsel %vm1140, %v1137, %v1139
      %1145 = vrot.lane.b32.xlu0 %v1087, 123
      %v1146 = vpop.permute.xlu0 %1145
      %1147 = vrot.lane.b32.xlu0 %v1088, 123
      %v1148 = vpop.permute.xlu0 %1147
      %1149 = vrot.lane.b32.xlu0 %v1089, 123
      %v1150 = vpop.permute.xlu0 %1149
      %1151 = vrot.lane.b32.xlu0 %v1090, 123
      %v1152 = vpop.permute.xlu0 %1151
      %vm1153 = vcmask 1006592
      %v1154 = vsel %vm1153, %v1146, %v1148
      %v1155 = vsel %vm1153, %v1150, %v1152
      %1158 = vrot.lane.b32.xlu0 %v1087, 122
      %v1159 = vpop.permute.xlu0 %1158
      %1160 = vrot.lane.b32.xlu0 %v1088, 122
      %v1161 = vpop.permute.xlu0 %1160
      %1162 = vrot.lane.b32.xlu0 %v1089, 122
      %v1163 = vpop.permute.xlu0 %1162
      %1164 = vrot.lane.b32.xlu0 %v1090, 122
      %v1165 = vpop.permute.xlu0 %1164
      %vm1166 = vcmask 998400
      %v1167 = vsel %vm1166, %v1159, %v1161
      %v1168 = vsel %vm1166, %v1163, %v1165
      %1171 = vrot.lane.b32.xlu0 %v1087, 121
      %v1172 = vpop.permute.xlu0 %1171
      %1173 = vrot.lane.b32.xlu0 %v1088, 121
      %v1174 = vpop.permute.xlu0 %1173
      %1175 = vrot.lane.b32.xlu0 %v1089, 121
      %v1176 = vpop.permute.xlu0 %1175
      %1177 = vrot.lane.b32.xlu0 %v1090, 121
      %v1178 = vpop.permute.xlu0 %1177
      %vm1179 = vcmask 990208
      %v1180 = vsel %vm1179, %v1172, %v1174
      %v1181 = vsel %vm1179, %v1176, %v1178
      %1184 = vrot.lane.b32.xlu0 %v1087, 120
      %v1185 = vpop.permute.xlu0 %1184
      %1186 = vrot.lane.b32.xlu0 %v1088, 120
      %v1187 = vpop.permute.xlu0 %1186
      %1188 = vrot.lane.b32.xlu0 %v1089, 120
      %v1189 = vpop.permute.xlu0 %1188
      %1190 = vrot.lane.b32.xlu0 %v1090, 120
      %v1191 = vpop.permute.xlu0 %1190
      %vm1192 = vcmask 982016
      %v1193 = vsel %vm1192, %v1185, %v1187
      %v1194 = vsel %vm1192, %v1189, %v1191
      %1197 = vrot.lane.b32.xlu0 %v1087, 119
      %v1198 = vpop.permute.xlu0 %1197
      %1199 = vrot.lane.b32.xlu0 %v1088, 119
      %v1200 = vpop.permute.xlu0 %1199
      %1201 = vrot.lane.b32.xlu0 %v1089, 119
      %v1202 = vpop.permute.xlu0 %1201
      %1203 = vrot.lane.b32.xlu0 %v1090, 119
      %v1204 = vpop.permute.xlu0 %1203
      %vm1205 = vcmask 973824
      %v1206 = vsel %vm1205, %v1198, %v1200
      %v1207 = vsel %vm1205, %v1202, %v1204
      %1210 = vrot.lane.b32.xlu0 %v1087, 118
      %v1211 = vpop.permute.xlu0 %1210
      %1212 = vrot.lane.b32.xlu0 %v1088, 118
      %v1213 = vpop.permute.xlu0 %1212
      %1214 = vrot.lane.b32.xlu0 %v1089, 118
      %v1215 = vpop.permute.xlu0 %1214
      %1216 = vrot.lane.b32.xlu0 %v1090, 118
      %v1217 = vpop.permute.xlu0 %1216
      %vm1218 = vcmask 965632
      %v1219 = vsel %vm1218, %v1211, %v1213
      %v1220 = vsel %vm1218, %v1215, %v1217
      %1223 = vrot.lane.b32.xlu0 %v1087, 117
      %v1224 = vpop.permute.xlu0 %1223
      %1225 = vrot.lane.b32.xlu0 %v1088, 117
      %v1226 = vpop.permute.xlu0 %1225
      %1227 = vrot.lane.b32.xlu0 %v1089, 117
      %v1228 = vpop.permute.xlu0 %1227
      %1229 = vrot.lane.b32.xlu0 %v1090, 117
      %v1230 = vpop.permute.xlu0 %1229
      %vm1231 = vcmask 957440
      %v1232 = vsel %vm1231, %v1224, %v1226
      %v1233 = vsel %vm1231, %v1228, %v1230
      %1236 = vrot.lane.b32.xlu0 %v1087, 116
      %v1237 = vpop.permute.xlu0 %1236
      %1238 = vrot.lane.b32.xlu0 %v1088, 116
      %v1239 = vpop.permute.xlu0 %1238
      %1240 = vrot.lane.b32.xlu0 %v1089, 116
      %v1241 = vpop.permute.xlu0 %1240
      %1242 = vrot.lane.b32.xlu0 %v1090, 116
      %v1243 = vpop.permute.xlu0 %1242
      %vm1244 = vcmask 949248
      %v1245 = vsel %vm1244, %v1237, %v1239
      %v1246 = vsel %vm1244, %v1241, %v1243
      %1249 = vrot.lane.b32.xlu0 %v1087, 115
      %v1250 = vpop.permute.xlu0 %1249
      %1251 = vrot.lane.b32.xlu0 %v1088, 115
      %v1252 = vpop.permute.xlu0 %1251
      %1253 = vrot.lane.b32.xlu0 %v1089, 115
      %v1254 = vpop.permute.xlu0 %1253
      %1255 = vrot.lane.b32.xlu0 %v1090, 115
      %v1256 = vpop.permute.xlu0 %1255
      %vm1257 = vcmask 941056
      %v1258 = vsel %vm1257, %v1250, %v1252
      %v1259 = vsel %vm1257, %v1254, %v1256
      %1262 = vrot.lane.b32.xlu0 %v1087, 114
      %v1263 = vpop.permute.xlu0 %1262
      %1264 = vrot.lane.b32.xlu0 %v1088, 114
      %v1265 = vpop.permute.xlu0 %1264
      %1266 = vrot.lane.b32.xlu0 %v1089, 114
      %v1267 = vpop.permute.xlu0 %1266
      %1268 = vrot.lane.b32.xlu0 %v1090, 114
      %v1269 = vpop.permute.xlu0 %1268
      %vm1270 = vcmask 932864
      %v1271 = vsel %vm1270, %v1263, %v1265
      %v1272 = vsel %vm1270, %v1267, %v1269
      %v1275 = vld [vmem:[%s7] sm:$0xf]
      %v1276 = vld [vmem:[%s7 + $0x4] sm:$0xf]
      %v1277 = vld [vmem:[%s7 + $0x8] sm:$0xf]
      %v1278 = vld [vmem:[%s7 + $0xc] sm:$0xf]
      %v1279 = vld [vmem:[%s7 + $0x10] sm:$0xf]
      %v1280 = vld [vmem:[%s7 + $0x14] sm:$0xf]
      %v1281 = vld [vmem:[%s7 + $0x18] sm:$0xf]
      %v1282 = vld [vmem:[%s7 + $0x1c] sm:$0xf]
      %v1283 = vld [vmem:[%s7 + $0x20] sm:$0xf]
      %v1284 = vld [vmem:[%s7 + $0x24] sm:$0xf]
      %v1285 = vld [vmem:[%s7 + $0x28] sm:$0xf]
      %v1286 = vld [vmem:[%s7 + $0x2c] sm:$0xf]
      %v1287 = vld [vmem:[%s7 + $0x30] sm:$0xf]
      %v1288 = vld [vmem:[%s7 + $0x34] sm:$0xf]
      %v1289 = vld [vmem:[%s7 + $0x38] sm:$0xf]
      %v1290 = vld [vmem:[%s7 + $0x3c] sm:$0xf]
      %v1291 = vld [vmem:[%s7 + $0x40] sm:$0xf]
      %v1292 = vld [vmem:[%s7 + $0x44] sm:$0xf]
      %v1311 = vunpack.c.l.b16 %v1275
      %v1312 = vunpack.c.l.b16 %v1276
      %v1313 = vunpack.c.l.b16 %v1277
      %v1314 = vunpack.c.l.b16 %v1278
      %v1315 = vunpack.c.l.b16 %v1279
      %v1316 = vunpack.c.l.b16 %v1280
      %v1317 = vunpack.c.l.b16 %v1281
      %v1318 = vunpack.c.l.b16 %v1282
      %v1319 = vunpack.c.l.b16 %v1283
      %v1320 = vunpack.c.l.b16 %v1284
      %v1321 = vunpack.c.l.b16 %v1285
      %v1322 = vunpack.c.l.b16 %v1286
      %v1323 = vunpack.c.l.b16 %v1287
      %v1324 = vunpack.c.l.b16 %v1288
      %v1325 = vunpack.c.l.b16 %v1289
      %v1326 = vunpack.c.l.b16 %v1290
      %v1327 = vunpack.c.l.b16 %v1291
      %v1328 = vunpack.c.l.b16 %v1292
      %v1329 = vpack.c.b16 %v1312, %v1311
      %v1330 = vpack.c.b16 %v1314, %v1313
      %v1331 = vpack.c.b16 %v1316, %v1315
      %v1332 = vpack.c.b16 %v1318, %v1317
      %v1333 = vpack.c.b16 %v1320, %v1319
      %v1334 = vpack.c.b16 %v1322, %v1321
      %v1335 = vpack.c.b16 %v1324, %v1323
      %v1336 = vpack.c.b16 %v1326, %v1325
      %v1337 = vpack.c.b16 %v1328, %v1327
      %vm1347 = vcmask 130048
      %v1349 = vsel %vm1347, %v1088, 0
      %v1352 = vsel %vm1347, %v1090, 0
      %v1355 = vsel %vm1347, %v1098, 0
      %v1358 = vsel %vm1347, %v1102, 0
      %v1361 = vsel %vm1347, %v1110, 0
      %v1364 = vsel %vm1347, %v1114, 0
      %v1367 = vsel %vm1347, %v1122, 0
      %v1370 = vsel %vm1347, %v1126, 0
      %v1373 = vsel %vm1347, %v1135, 0
      %v1376 = vsel %vm1347, %v1139, 0
      %v1379 = vsel %vm1347, %v1148, 0
      %v1382 = vsel %vm1347, %v1152, 0
      %v1385 = vsel %vm1347, %v1161, 0
      %v1388 = vsel %vm1347, %v1165, 0
      %v1391 = vsel %vm1347, %v1174, 0
      %v1394 = vsel %vm1347, %v1178, 0
      %v1397 = vsel %vm1347, %v1187, 0
      %v1400 = vsel %vm1347, %v1191, 0
      %v1403 = vsel %vm1347, %v1200, 0
      %v1406 = vsel %vm1347, %v1204, 0
      %v1409 = vsel %vm1347, %v1213, 0
      %v1412 = vsel %vm1347, %v1217, 0
      %v1415 = vsel %vm1347, %v1226, 0
      %v1418 = vsel %vm1347, %v1230, 0
      %v1421 = vsel %vm1347, %v1239, 0
      %v1424 = vsel %vm1347, %v1243, 0
      %v1427 = vsel %vm1347, %v1252, 0
      %v1430 = vsel %vm1347, %v1256, 0
      %v1433 = vsel %vm1347, %v1265, 0
      %v1436 = vsel %vm1347, %v1269, 0
      %1438 = vmatprep.subr.bf16.mxu0 0
      %1439 = vmatpush1.bf16.msra.mxu0 %v1329
      %1440 = vmatprep.subr.bf16.mxu0 0
      %1441 = vmatpush1.bf16.msra.mxu0 %v1330
      %1442 = vmatprep.subr.bf16.mxu0 0
      %1443 = vmatpush1.bf16.msra.mxu0 %v1331
      %1444 = vmatprep.subr.bf16.mxu0 0
      %1445 = vmatpush1.bf16.msra.mxu0 %v1332
      %1446 = vmatprep.subr.bf16.mxu0 0
      %1447 = vmatpush1.bf16.msra.mxu0 %v1333
      %1448 = vmatprep.subr.bf16.mxu0 0
      %1449 = vmatpush1.bf16.msra.mxu0 %v1334
      %1450 = vmatprep.subr.bf16.mxu0 0
      %1451 = vmatpush1.bf16.msra.mxu0 %v1335
      %1452 = vmatprep.subr.bf16.mxu0 0
      %1453 = vmatpush1.bf16.msra.mxu0 %v1336
      %1454 = vmatprep.subr.bf16.mxu0 0
      %1455 = vmatpush1.bf16.msra.mxu0 %v1337
      %1456 = vmatprep.subr.bf16.mxu0 0
      %1457 = vmatpush1.bf16.msra.mxu0 0
      %1458 = vmatprep.subr.bf16.mxu0 0
      %1459 = vmatpush1.bf16.msra.mxu0 0
      %1460 = vmatprep.subr.bf16.mxu0 0
      %1461 = vmatpush1.bf16.msra.mxu0 0
      %1462 = vmatprep.subr.bf16.mxu0 0
      %1463 = vmatpush1.bf16.msra.mxu0 0
      %1464 = vmatprep.subr.bf16.mxu0 0
      %1465 = vmatpush1.bf16.msra.mxu0 0
      %1466 = vmatprep.subr.bf16.mxu0 0
      %1467 = vmatpush1.bf16.msra.mxu0 0
      %1468 = vmatprep.subr.bf16.mxu0 0
      %1469 = vmatpush1.bf16.msra.mxu0 0
      %1470 = vmatprep.mubr.bf16.mxu0 %v1349
      %1471 = vmatmul.mubr.bf16.gmra.mrb[0].mxu0 %v1087
      %v1472 = vpop.f32.mrb[0].mxu0
      %v1473 = vadd.f32 0.0, %v1472
      %v1474 = vpop.f32.mrb[0].mxu0
      %v1475 = vpop.f32.mrb[0].mxu0
      %v1476 = vadd.f32 0.0, %v1475
      %v1477 = vpop.f32.mrb[0].mxu0
      %1478 = vmatprep.mubr.bf16.mxu0 %v1352
      %1479 = vmatmul.mubr.bf16.gmra.mrb[0].mxu0 %v1089
      %v1480 = vpop.f32.mrb[0].mxu0
      %v1481 = vadd.f32 0.0, %v1480
      %v1482 = vpop.f32.mrb[0].mxu0
      %v1483 = vpop.f32.mrb[0].mxu0
      %v1484 = vadd.f32 0.0, %v1483
      %v1485 = vpop.f32.mrb[0].mxu0
      %1486 = vmatprep.mubr.bf16.mxu0 %v1355
      %1487 = vmatmul.mubr.bf16.gmra.mrb[0].mxu0 %v1103
      %v1488 = vpop.f32.mrb[0].mxu0
      %v1489 = vadd.f32 0.0, %v1488
      %v1490 = vpop.f32.mrb[0].mxu0
      %v1491 = vpop.f32.mrb[0].mxu0
      %v1492 = vadd.f32 0.0, %v1491
      %v1493 = vpop.f32.mrb[0].mxu0
      %1494 = vmatprep.mubr.bf16.mxu0 %v1358
      %1495 = vmatmul.mubr.bf16.gmra.mrb[0].mxu0 %v1104
      %v1496 = vpop.f32.mrb[0].mxu0
      %v1497 = vadd.f32 0.0, %v1496
      %v1498 = vpop.f32.mrb[0].mxu0
      %v1499 = vpop.f32.mrb[0].mxu0
      %v1500 = vadd.f32 0.0, %v1499
      %v1501 = vpop.f32.mrb[0].mxu0
      %1502 = vmatprep.mubr.bf16.mxu0 %v1361
      %1503 = vmatmul.mubr.bf16.gmra.mrb[0].mxu0 %v1115
      %v1504 = vpop.f32.mrb[0].mxu0
      %v1505 = vadd.f32 0.0, %v1504
      %v1506 = vpop.f32.mrb[0].mxu0
      %v1507 = vpop.f32.mrb[0].mxu0
      %v1508 = vadd.f32 0.0, %v1507
      %v1509 = vpop.f32.mrb[0].mxu0
      %1510 = vmatprep.mubr.bf16.mxu0 %v1364
      %1511 = vmatmul.mubr.bf16.gmra.mrb[0].mxu0 %v1116
      %v1512 = vpop.f32.mrb[0].mxu0
      %v1513 = vadd.f32 0.0, %v1512
      %v1514 = vpop.f32.mrb[0].mxu0
      %v1515 = vpop.f32.mrb[0].mxu0
      %v1516 = vadd.f32 0.0, %v1515
      %v1517 = vpop.f32.mrb[0].mxu0
      %1518 = vmatprep.mubr.bf16.mxu0 %v1367
      %1519 = vmatmul.mubr.bf16.gmra.mrb[0].mxu0 %v1128
      %v1520 = vpop.f32.mrb[0].mxu0
      %v1521 = vadd.f32 0.0, %v1520
      %v1522 = vpop.f32.mrb[0].mxu0
      %v1523 = vpop.f32.mrb[0].mxu0
      %v1524 = vadd.f32 0.0, %v1523
      %v1525 = vpop.f32.mrb[0].mxu0
      %1526 = vmatprep.mubr.bf16.mxu0 %v1370
      %1527 = vmatmul.mubr.bf16.gmra.mrb[0].mxu0 %v1129
      %v1528 = vpop.f32.mrb[0].mxu0
      %v1529 = vadd.f32 0.0, %v1528
      %v1530 = vpop.f32.mrb[0].mxu0
      %v1531 = vpop.f32.mrb[0].mxu0
      %v1532 = vadd.f32 0.0, %v1531
      %v1533 = vpop.f32.mrb[0].mxu0
      %1534 = vmatprep.mubr.bf16.mxu0 %v1373
      %1535 = vmatmul.mubr.bf16.gmra.mrb[0].mxu0 %v1141
      %v1536 = vpop.f32.mrb[0].mxu0
      %v1537 = vadd.f32 0.0, %v1536
      %v1538 = vpop.f32.mrb[0].mxu0
      %v1539 = vpop.f32.mrb[0].mxu0
      %v1540 = vadd.f32 0.0, %v1539
      %v1541 = vpop.f32.mrb[0].mxu0
      %1542 = vmatprep.mubr.bf16.mxu0 %v1376
      %1543 = vmatmul.mubr.bf16.gmra.mrb[0].mxu0 %v1142
      %v1544 = vpop.f32.mrb[0].mxu0
      %v1545 = vadd.f32 0.0, %v1544
      %v1546 = vpop.f32.mrb[0].mxu0
      %v1547 = vpop.f32.mrb[0].mxu0
      %v1548 = vadd.f32 0.0, %v1547
      %v1549 = vpop.f32.mrb[0].mxu0
      %1550 = vmatprep.mubr.bf16.mxu0 %v1379
      %1551 = vmatmul.mubr.bf16.gmra.mrb[0].mxu0 %v1154
      %v1552 = vpop.f32.mrb[0].mxu0
      %v1553 = vadd.f32 0.0, %v1552
      %v1554 = vpop.f32.mrb[0].mxu0
      %v1555 = vpop.f32.mrb[0].mxu0
      %v1556 = vadd.f32 0.0, %v1555
      %v1557 = vpop.f32.mrb[0].mxu0
      %1558 = vmatprep.mubr.bf16.mxu0 %v1382
      %1559 = vmatmul.mubr.bf16.gmra.mrb[0].mxu0 %v1155
      %v1560 = vpop.f32.mrb[0].mxu0
      %v1561 = vadd.f32 0.0, %v1560
      %v1562 = vpop.f32.mrb[0].mxu0
      %v1563 = vpop.f32.mrb[0].mxu0
      %v1564 = vadd.f32 0.0, %v1563
      %v1565 = vpop.f32.mrb[0].mxu0
      %1566 = vmatprep.mubr.bf16.mxu0 %v1385
      %1567 = vmatmul.mubr.bf16.gmra.mrb[0].mxu0 %v1167
      %v1568 = vpop.f32.mrb[0].mxu0
      %v1569 = vadd.f32 0.0, %v1568
      %v1570 = vpop.f32.mrb[0].mxu0
      %v1571 = vpop.f32.mrb[0].mxu0
      %v1572 = vadd.f32 0.0, %v1571
      %v1573 = vpop.f32.mrb[0].mxu0
      %1574 = vmatprep.mubr.bf16.mxu0 %v1388
      %1575 = vmatmul.mubr.bf16.gmra.mrb[0].mxu0 %v1168
      %v1576 = vpop.f32.mrb[0].mxu0
      %v1577 = vadd.f32 0.0, %v1576
      %v1578 = vpop.f32.mrb[0].mxu0
      %v1579 = vpop.f32.mrb[0].mxu0
      %v1580 = vadd.f32 0.0, %v1579
      %v1581 = vpop.f32.mrb[0].mxu0
      %1582 = vmatprep.mubr.bf16.mxu0 %v1391
      %1583 = vmatmul.mubr.bf16.gmra.mrb[0].mxu0 %v1180
      %v1584 = vpop.f32.mrb[0].mxu0
      %v1585 = vadd.f32 0.0, %v1584
      %v1586 = vpop.f32.mrb[0].mxu0
      %v1587 = vpop.f32.mrb[0].mxu0
      %v1588 = vadd.f32 0.0, %v1587
      %v1589 = vpop.f32.mrb[0].mxu0
      %1590 = vmatprep.mubr.bf16.mxu0 %v1394
      %1591 = vmatmul.mubr.bf16.gmra.mrb[0].mxu0 %v1181
      %v1592 = vpop.f32.mrb[0].mxu0
      %v1593 = vadd.f32 0.0, %v1592
      %v1594 = vpop.f32.mrb[0].mxu0
      %v1595 = vpop.f32.mrb[0].mxu0
      %v1596 = vadd.f32 0.0, %v1595
      %v1597 = vpop.f32.mrb[0].mxu0
      %1598 = vmatprep.mubr.bf16.mxu0 %v1397
      %1599 = vmatmul.mubr.bf16.gmra.mrb[0].mxu0 %v1193
      %v1600 = vpop.f32.mrb[0].mxu0
      %v1601 = vadd.f32 0.0, %v1600
      %v1602 = vpop.f32.mrb[0].mxu0
      %v1603 = vpop.f32.mrb[0].mxu0
      %v1604 = vadd.f32 0.0, %v1603
      %v1605 = vpop.f32.mrb[0].mxu0
      %1606 = vmatprep.mubr.bf16.mxu0 %v1400
      %1607 = vmatmul.mubr.bf16.gmra.mrb[0].mxu0 %v1194
      %v1608 = vpop.f32.mrb[0].mxu0
      %v1609 = vadd.f32 0.0, %v1608
      %v1610 = vpop.f32.mrb[0].mxu0
      %v1611 = vpop.f32.mrb[0].mxu0
      %v1612 = vadd.f32 0.0, %v1611
      %v1613 = vpop.f32.mrb[0].mxu0
      %1614 = vmatprep.mubr.bf16.mxu0 %v1403
      %1615 = vmatmul.mubr.bf16.gmra.mrb[0].mxu0 %v1206
      %v1616 = vpop.f32.mrb[0].mxu0
      %v1617 = vadd.f32 0.0, %v1616
      %v1618 = vpop.f32.mrb[0].mxu0
      %v1619 = vpop.f32.mrb[0].mxu0
      %v1620 = vadd.f32 0.0, %v1619
      %v1621 = vpop.f32.mrb[0].mxu0
      %1622 = vmatprep.mubr.bf16.mxu0 %v1406
      %1623 = vmatmul.mubr.bf16.gmra.mrb[0].mxu0 %v1207
      %v1624 = vpop.f32.mrb[0].mxu0
      %v1625 = vadd.f32 0.0, %v1624
      %v1626 = vpop.f32.mrb[0].mxu0
      %v1627 = vpop.f32.mrb[0].mxu0
      %v1628 = vadd.f32 0.0, %v1627
      %v1629 = vpop.f32.mrb[0].mxu0
      %1630 = vmatprep.mubr.bf16.mxu0 %v1409
      %1631 = vmatmul.mubr.bf16.gmra.mrb[0].mxu0 %v1219
      %v1632 = vpop.f32.mrb[0].mxu0
      %v1633 = vadd.f32 0.0, %v1632
      %v1634 = vpop.f32.mrb[0].mxu0
      %v1635 = vpop.f32.mrb[0].mxu0
      %v1636 = vadd.f32 0.0, %v1635
      %v1637 = vpop.f32.mrb[0].mxu0
      %1638 = vmatprep.mubr.bf16.mxu0 %v1412
      %1639 = vmatmul.mubr.bf16.gmra.mrb[0].mxu0 %v1220
      %v1640 = vpop.f32.mrb[0].mxu0
      %v1641 = vadd.f32 0.0, %v1640
      %v1642 = vpop.f32.mrb[0].mxu0
      %v1643 = vpop.f32.mrb[0].mxu0
      %v1644 = vadd.f32 0.0, %v1643
      %v1645 = vpop.f32.mrb[0].mxu0
      %1646 = vmatprep.mubr.bf16.mxu0 %v1415
      %1647 = vmatmul.mubr.bf16.gmra.mrb[0].mxu0 %v1232
      %v1648 = vpop.f32.mrb[0].mxu0
      %v1649 = vadd.f32 0.0, %v1648
      %v1650 = vpop.f32.mrb[0].mxu0
      %v1651 = vpop.f32.mrb[0].mxu0
      %v1652 = vadd.f32 0.0, %v1651
      %v1653 = vpop.f32.mrb[0].mxu0
      %1654 = vmatprep.mubr.bf16.mxu0 %v1418
      %1655 = vmatmul.mubr.bf16.gmra.mrb[0].mxu0 %v1233
      %v1656 = vpop.f32.mrb[0].mxu0
      %v1657 = vadd.f32 0.0, %v1656
      %v1658 = vpop.f32.mrb[0].mxu0
      %v1659 = vpop.f32.mrb[0].mxu0
      %v1660 = vadd.f32 0.0, %v1659
      %v1661 = vpop.f32.mrb[0].mxu0
      %1662 = vmatprep.mubr.bf16.mxu0 %v1421
      %1663 = vmatmul.mubr.bf16.gmra.mrb[0].mxu0 %v1245
      %v1664 = vpop.f32.mrb[0].mxu0
      %v1665 = vadd.f32 0.0, %v1664
      %v1666 = vpop.f32.mrb[0].mxu0
      %v1667 = vpop.f32.mrb[0].mxu0
      %v1668 = vadd.f32 0.0, %v1667
      %v1669 = vpop.f32.mrb[0].mxu0
      %1670 = vmatprep.mubr.bf16.mxu0 %v1424
      %1671 = vmatmul.mubr.bf16.gmra.mrb[0].mxu0 %v1246
      %v1672 = vpop.f32.mrb[0].mxu0
      %v1673 = vadd.f32 0.0, %v1672
      %v1674 = vpop.f32.mrb[0].mxu0
      %v1675 = vpop.f32.mrb[0].mxu0
      %v1676 = vadd.f32 0.0, %v1675
      %v1677 = vpop.f32.mrb[0].mxu0
      %1678 = vmatprep.mubr.bf16.mxu0 %v1427
      %1679 = vmatmul.mubr.bf16.gmra.mrb[0].mxu0 %v1258
      %v1680 = vpop.f32.mrb[0].mxu0
      %v1681 = vadd.f32 0.0, %v1680
      %v1682 = vpop.f32.mrb[0].mxu0
      %v1683 = vpop.f32.mrb[0].mxu0
      %v1684 = vadd.f32 0.0, %v1683
      %v1685 = vpop.f32.mrb[0].mxu0
      %1686 = vmatprep.mubr.bf16.mxu0 %v1430
      %1687 = vmatmul.mubr.bf16.gmra.mrb[0].mxu0 %v1259
      %v1688 = vpop.f32.mrb[0].mxu0
      %v1689 = vadd.f32 0.0, %v1688
      %v1690 = vpop.f32.mrb[0].mxu0
      %v1691 = vpop.f32.mrb[0].mxu0
      %v1692 = vadd.f32 0.0, %v1691
      %v1693 = vpop.f32.mrb[0].mxu0
      %1694 = vmatprep.mubr.bf16.mxu0 %v1433
      %1695 = vmatmul.mubr.bf16.gmra.mrb[0].mxu0 %v1271
      %v1696 = vpop.f32.mrb[0].mxu0
      %v1697 = vadd.f32 0.0, %v1696
      %v1698 = vpop.f32.mrb[0].mxu0
      %v1699 = vpop.f32.mrb[0].mxu0
      %v1700 = vadd.f32 0.0, %v1699
      %v1701 = vpop.f32.mrb[0].mxu0
      %1702 = vmatprep.mubr.bf16.mxu0 %v1436
      %1703 = vmatmul.mubr.bf16.gmra.mrb[0].mxu0 %v1272
      %v1704 = vpop.f32.mrb[0].mxu0
      %v1705 = vadd.f32 0.0, %v1704
      %v1706 = vpop.f32.mrb[0].mxu0
      %v1707 = vpop.f32.mrb[0].mxu0
      %v1708 = vadd.f32 0.0, %v1707
      %v1709 = vpop.f32.mrb[0].mxu0
      %1710 = vdwg.mxu0
      %v1711 = vpack.c.bf16 %v1476, %v1473
      %v1712 = vpack.c.bf16 %v1484, %v1481
      %v1713 = vpack.c.bf16 %v1492, %v1489
      %v1714 = vpack.c.bf16 %v1500, %v1497
      %v1715 = vpack.c.bf16 %v1508, %v1505
      %v1716 = vpack.c.bf16 %v1516, %v1513
      %v1717 = vpack.c.bf16 %v1524, %v1521
      %v1718 = vpack.c.bf16 %v1532, %v1529
      %v1719 = vpack.c.bf16 %v1540, %v1537
      %v1720 = vpack.c.bf16 %v1548, %v1545
      %v1721 = vpack.c.bf16 %v1556, %v1553
      %v1722 = vpack.c.bf16 %v1564, %v1561
      %v1723 = vpack.c.bf16 %v1572, %v1569
      %v1724 = vpack.c.bf16 %v1580, %v1577
      %v1725 = vpack.c.bf16 %v1588, %v1585
      %v1726 = vpack.c.bf16 %v1596, %v1593
      %v1727 = vpack.c.bf16 %v1604, %v1601
      %v1728 = vpack.c.bf16 %v1612, %v1609
      %v1729 = vpack.c.bf16 %v1620, %v1617
      %v1730 = vpack.c.bf16 %v1628, %v1625
      %v1731 = vpack.c.bf16 %v1636, %v1633
      %v1732 = vpack.c.bf16 %v1644, %v1641
      %v1733 = vpack.c.bf16 %v1652, %v1649
      %v1734 = vpack.c.bf16 %v1660, %v1657
      %v1735 = vpack.c.bf16 %v1668, %v1665
      %v1736 = vpack.c.bf16 %v1676, %v1673
      %v1737 = vpack.c.bf16 %v1684, %v1681
      %v1738 = vpack.c.bf16 %v1692, %v1689
      %v1739 = vpack.c.bf16 %v1700, %v1697
      %v1740 = vpack.c.bf16 %v1708, %v1705
      %v1741 = vld [vmem:[%s5] sm:$0xff]
      %v1742 = vld [vmem:[%s5 + $0x8] sm:$0xff]
      %v1743 = vld [vmem:[%s5 + $0x10] sm:$0xff]
      %v1744 = vld [vmem:[%s5 + $0x18] sm:$0xff]
      %v1745 = vld [vmem:[%s5 + $0x20] sm:$0xff]
      %v1746 = vld [vmem:[%s5 + $0x28] sm:$0xff]
      %v1747 = vld [vmem:[%s5 + $0x30] sm:$0xff]
      %v1748 = vld [vmem:[%s5 + $0x38] sm:$0xff]
      %v1749 = vld [vmem:[%s5 + $0x40] sm:$0xff]
      %v1750 = vld [vmem:[%s5 + $0x48] sm:$0xff]
      %v1751 = vld [vmem:[%s5 + $0x50] sm:$0xff]
      %v1752 = vld [vmem:[%s5 + $0x58] sm:$0xff]
      %v1753 = vld [vmem:[%s5 + $0x60] sm:$0xff]
      %v1754 = vld [vmem:[%s5 + $0x68] sm:$0xff]
      %v1755 = vld [vmem:[%s5 + $0x70] sm:$0xff]
      %v1756 = vld [vmem:[%s5 + $0x78] sm:$0xff]
      %v1757 = vld [vmem:[%s6] sm:$0xff]
      %v1758 = vld [vmem:[%s6 + $0x8] sm:$0xff]
      %v1759 = vld [vmem:[%s6 + $0x10] sm:$0xff]
      %v1760 = vld [vmem:[%s6 + $0x18] sm:$0xff]
      %v1761 = vld [vmem:[%s6 + $0x20] sm:$0xff]
      %v1762 = vld [vmem:[%s6 + $0x28] sm:$0xff]
      %v1763 = vld [vmem:[%s6 + $0x30] sm:$0xff]
      %v1764 = vld [vmem:[%s6 + $0x38] sm:$0xff]
      %1766 = vset.pattern.permute.xlu0 0
      %1767 = vperm.xlu0 %1766, %v1757
      %v1768 = vpop.permute.xlu0 %1767
      %1771 = vset.pattern.permute.xlu0 0
      %1772 = vperm.xlu0 %1771, %v1758
      %v1773 = vpop.permute.xlu0 %1772
      %1776 = vset.pattern.permute.xlu0 0
      %1777 = vperm.xlu0 %1776, %v1759
      %v1778 = vpop.permute.xlu0 %1777
      %1781 = vset.pattern.permute.xlu0 0
      %1782 = vperm.xlu0 %1781, %v1760
      %v1783 = vpop.permute.xlu0 %1782
      %1786 = vset.pattern.permute.xlu0 0
      %1787 = vperm.xlu0 %1786, %v1761
      %v1788 = vpop.permute.xlu0 %1787
      %1791 = vset.pattern.permute.xlu0 0
      %1792 = vperm.xlu0 %1791, %v1762
      %v1793 = vpop.permute.xlu0 %1792
      %1796 = vset.pattern.permute.xlu0 0
      %1797 = vperm.xlu0 %1796, %v1763
      %v1798 = vpop.permute.xlu0 %1797
      %1801 = vset.pattern.permute.xlu0 0
      %1802 = vperm.xlu0 %1801, %v1764
      %v1803 = vpop.permute.xlu0 %1802
      %v1821 = vunpack.c.l.b16 %v1741
      %v1822 = vunpack.c.h.b16 %v1741
      %v1823 = vunpack.c.l.b16 %v1742
      %v1824 = vunpack.c.h.b16 %v1742
      %v1825 = vunpack.c.l.b16 %v1743
      %v1826 = vunpack.c.h.b16 %v1743
      %v1827 = vunpack.c.l.b16 %v1744
      %v1828 = vunpack.c.h.b16 %v1744
      %v1829 = vunpack.c.l.b16 %v1745
      %v1830 = vunpack.c.h.b16 %v1745
      %v1831 = vunpack.c.l.b16 %v1746
      %v1832 = vunpack.c.h.b16 %v1746
      %v1833 = vunpack.c.l.b16 %v1747
      %v1834 = vunpack.c.h.b16 %v1747
      %v1835 = vunpack.c.l.b16 %v1748
      %v1836 = vunpack.c.h.b16 %v1748
      %v1837 = vunpack.c.l.b16 %v1749
      %v1838 = vunpack.c.h.b16 %v1749
      %v1839 = vunpack.c.l.b16 %v1750
      %v1840 = vunpack.c.h.b16 %v1750
      %v1841 = vunpack.c.l.b16 %v1751
      %v1842 = vunpack.c.h.b16 %v1751
      %v1843 = vunpack.c.l.b16 %v1752
      %v1844 = vunpack.c.h.b16 %v1752
      %v1845 = vunpack.c.l.b16 %v1753
      %v1846 = vunpack.c.h.b16 %v1753
      %v1847 = vunpack.c.l.b16 %v1754
      %v1848 = vunpack.c.h.b16 %v1754
      %v1849 = vunpack.c.l.b16 %v1755
      %v1850 = vunpack.c.h.b16 %v1755
      %v1851 = vunpack.c.l.b16 %v1756
      %v1852 = vunpack.c.h.b16 %v1756
      %v1853 = vpack.c.b16 %v1825, %v1821
      %v1854 = vpack.c.b16 %v1826, %v1822
      %v1855 = vpack.c.b16 %v1827, %v1823
      %v1856 = vpack.c.b16 %v1828, %v1824
      %v1857 = vpack.c.b16 %v1833, %v1829
      %v1858 = vpack.c.b16 %v1834, %v1830
      %v1859 = vpack.c.b16 %v1835, %v1831
      %v1860 = vpack.c.b16 %v1836, %v1832
      %v1861 = vpack.c.b16 %v1841, %v1837
      %v1862 = vpack.c.b16 %v1842, %v1838
      %v1863 = vpack.c.b16 %v1843, %v1839
      %v1864 = vpack.c.b16 %v1844, %v1840
      %v1865 = vpack.c.b16 %v1849, %v1845
      %v1866 = vpack.c.b16 %v1850, %v1846
      %v1867 = vpack.c.b16 %v1851, %v1847
      %v1868 = vpack.c.b16 %v1852, %v1848
      %v1882 = vsel %vm785, %v1856, 0
      %v1885 = vsel %vm785, %v1860, 0
      %v1888 = vsel %vm785, %v1864, 0
      %v1891 = vsel %vm785, %v1868, 0
      %1893 = vmatprep.subr.bf16.mxu0 0
      %1894 = vmatpush1.bf16.msra.mxu0 %v1711
      %1895 = vmatprep.subr.bf16.mxu0 0
      %1896 = vmatpush1.bf16.msra.mxu0 %v1712
      %1897 = vmatprep.subr.bf16.mxu0 0
      %1898 = vmatpush1.bf16.msra.mxu0 %v1713
      %1899 = vmatprep.subr.bf16.mxu0 0
      %1900 = vmatpush1.bf16.msra.mxu0 %v1714
      %1901 = vmatprep.subr.bf16.mxu0 0
      %1902 = vmatpush1.bf16.msra.mxu0 %v1715
      %1903 = vmatprep.subr.bf16.mxu0 0
      %1904 = vmatpush1.bf16.msra.mxu0 %v1716
      %1905 = vmatprep.subr.bf16.mxu0 0
      %1906 = vmatpush1.bf16.msra.mxu0 %v1717
      %1907 = vmatprep.subr.bf16.mxu0 0
      %1908 = vmatpush1.bf16.msra.mxu0 %v1718
      %1909 = vmatprep.subr.bf16.mxu0 0
      %1910 = vmatpush1.bf16.msra.mxu0 %v1719
      %1911 = vmatprep.subr.bf16.mxu0 0
      %1912 = vmatpush1.bf16.msra.mxu0 %v1720
      %1913 = vmatprep.subr.bf16.mxu0 0
      %1914 = vmatpush1.bf16.msra.mxu0 %v1721
      %1915 = vmatprep.subr.bf16.mxu0 0
      %1916 = vmatpush1.bf16.msra.mxu0 %v1722
      %1917 = vmatprep.subr.bf16.mxu0 0
      %1918 = vmatpush1.bf16.msra.mxu0 %v1723
      %1919 = vmatprep.subr.bf16.mxu0 0
      %1920 = vmatpush1.bf16.msra.mxu0 %v1724
      %1921 = vmatprep.subr.bf16.mxu0 0
      %1922 = vmatpush1.bf16.msra.mxu0 %v1725
      %1923 = vmatprep.subr.bf16.mxu0 0
      %1924 = vmatpush1.bf16.msra.mxu0 %v1726
      %1925 = vmatprep.mubr.bf16.mxu0 %v1854
      %1926 = vmatmul.mubr.bf16.gmra.mrb[0].mxu0 %v1853
      %v1927 = vpop.f32.mrb[0].mxu0
      %v1928 = vadd.f32 %v1768, %v1927
      %v1929 = vpop.f32.mrb[0].mxu0
      %v1930 = vpop.f32.mrb[0].mxu0
      %v1931 = vadd.f32 %v1773, %v1930
      %v1932 = vpop.f32.mrb[0].mxu0
      %1933 = vmatprep.mubr.bf16.mxu0 %v1858
      %1934 = vmatmul.mubr.bf16.gmra.mrb[0].mxu0 %v1857
      %v1935 = vpop.f32.mrb[0].mxu0
      %v1936 = vadd.f32 %v1778, %v1935
      %v1937 = vpop.f32.mrb[0].mxu0
      %v1938 = vpop.f32.mrb[0].mxu0
      %v1939 = vadd.f32 %v1783, %v1938
      %v1940 = vpop.f32.mrb[0].mxu0
      %1941 = vmatprep.mubr.bf16.mxu0 %v1862
      %1942 = vmatmul.mubr.bf16.gmra.mrb[0].mxu0 %v1861
      %v1943 = vpop.f32.mrb[0].mxu0
      %v1944 = vadd.f32 %v1788, %v1943
      %v1945 = vpop.f32.mrb[0].mxu0
      %v1946 = vpop.f32.mrb[0].mxu0
      %v1947 = vadd.f32 %v1793, %v1946
      %v1948 = vpop.f32.mrb[0].mxu0
      %1949 = vmatprep.mubr.bf16.mxu0 %v1866
      %1950 = vmatmul.mubr.bf16.gmra.mrb[0].mxu0 %v1865
      %v1951 = vpop.f32.mrb[0].mxu0
      %v1952 = vadd.f32 %v1798, %v1951
      %v1953 = vpop.f32.mrb[0].mxu0
      %v1954 = vpop.f32.mrb[0].mxu0
      %v1955 = vadd.f32 %v1803, %v1954
      %v1956 = vpop.f32.mrb[0].mxu0
      %1957 = vdwg.mxu0
      %1958 = vmatprep.subr.bf16.mxu0 0
      %1959 = vmatpush1.bf16.msra.mxu0 %v1727
      %1960 = vmatprep.subr.bf16.mxu0 0
      %1961 = vmatpush1.bf16.msra.mxu0 %v1728
      %1962 = vmatprep.subr.bf16.mxu0 0
      %1963 = vmatpush1.bf16.msra.mxu0 %v1729
      %1964 = vmatprep.subr.bf16.mxu0 0
      %1965 = vmatpush1.bf16.msra.mxu0 %v1730
      %1966 = vmatprep.subr.bf16.mxu0 0
      %1967 = vmatpush1.bf16.msra.mxu0 %v1731
      %1968 = vmatprep.subr.bf16.mxu0 0
      %1969 = vmatpush1.bf16.msra.mxu0 %v1732
      %1970 = vmatprep.subr.bf16.mxu0 0
      %1971 = vmatpush1.bf16.msra.mxu0 %v1733
      %1972 = vmatprep.subr.bf16.mxu0 0
      %1973 = vmatpush1.bf16.msra.mxu0 %v1734
      %1974 = vmatprep.subr.bf16.mxu0 0
      %1975 = vmatpush1.bf16.msra.mxu0 %v1735
      %1976 = vmatprep.subr.bf16.mxu0 0
      %1977 = vmatpush1.bf16.msra.mxu0 %v1736
      %1978 = vmatprep.subr.bf16.mxu0 0
      %1979 = vmatpush1.bf16.msra.mxu0 %v1737
      %1980 = vmatprep.subr.bf16.mxu0 0
      %1981 = vmatpush1.bf16.msra.mxu0 %v1738
      %1982 = vmatprep.subr.bf16.mxu0 0
      %1983 = vmatpush1.bf16.msra.mxu0 %v1739
      %1984 = vmatprep.subr.bf16.mxu0 0
      %1985 = vmatpush1.bf16.msra.mxu0 %v1740
      %1986 = vmatprep.subr.bf16.mxu0 0
      %1987 = vmatpush1.bf16.msra.mxu0 0
      %1988 = vmatprep.subr.bf16.mxu0 0
      %1989 = vmatpush1.bf16.msra.mxu0 0
      %1990 = vmatprep.mubr.bf16.mxu0 %v1882
      %1991 = vmatmul.mubr.bf16.gmra.mrb[0].mxu0 %v1855
      %v1992 = vpop.f32.mrb[0].mxu0
      %v1993 = vadd.f32 %v1928, %v1992
      %v1994 = vpop.f32.mrb[0].mxu0
      %v1995 = vpop.f32.mrb[0].mxu0
      %v1996 = vadd.f32 %v1931, %v1995
      %v1997 = vpop.f32.mrb[0].mxu0
      %1998 = vmatprep.mubr.bf16.mxu0 %v1885
      %1999 = vmatmul.mubr.bf16.gmra.mrb[0].mxu0 %v1859
      %v2000 = vpop.f32.mrb[0].mxu0
      %v2001 = vadd.f32 %v1936, %v2000
      %v2002 = vpop.f32.mrb[0].mxu0
      %v2003 = vpop.f32.mrb[0].mxu0
      %v2004 = vadd.f32 %v1939, %v2003
      %v2005 = vpop.f32.mrb[0].mxu0
      %2006 = vmatprep.mubr.bf16.mxu0 %v1888
      %2007 = vmatmul.mubr.bf16.gmra.mrb[0].mxu0 %v1863
      %v2008 = vpop.f32.mrb[0].mxu0
      %v2009 = vadd.f32 %v1944, %v2008
      %v2010 = vpop.f32.mrb[0].mxu0
      %v2011 = vpop.f32.mrb[0].mxu0
      %v2012 = vadd.f32 %v1947, %v2011
      %v2013 = vpop.f32.mrb[0].mxu0
      %2014 = vmatprep.mubr.bf16.mxu0 %v1891
      %2015 = vmatmul.mubr.bf16.gmra.mrb[0].mxu0 %v1867
      %v2016 = vpop.f32.mrb[0].mxu0
      %v2017 = vadd.f32 %v1952, %v2016
      %v2018 = vpop.f32.mrb[0].mxu0
      %v2019 = vpop.f32.mrb[0].mxu0
      %v2020 = vadd.f32 %v1955, %v2019
      %v2021 = vpop.f32.mrb[0].mxu0
      %2022 = vdwg.mxu0
      %v2023 = vmul.f32 %v1993, 0.3
      %v2024 = vmul.f32 %v1996, 0.3
      %v2025 = vmul.f32 %v2001, 0.3
      %v2026 = vmul.f32 %v2004, 0.3
      %v2027 = vmul.f32 %v2009, 0.3
      %v2028 = vmul.f32 %v2012, 0.3
      %v2029 = vmul.f32 %v2017, 0.3
      %v2030 = vmul.f32 %v2020, 0.3
      %v2031 = vmax.f32 %v1993, %v2023
      %v2032 = vmax.f32 %v1996, %v2024
      %v2033 = vmax.f32 %v2001, %v2025
      %v2034 = vmax.f32 %v2004, %v2026
      %v2035 = vmax.f32 %v2009, %v2027
      %v2036 = vmax.f32 %v2012, %v2028
      %v2037 = vmax.f32 %v2017, %v2029
      %v2038 = vmax.f32 %v2020, %v2030
      %v2039 = vpack.c.bf16 %v2032, %v2031
      %v2040 = vpack.c.bf16 %v2034, %v2033
      %v2041 = vpack.c.bf16 %v2036, %v2035
      %v2042 = vpack.c.bf16 %v2038, %v2037
      %2047 = vrot.lane.b32.xlu0 %v2039, 127
      %v2048 = vpop.permute.xlu0 %2047
      %2049 = vrot.lane.b32.xlu0 %v2040, 127
      %v2050 = vpop.permute.xlu0 %2049
      %2051 = vrot.lane.b32.xlu0 %v2041, 127
      %v2052 = vpop.permute.xlu0 %2051
      %2053 = vrot.lane.b32.xlu0 %v2042, 127
      %v2054 = vpop.permute.xlu0 %2053
      %2055 = vrot.lane.b32.xlu0 %v2039, 126
      %v2056 = vpop.permute.xlu0 %2055
      %2057 = vrot.lane.b32.xlu0 %v2040, 126
      %v2058 = vpop.permute.xlu0 %2057
      %2059 = vrot.lane.b32.xlu0 %v2041, 126
      %v2060 = vpop.permute.xlu0 %2059
      %2061 = vrot.lane.b32.xlu0 %v2042, 126
      %v2062 = vpop.permute.xlu0 %2061
      %2063 = vrot.lane.b32.xlu0 %v2039, 125
      %v2064 = vpop.permute.xlu0 %2063
      %2065 = vrot.lane.b32.xlu0 %v2040, 125
      %v2066 = vpop.permute.xlu0 %2065
      %2067 = vrot.lane.b32.xlu0 %v2041, 125
      %v2068 = vpop.permute.xlu0 %2067
      %2069 = vrot.lane.b32.xlu0 %v2042, 125
      %v2070 = vpop.permute.xlu0 %2069
      %2071 = vrot.lane.b32.xlu0 %v2039, 124
      %v2072 = vpop.permute.xlu0 %2071
      %2073 = vrot.lane.b32.xlu0 %v2040, 124
      %v2074 = vpop.permute.xlu0 %2073
      %2075 = vrot.lane.b32.xlu0 %v2041, 124
      %v2076 = vpop.permute.xlu0 %2075
      %2077 = vrot.lane.b32.xlu0 %v2042, 124
      %v2078 = vpop.permute.xlu0 %2077
      %2079 = vrot.lane.b32.xlu0 %v2039, 123
      %v2080 = vpop.permute.xlu0 %2079
      %2081 = vrot.lane.b32.xlu0 %v2040, 123
      %v2082 = vpop.permute.xlu0 %2081
      %2083 = vrot.lane.b32.xlu0 %v2041, 123
      %v2084 = vpop.permute.xlu0 %2083
      %2085 = vrot.lane.b32.xlu0 %v2042, 123
      %v2086 = vpop.permute.xlu0 %2085
      %2087 = vrot.lane.b32.xlu0 %v2039, 122
      %v2088 = vpop.permute.xlu0 %2087
      %2089 = vrot.lane.b32.xlu0 %v2040, 122
      %v2090 = vpop.permute.xlu0 %2089
      %2091 = vrot.lane.b32.xlu0 %v2041, 122
      %v2092 = vpop.permute.xlu0 %2091
      %2093 = vrot.lane.b32.xlu0 %v2042, 122
      %v2094 = vpop.permute.xlu0 %2093
      %2095 = vrot.lane.b32.xlu0 %v2039, 121
      %v2096 = vpop.permute.xlu0 %2095
      %2097 = vrot.lane.b32.xlu0 %v2040, 121
      %v2098 = vpop.permute.xlu0 %2097
      %2099 = vrot.lane.b32.xlu0 %v2041, 121
      %v2100 = vpop.permute.xlu0 %2099
      %2101 = vrot.lane.b32.xlu0 %v2042, 121
      %v2102 = vpop.permute.xlu0 %2101
      %2103 = vrot.lane.b32.xlu0 %v2039, 120
      %v2104 = vpop.permute.xlu0 %2103
      %2105 = vrot.lane.b32.xlu0 %v2040, 120
      %v2106 = vpop.permute.xlu0 %2105
      %2107 = vrot.lane.b32.xlu0 %v2041, 120
      %v2108 = vpop.permute.xlu0 %2107
      %2109 = vrot.lane.b32.xlu0 %v2042, 120
      %v2110 = vpop.permute.xlu0 %2109
      %2111 = vrot.lane.b32.xlu0 %v2039, 119
      %v2112 = vpop.permute.xlu0 %2111
      %2113 = vrot.lane.b32.xlu0 %v2040, 119
      %v2114 = vpop.permute.xlu0 %2113
      %2115 = vrot.lane.b32.xlu0 %v2041, 119
      %v2116 = vpop.permute.xlu0 %2115
      %2117 = vrot.lane.b32.xlu0 %v2042, 119
      %v2118 = vpop.permute.xlu0 %2117
      %2119 = vrot.lane.b32.xlu0 %v2039, 118
      %v2120 = vpop.permute.xlu0 %2119
      %2121 = vrot.lane.b32.xlu0 %v2040, 118
      %v2122 = vpop.permute.xlu0 %2121
      %2123 = vrot.lane.b32.xlu0 %v2041, 118
      %v2124 = vpop.permute.xlu0 %2123
      %2125 = vrot.lane.b32.xlu0 %v2042, 118
      %v2126 = vpop.permute.xlu0 %2125
      %2127 = vrot.lane.b32.xlu0 %v2039, 117
      %v2128 = vpop.permute.xlu0 %2127
      %2129 = vrot.lane.b32.xlu0 %v2040, 117
      %v2130 = vpop.permute.xlu0 %2129
      %2131 = vrot.lane.b32.xlu0 %v2041, 117
      %v2132 = vpop.permute.xlu0 %2131
      %2133 = vrot.lane.b32.xlu0 %v2042, 117
      %v2134 = vpop.permute.xlu0 %2133
      %2135 = vrot.lane.b32.xlu0 %v2039, 116
      %v2136 = vpop.permute.xlu0 %2135
      %2137 = vrot.lane.b32.xlu0 %v2040, 116
      %v2138 = vpop.permute.xlu0 %2137
      %2139 = vrot.lane.b32.xlu0 %v2041, 116
      %v2140 = vpop.permute.xlu0 %2139
      %2141 = vrot.lane.b32.xlu0 %v2042, 116
      %v2142 = vpop.permute.xlu0 %2141
      %2143 = vrot.lane.b32.xlu0 %v2039, 115
      %v2144 = vpop.permute.xlu0 %2143
      %2145 = vrot.lane.b32.xlu0 %v2040, 115
      %v2146 = vpop.permute.xlu0 %2145
      %2147 = vrot.lane.b32.xlu0 %v2041, 115
      %v2148 = vpop.permute.xlu0 %2147
      %2149 = vrot.lane.b32.xlu0 %v2042, 115
      %v2150 = vpop.permute.xlu0 %2149
      %2151 = vrot.lane.b32.xlu0 %v2039, 114
      %v2152 = vpop.permute.xlu0 %2151
      %2153 = vrot.lane.b32.xlu0 %v2040, 114
      %v2154 = vpop.permute.xlu0 %2153
      %2155 = vrot.lane.b32.xlu0 %v2041, 114
      %v2156 = vpop.permute.xlu0 %2155
      %2157 = vrot.lane.b32.xlu0 %v2042, 114
      %v2158 = vpop.permute.xlu0 %2157
      %v2159 = vld [vmem:[%s10] sm:$0xf]
      %v2160 = vld [vmem:[%s10 + $0x4] sm:$0x1]
      %v2163 = vunpack.c.l.b16 %v2159
      %v2164 = vunpack.c.l.b16 %v2160
      %v2165 = vpack.c.b16 %v2164, %v2163
      %vm2166 = vcmask 80896
      %v2168 = vsel %vm2166, %v2039, 0
      %v2171 = vsel %vm2166, %v2040, 0
      %v2174 = vsel %vm2166, %v2041, 0
      %v2177 = vsel %vm2166, %v2042, 0
      %v2180 = vsel %vm2166, %v2048, 0
      %v2183 = vsel %vm2166, %v2050, 0
      %v2186 = vsel %vm2166, %v2052, 0
      %v2189 = vsel %vm2166, %v2054, 0
      %v2192 = vsel %vm2166, %v2056, 0
      %v2195 = vsel %vm2166, %v2058, 0
      %v2198 = vsel %vm2166, %v2060, 0
      %v2201 = vsel %vm2166, %v2062, 0
      %v2204 = vsel %vm2166, %v2064, 0
      %v2207 = vsel %vm2166, %v2066, 0
      %v2210 = vsel %vm2166, %v2068, 0
      %v2213 = vsel %vm2166, %v2070, 0
      %v2216 = vsel %vm2166, %v2072, 0
      %v2219 = vsel %vm2166, %v2074, 0
      %v2222 = vsel %vm2166, %v2076, 0
      %v2225 = vsel %vm2166, %v2078, 0
      %v2228 = vsel %vm2166, %v2080, 0
      %v2231 = vsel %vm2166, %v2082, 0
      %v2234 = vsel %vm2166, %v2084, 0
      %v2237 = vsel %vm2166, %v2086, 0
      %v2240 = vsel %vm2166, %v2088, 0
      %v2243 = vsel %vm2166, %v2090, 0
      %v2246 = vsel %vm2166, %v2092, 0
      %v2249 = vsel %vm2166, %v2094, 0
      %v2252 = vsel %vm2166, %v2096, 0
      %v2255 = vsel %vm2166, %v2098, 0
      %v2258 = vsel %vm2166, %v2100, 0
      %v2261 = vsel %vm2166, %v2102, 0
      %v2264 = vsel %vm2166, %v2104, 0
      %v2267 = vsel %vm2166, %v2106, 0
      %v2270 = vsel %vm2166, %v2108, 0
      %v2273 = vsel %vm2166, %v2110, 0
      %v2276 = vsel %vm2166, %v2112, 0
      %v2279 = vsel %vm2166, %v2114, 0
      %v2282 = vsel %vm2166, %v2116, 0
      %v2285 = vsel %vm2166, %v2118, 0
      %v2288 = vsel %vm2166, %v2120, 0
      %v2291 = vsel %vm2166, %v2122, 0
      %v2294 = vsel %vm2166, %v2124, 0
      %v2297 = vsel %vm2166, %v2126, 0
      %v2300 = vsel %vm2166, %v2128, 0
      %v2303 = vsel %vm2166, %v2130, 0
      %v2306 = vsel %vm2166, %v2132, 0
      %v2309 = vsel %vm2166, %v2134, 0
      %v2312 = vsel %vm2166, %v2136, 0
      %v2315 = vsel %vm2166, %v2138, 0
      %v2318 = vsel %vm2166, %v2140, 0
      %v2321 = vsel %vm2166, %v2142, 0
      %v2324 = vsel %vm2166, %v2144, 0
      %v2327 = vsel %vm2166, %v2146, 0
      %v2330 = vsel %vm2166, %v2148, 0
      %v2333 = vsel %vm2166, %v2150, 0
      %v2336 = vsel %vm2166, %v2152, 0
      %v2339 = vsel %vm2166, %v2154, 0
      %v2342 = vsel %vm2166, %v2156, 0
      %v2345 = vsel %vm2166, %v2158, 0
      %vm2347 = vcmask 1044480
      %v2349 = vsel %vm2347, %v2165, 0
      %2351 = vmatprep.subr.bf16.mxu0 0
      %2352 = vmatpush1.bf16.msra.mxu0 %v2349
      %2353 = vmatprep.subr.bf16.mxu0 0
      %2354 = vmatpush1.bf16.msra.mxu0 0
      %2355 = vmatprep.subr.bf16.mxu0 0
      %2356 = vmatpush1.bf16.msra.mxu0 0
      %2357 = vmatprep.subr.bf16.mxu0 0
      %2358 = vmatpush1.bf16.msra.mxu0 0
      %2359 = vmatprep.subr.bf16.mxu0 0
      %2360 = vmatpush1.bf16.msra.mxu0 0
      %2361 = vmatprep.subr.bf16.mxu0 0
      %2362 = vmatpush1.bf16.msra.mxu0 0
      %2363 = vmatprep.subr.bf16.mxu0 0
      %2364 = vmatpush1.bf16.msra.mxu0 0
      %2365 = vmatprep.subr.bf16.mxu0 0
      %2366 = vmatpush1.bf16.msra.mxu0 0
      %2367 = vmatprep.subr.bf16.mxu0 0
      %2368 = vmatpush1.bf16.msra.mxu0 0
      %2369 = vmatprep.subr.bf16.mxu0 0
      %2370 = vmatpush1.bf16.msra.mxu0 0
      %2371 = vmatprep.subr.bf16.mxu0 0
      %2372 = vmatpush1.bf16.msra.mxu0 0
      %2373 = vmatprep.subr.bf16.mxu0 0
      %2374 = vmatpush1.bf16.msra.mxu0 0
      %2375 = vmatprep.subr.bf16.mxu0 0
      %2376 = vmatpush1.bf16.msra.mxu0 0
      %2377 = vmatprep.subr.bf16.mxu0 0
      %2378 = vmatpush1.bf16.msra.mxu0 0
      %2379 = vmatprep.subr.bf16.mxu0 0
      %2380 = vmatpush1.bf16.msra.mxu0 0
      %2381 = vmatprep.subr.bf16.mxu0 0
      %2382 = vmatpush1.bf16.msra.mxu0 0
      %2383 = vmatprep.mubr.bf16.mxu0 0
      %2384 = vmatmul.mubr.bf16.gmra.mrb[0].mxu0 %v2168
      %v2385 = vpop.f32.mrb[0].mxu0
      %v2386 = vadd.f32 0.0, %v2385
      %v2387 = vpop.f32.mrb[0].mxu0
      %v2388 = vpop.f32.mrb[0].mxu0
      %v2389 = vadd.f32 0.0, %v2388
      %v2390 = vpop.f32.mrb[0].mxu0
      %2391 = vmatprep.mubr.bf16.mxu0 0
      %2392 = vmatmul.mubr.bf16.gmra.mrb[0].mxu0 %v2171
      %v2393 = vpop.f32.mrb[0].mxu0
      %v2394 = vadd.f32 0.0, %v2393
      %v2395 = vpop.f32.mrb[0].mxu0
      %v2396 = vpop.f32.mrb[0].mxu0
      %v2397 = vadd.f32 0.0, %v2396
      %v2398 = vpop.f32.mrb[0].mxu0
      %2399 = vmatprep.mubr.bf16.mxu0 0
      %2400 = vmatmul.mubr.bf16.gmra.mrb[0].mxu0 %v2174
      %v2401 = vpop.f32.mrb[0].mxu0
      %v2402 = vadd.f32 0.0, %v2401
      %v2403 = vpop.f32.mrb[0].mxu0
      %v2404 = vpop.f32.mrb[0].mxu0
      %v2405 = vadd.f32 0.0, %v2404
      %v2406 = vpop.f32.mrb[0].mxu0
      %2407 = vmatprep.mubr.bf16.mxu0 0
      %2408 = vmatmul.mubr.bf16.gmra.mrb[0].mxu0 %v2177
      %v2409 = vpop.f32.mrb[0].mxu0
      %v2410 = vadd.f32 0.0, %v2409
      %v2411 = vpop.f32.mrb[0].mxu0
      %v2412 = vpop.f32.mrb[0].mxu0
      %v2413 = vadd.f32 0.0, %v2412
      %v2414 = vpop.f32.mrb[0].mxu0
      %2415 = vmatprep.mubr.bf16.mxu0 0
      %2416 = vmatmul.mubr.bf16.gmra.mrb[0].mxu0 %v2180
      %v2417 = vpop.f32.mrb[0].mxu0
      %v2418 = vadd.f32 0.0, %v2417
      %v2419 = vpop.f32.mrb[0].mxu0
      %v2420 = vpop.f32.mrb[0].mxu0
      %v2421 = vadd.f32 0.0, %v2420
      %v2422 = vpop.f32.mrb[0].mxu0
      %2423 = vmatprep.mubr.bf16.mxu0 0
      %2424 = vmatmul.mubr.bf16.gmra.mrb[0].mxu0 %v2183
      %v2425 = vpop.f32.mrb[0].mxu0
      %v2426 = vadd.f32 0.0, %v2425
      %v2427 = vpop.f32.mrb[0].mxu0
      %v2428 = vpop.f32.mrb[0].mxu0
      %v2429 = vadd.f32 0.0, %v2428
      %v2430 = vpop.f32.mrb[0].mxu0
      %2431 = vmatprep.mubr.bf16.mxu0 0
      %2432 = vmatmul.mubr.bf16.gmra.mrb[0].mxu0 %v2186
      %v2433 = vpop.f32.mrb[0].mxu0
      %v2434 = vadd.f32 0.0, %v2433
      %v2435 = vpop.f32.mrb[0].mxu0
      %v2436 = vpop.f32.mrb[0].mxu0
      %v2437 = vadd.f32 0.0, %v2436
      %v2438 = vpop.f32.mrb[0].mxu0
      %2439 = vmatprep.mubr.bf16.mxu0 0
      %2440 = vmatmul.mubr.bf16.gmra.mrb[0].mxu0 %v2189
      %v2441 = vpop.f32.mrb[0].mxu0
      %v2442 = vadd.f32 0.0, %v2441
      %v2443 = vpop.f32.mrb[0].mxu0
      %v2444 = vpop.f32.mrb[0].mxu0
      %v2445 = vadd.f32 0.0, %v2444
      %v2446 = vpop.f32.mrb[0].mxu0
      %2447 = vmatprep.mubr.bf16.mxu0 0
      %2448 = vmatmul.mubr.bf16.gmra.mrb[0].mxu0 %v2192
      %v2449 = vpop.f32.mrb[0].mxu0
      %v2450 = vadd.f32 0.0, %v2449
      %v2451 = vpop.f32.mrb[0].mxu0
      %v2452 = vpop.f32.mrb[0].mxu0
      %v2453 = vadd.f32 0.0, %v2452
      %v2454 = vpop.f32.mrb[0].mxu0
      %2455 = vmatprep.mubr.bf16.mxu0 0
      %2456 = vmatmul.mubr.bf16.gmra.mrb[0].mxu0 %v2195
      %v2457 = vpop.f32.mrb[0].mxu0
      %v2458 = vadd.f32 0.0, %v2457
      %v2459 = vpop.f32.mrb[0].mxu0
      %v2460 = vpop.f32.mrb[0].mxu0
      %v2461 = vadd.f32 0.0, %v2460
      %v2462 = vpop.f32.mrb[0].mxu0
      %2463 = vmatprep.mubr.bf16.mxu0 0
      %2464 = vmatmul.mubr.bf16.gmra.mrb[0].mxu0 %v2198
      %v2465 = vpop.f32.mrb[0].mxu0
      %v2466 = vadd.f32 0.0, %v2465
      %v2467 = vpop.f32.mrb[0].mxu0
      %v2468 = vpop.f32.mrb[0].mxu0
      %v2469 = vadd.f32 0.0, %v2468
      %v2470 = vpop.f32.mrb[0].mxu0
      %2471 = vmatprep.mubr.bf16.mxu0 0
      %2472 = vmatmul.mubr.bf16.gmra.mrb[0].mxu0 %v2201
      %v2473 = vpop.f32.mrb[0].mxu0
      %v2474 = vadd.f32 0.0, %v2473
      %v2475 = vpop.f32.mrb[0].mxu0
      %v2476 = vpop.f32.mrb[0].mxu0
      %v2477 = vadd.f32 0.0, %v2476
      %v2478 = vpop.f32.mrb[0].mxu0
      %2479 = vmatprep.mubr.bf16.mxu0 0
      %2480 = vmatmul.mubr.bf16.gmra.mrb[0].mxu0 %v2204
      %v2481 = vpop.f32.mrb[0].mxu0
      %v2482 = vadd.f32 0.0, %v2481
      %v2483 = vpop.f32.mrb[0].mxu0
      %v2484 = vpop.f32.mrb[0].mxu0
      %v2485 = vadd.f32 0.0, %v2484
      %v2486 = vpop.f32.mrb[0].mxu0
      %2487 = vmatprep.mubr.bf16.mxu0 0
      %2488 = vmatmul.mubr.bf16.gmra.mrb[0].mxu0 %v2207
      %v2489 = vpop.f32.mrb[0].mxu0
      %v2490 = vadd.f32 0.0, %v2489
      %v2491 = vpop.f32.mrb[0].mxu0
      %v2492 = vpop.f32.mrb[0].mxu0
      %v2493 = vadd.f32 0.0, %v2492
      %v2494 = vpop.f32.mrb[0].mxu0
      %2495 = vmatprep.mubr.bf16.mxu0 0
      %2496 = vmatmul.mubr.bf16.gmra.mrb[0].mxu0 %v2210
      %v2497 = vpop.f32.mrb[0].mxu0
      %v2498 = vadd.f32 0.0, %v2497
      %v2499 = vpop.f32.mrb[0].mxu0
      %v2500 = vpop.f32.mrb[0].mxu0
      %v2501 = vadd.f32 0.0, %v2500
      %v2502 = vpop.f32.mrb[0].mxu0
      %2503 = vmatprep.mubr.bf16.mxu0 0
      %2504 = vmatmul.mubr.bf16.gmra.mrb[0].mxu0 %v2213
      %v2505 = vpop.f32.mrb[0].mxu0
      %v2506 = vadd.f32 0.0, %v2505
      %v2507 = vpop.f32.mrb[0].mxu0
      %v2508 = vpop.f32.mrb[0].mxu0
      %v2509 = vadd.f32 0.0, %v2508
      %v2510 = vpop.f32.mrb[0].mxu0
      %2511 = vmatprep.mubr.bf16.mxu0 0
      %2512 = vmatmul.mubr.bf16.gmra.mrb[0].mxu0 %v2216
      %v2513 = vpop.f32.mrb[0].mxu0
      %v2514 = vadd.f32 0.0, %v2513
      %v2515 = vpop.f32.mrb[0].mxu0
      %v2516 = vpop.f32.mrb[0].mxu0
      %v2517 = vadd.f32 0.0, %v2516
      %v2518 = vpop.f32.mrb[0].mxu0
      %2519 = vmatprep.mubr.bf16.mxu0 0
      %2520 = vmatmul.mubr.bf16.gmra.mrb[0].mxu0 %v2219
      %v2521 = vpop.f32.mrb[0].mxu0
      %v2522 = vadd.f32 0.0, %v2521
      %v2523 = vpop.f32.mrb[0].mxu0
      %v2524 = vpop.f32.mrb[0].mxu0
      %v2525 = vadd.f32 0.0, %v2524
      %v2526 = vpop.f32.mrb[0].mxu0
      %2527 = vmatprep.mubr.bf16.mxu0 0
      %2528 = vmatmul.mubr.bf16.gmra.mrb[0].mxu0 %v2222
      %v2529 = vpop.f32.mrb[0].mxu0
      %v2530 = vadd.f32 0.0, %v2529
      %v2531 = vpop.f32.mrb[0].mxu0
      %v2532 = vpop.f32.mrb[0].mxu0
      %v2533 = vadd.f32 0.0, %v2532
      %v2534 = vpop.f32.mrb[0].mxu0
      %2535 = vmatprep.mubr.bf16.mxu0 0
      %2536 = vmatmul.mubr.bf16.gmra.mrb[0].mxu0 %v2225
      %v2537 = vpop.f32.mrb[0].mxu0
      %v2538 = vadd.f32 0.0, %v2537
      %v2539 = vpop.f32.mrb[0].mxu0
      %v2540 = vpop.f32.mrb[0].mxu0
      %v2541 = vadd.f32 0.0, %v2540
      %v2542 = vpop.f32.mrb[0].mxu0
      %2543 = vmatprep.mubr.bf16.mxu0 0
      %2544 = vmatmul.mubr.bf16.gmra.mrb[0].mxu0 %v2228
      %v2545 = vpop.f32.mrb[0].mxu0
      %v2546 = vadd.f32 0.0, %v2545
      %v2547 = vpop.f32.mrb[0].mxu0
      %v2548 = vpop.f32.mrb[0].mxu0
      %v2549 = vadd.f32 0.0, %v2548
      %v2550 = vpop.f32.mrb[0].mxu0
      %2551 = vmatprep.mubr.bf16.mxu0 0
      %2552 = vmatmul.mubr.bf16.gmra.mrb[0].mxu0 %v2231
      %v2553 = vpop.f32.mrb[0].mxu0
      %v2554 = vadd.f32 0.0, %v2553
      %v2555 = vpop.f32.mrb[0].mxu0
      %v2556 = vpop.f32.mrb[0].mxu0
      %v2557 = vadd.f32 0.0, %v2556
      %v2558 = vpop.f32.mrb[0].mxu0
      %2559 = vmatprep.mubr.bf16.mxu0 0
      %2560 = vmatmul.mubr.bf16.gmra.mrb[0].mxu0 %v2234
      %v2561 = vpop.f32.mrb[0].mxu0
      %v2562 = vadd.f32 0.0, %v2561
      %v2563 = vpop.f32.mrb[0].mxu0
      %v2564 = vpop.f32.mrb[0].mxu0
      %v2565 = vadd.f32 0.0, %v2564
      %v2566 = vpop.f32.mrb[0].mxu0
      %2567 = vmatprep.mubr.bf16.mxu0 0
      %2568 = vmatmul.mubr.bf16.gmra.mrb[0].mxu0 %v2237
      %v2569 = vpop.f32.mrb[0].mxu0
      %v2570 = vadd.f32 0.0, %v2569
      %v2571 = vpop.f32.mrb[0].mxu0
      %v2572 = vpop.f32.mrb[0].mxu0
      %v2573 = vadd.f32 0.0, %v2572
      %v2574 = vpop.f32.mrb[0].mxu0
      %2575 = vmatprep.mubr.bf16.mxu0 0
      %2576 = vmatmul.mubr.bf16.gmra.mrb[0].mxu0 %v2240
      %v2577 = vpop.f32.mrb[0].mxu0
      %v2578 = vadd.f32 0.0, %v2577
      %v2579 = vpop.f32.mrb[0].mxu0
      %v2580 = vpop.f32.mrb[0].mxu0
      %v2581 = vadd.f32 0.0, %v2580
      %v2582 = vpop.f32.mrb[0].mxu0
      %2583 = vmatprep.mubr.bf16.mxu0 0
      %2584 = vmatmul.mubr.bf16.gmra.mrb[0].mxu0 %v2243
      %v2585 = vpop.f32.mrb[0].mxu0
      %v2586 = vadd.f32 0.0, %v2585
      %v2587 = vpop.f32.mrb[0].mxu0
      %v2588 = vpop.f32.mrb[0].mxu0
      %v2589 = vadd.f32 0.0, %v2588
      %v2590 = vpop.f32.mrb[0].mxu0
      %2591 = vmatprep.mubr.bf16.mxu0 0
      %2592 = vmatmul.mubr.bf16.gmra.mrb[0].mxu0 %v2246
      %v2593 = vpop.f32.mrb[0].mxu0
      %v2594 = vadd.f32 0.0, %v2593
      %v2595 = vpop.f32.mrb[0].mxu0
      %v2596 = vpop.f32.mrb[0].mxu0
      %v2597 = vadd.f32 0.0, %v2596
      %v2598 = vpop.f32.mrb[0].mxu0
      %2599 = vmatprep.mubr.bf16.mxu0 0
      %2600 = vmatmul.mubr.bf16.gmra.mrb[0].mxu0 %v2249
      %v2601 = vpop.f32.mrb[0].mxu0
      %v2602 = vadd.f32 0.0, %v2601
      %v2603 = vpop.f32.mrb[0].mxu0
      %v2604 = vpop.f32.mrb[0].mxu0
      %v2605 = vadd.f32 0.0, %v2604
      %v2606 = vpop.f32.mrb[0].mxu0
      %2607 = vmatprep.mubr.bf16.mxu0 0
      %2608 = vmatmul.mubr.bf16.gmra.mrb[0].mxu0 %v2252
      %v2609 = vpop.f32.mrb[0].mxu0
      %v2610 = vadd.f32 0.0, %v2609
      %v2611 = vpop.f32.mrb[0].mxu0
      %v2612 = vpop.f32.mrb[0].mxu0
      %v2613 = vadd.f32 0.0, %v2612
      %v2614 = vpop.f32.mrb[0].mxu0
      %2615 = vmatprep.mubr.bf16.mxu0 0
      %2616 = vmatmul.mubr.bf16.gmra.mrb[0].mxu0 %v2255
      %v2617 = vpop.f32.mrb[0].mxu0
      %v2618 = vadd.f32 0.0, %v2617
      %v2619 = vpop.f32.mrb[0].mxu0
      %v2620 = vpop.f32.mrb[0].mxu0
      %v2621 = vadd.f32 0.0, %v2620
      %v2622 = vpop.f32.mrb[0].mxu0
      %2623 = vmatprep.mubr.bf16.mxu0 0
      %2624 = vmatmul.mubr.bf16.gmra.mrb[0].mxu0 %v2258
      %v2625 = vpop.f32.mrb[0].mxu0
      %v2626 = vadd.f32 0.0, %v2625
      %v2627 = vpop.f32.mrb[0].mxu0
      %v2628 = vpop.f32.mrb[0].mxu0
      %v2629 = vadd.f32 0.0, %v2628
      %v2630 = vpop.f32.mrb[0].mxu0
      %2631 = vmatprep.mubr.bf16.mxu0 0
      %2632 = vmatmul.mubr.bf16.gmra.mrb[0].mxu0 %v2261
      %v2633 = vpop.f32.mrb[0].mxu0
      %v2634 = vadd.f32 0.0, %v2633
      %v2635 = vpop.f32.mrb[0].mxu0
      %v2636 = vpop.f32.mrb[0].mxu0
      %v2637 = vadd.f32 0.0, %v2636
      %v2638 = vpop.f32.mrb[0].mxu0
      %2639 = vmatprep.mubr.bf16.mxu0 0
      %2640 = vmatmul.mubr.bf16.gmra.mrb[0].mxu0 %v2264
      %v2641 = vpop.f32.mrb[0].mxu0
      %v2642 = vadd.f32 0.0, %v2641
      %v2643 = vpop.f32.mrb[0].mxu0
      %v2644 = vpop.f32.mrb[0].mxu0
      %v2645 = vadd.f32 0.0, %v2644
      %v2646 = vpop.f32.mrb[0].mxu0
      %2647 = vmatprep.mubr.bf16.mxu0 0
      %2648 = vmatmul.mubr.bf16.gmra.mrb[0].mxu0 %v2267
      %v2649 = vpop.f32.mrb[0].mxu0
      %v2650 = vadd.f32 0.0, %v2649
      %v2651 = vpop.f32.mrb[0].mxu0
      %v2652 = vpop.f32.mrb[0].mxu0
      %v2653 = vadd.f32 0.0, %v2652
      %v2654 = vpop.f32.mrb[0].mxu0
      %2655 = vmatprep.mubr.bf16.mxu0 0
      %2656 = vmatmul.mubr.bf16.gmra.mrb[0].mxu0 %v2270
      %v2657 = vpop.f32.mrb[0].mxu0
      %v2658 = vadd.f32 0.0, %v2657
      %v2659 = vpop.f32.mrb[0].mxu0
      %v2660 = vpop.f32.mrb[0].mxu0
      %v2661 = vadd.f32 0.0, %v2660
      %v2662 = vpop.f32.mrb[0].mxu0
      %2663 = vmatprep.mubr.bf16.mxu0 0
      %2664 = vmatmul.mubr.bf16.gmra.mrb[0].mxu0 %v2273
      %v2665 = vpop.f32.mrb[0].mxu0
      %v2666 = vadd.f32 0.0, %v2665
      %v2667 = vpop.f32.mrb[0].mxu0
      %v2668 = vpop.f32.mrb[0].mxu0
      %v2669 = vadd.f32 0.0, %v2668
      %v2670 = vpop.f32.mrb[0].mxu0
      %2671 = vmatprep.mubr.bf16.mxu0 0
      %2672 = vmatmul.mubr.bf16.gmra.mrb[0].mxu0 %v2276
      %v2673 = vpop.f32.mrb[0].mxu0
      %v2674 = vadd.f32 0.0, %v2673
      %v2675 = vpop.f32.mrb[0].mxu0
      %v2676 = vpop.f32.mrb[0].mxu0
      %v2677 = vadd.f32 0.0, %v2676
      %v2678 = vpop.f32.mrb[0].mxu0
      %2679 = vmatprep.mubr.bf16.mxu0 0
      %2680 = vmatmul.mubr.bf16.gmra.mrb[0].mxu0 %v2279
      %v2681 = vpop.f32.mrb[0].mxu0
      %v2682 = vadd.f32 0.0, %v2681
      %v2683 = vpop.f32.mrb[0].mxu0
      %v2684 = vpop.f32.mrb[0].mxu0
      %v2685 = vadd.f32 0.0, %v2684
      %v2686 = vpop.f32.mrb[0].mxu0
      %2687 = vmatprep.mubr.bf16.mxu0 0
      %2688 = vmatmul.mubr.bf16.gmra.mrb[0].mxu0 %v2282
      %v2689 = vpop.f32.mrb[0].mxu0
      %v2690 = vadd.f32 0.0, %v2689
      %v2691 = vpop.f32.mrb[0].mxu0
      %v2692 = vpop.f32.mrb[0].mxu0
      %v2693 = vadd.f32 0.0, %v2692
      %v2694 = vpop.f32.mrb[0].mxu0
      %2695 = vmatprep.mubr.bf16.mxu0 0
      %2696 = vmatmul.mubr.bf16.gmra.mrb[0].mxu0 %v2285
      %v2697 = vpop.f32.mrb[0].mxu0
      %v2698 = vadd.f32 0.0, %v2697
      %v2699 = vpop.f32.mrb[0].mxu0
      %v2700 = vpop.f32.mrb[0].mxu0
      %v2701 = vadd.f32 0.0, %v2700
      %v2702 = vpop.f32.mrb[0].mxu0
      %2703 = vmatprep.mubr.bf16.mxu0 0
      %2704 = vmatmul.mubr.bf16.gmra.mrb[0].mxu0 %v2288
      %v2705 = vpop.f32.mrb[0].mxu0
      %v2706 = vadd.f32 0.0, %v2705
      %v2707 = vpop.f32.mrb[0].mxu0
      %v2708 = vpop.f32.mrb[0].mxu0
      %v2709 = vadd.f32 0.0, %v2708
      %v2710 = vpop.f32.mrb[0].mxu0
      %2711 = vmatprep.mubr.bf16.mxu0 0
      %2712 = vmatmul.mubr.bf16.gmra.mrb[0].mxu0 %v2291
      %v2713 = vpop.f32.mrb[0].mxu0
      %v2714 = vadd.f32 0.0, %v2713
      %v2715 = vpop.f32.mrb[0].mxu0
      %v2716 = vpop.f32.mrb[0].mxu0
      %v2717 = vadd.f32 0.0, %v2716
      %v2718 = vpop.f32.mrb[0].mxu0
      %2719 = vmatprep.mubr.bf16.mxu0 0
      %2720 = vmatmul.mubr.bf16.gmra.mrb[0].mxu0 %v2294
      %v2721 = vpop.f32.mrb[0].mxu0
      %v2722 = vadd.f32 0.0, %v2721
      %v2723 = vpop.f32.mrb[0].mxu0
      %v2724 = vpop.f32.mrb[0].mxu0
      %v2725 = vadd.f32 0.0, %v2724
      %v2726 = vpop.f32.mrb[0].mxu0
      %2727 = vmatprep.mubr.bf16.mxu0 0
      %2728 = vmatmul.mubr.bf16.gmra.mrb[0].mxu0 %v2297
      %v2729 = vpop.f32.mrb[0].mxu0
      %v2730 = vadd.f32 0.0, %v2729
      %v2731 = vpop.f32.mrb[0].mxu0
      %v2732 = vpop.f32.mrb[0].mxu0
      %v2733 = vadd.f32 0.0, %v2732
      %v2734 = vpop.f32.mrb[0].mxu0
      %2735 = vmatprep.mubr.bf16.mxu0 0
      %2736 = vmatmul.mubr.bf16.gmra.mrb[0].mxu0 %v2300
      %v2737 = vpop.f32.mrb[0].mxu0
      %v2738 = vadd.f32 0.0, %v2737
      %v2739 = vpop.f32.mrb[0].mxu0
      %v2740 = vpop.f32.mrb[0].mxu0
      %v2741 = vadd.f32 0.0, %v2740
      %v2742 = vpop.f32.mrb[0].mxu0
      %2743 = vmatprep.mubr.bf16.mxu0 0
      %2744 = vmatmul.mubr.bf16.gmra.mrb[0].mxu0 %v2303
      %v2745 = vpop.f32.mrb[0].mxu0
      %v2746 = vadd.f32 0.0, %v2745
      %v2747 = vpop.f32.mrb[0].mxu0
      %v2748 = vpop.f32.mrb[0].mxu0
      %v2749 = vadd.f32 0.0, %v2748
      %v2750 = vpop.f32.mrb[0].mxu0
      %2751 = vmatprep.mubr.bf16.mxu0 0
      %2752 = vmatmul.mubr.bf16.gmra.mrb[0].mxu0 %v2306
      %v2753 = vpop.f32.mrb[0].mxu0
      %v2754 = vadd.f32 0.0, %v2753
      %v2755 = vpop.f32.mrb[0].mxu0
      %v2756 = vpop.f32.mrb[0].mxu0
      %v2757 = vadd.f32 0.0, %v2756
      %v2758 = vpop.f32.mrb[0].mxu0
      %2759 = vmatprep.mubr.bf16.mxu0 0
      %2760 = vmatmul.mubr.bf16.gmra.mrb[0].mxu0 %v2309
      %v2761 = vpop.f32.mrb[0].mxu0
      %v2762 = vadd.f32 0.0, %v2761
      %v2763 = vpop.f32.mrb[0].mxu0
      %v2764 = vpop.f32.mrb[0].mxu0
      %v2765 = vadd.f32 0.0, %v2764
      %v2766 = vpop.f32.mrb[0].mxu0
      %2767 = vmatprep.mubr.bf16.mxu0 0
      %2768 = vmatmul.mubr.bf16.gmra.mrb[0].mxu0 %v2312
      %v2769 = vpop.f32.mrb[0].mxu0
      %v2770 = vadd.f32 0.0, %v2769
      %v2771 = vpop.f32.mrb[0].mxu0
      %v2772 = vpop.f32.mrb[0].mxu0
      %v2773 = vadd.f32 0.0, %v2772
      %v2774 = vpop.f32.mrb[0].mxu0
      %2775 = vmatprep.mubr.bf16.mxu0 0
      %2776 = vmatmul.mubr.bf16.gmra.mrb[0].mxu0 %v2315
      %v2777 = vpop.f32.mrb[0].mxu0
      %v2778 = vadd.f32 0.0, %v2777
      %v2779 = vpop.f32.mrb[0].mxu0
      %v2780 = vpop.f32.mrb[0].mxu0
      %v2781 = vadd.f32 0.0, %v2780
      %v2782 = vpop.f32.mrb[0].mxu0
      %2783 = vmatprep.mubr.bf16.mxu0 0
      %2784 = vmatmul.mubr.bf16.gmra.mrb[0].mxu0 %v2318
      %v2785 = vpop.f32.mrb[0].mxu0
      %v2786 = vadd.f32 0.0, %v2785
      %v2787 = vpop.f32.mrb[0].mxu0
      %v2788 = vpop.f32.mrb[0].mxu0
      %v2789 = vadd.f32 0.0, %v2788
      %v2790 = vpop.f32.mrb[0].mxu0
      %2791 = vmatprep.mubr.bf16.mxu0 0
      %2792 = vmatmul.mubr.bf16.gmra.mrb[0].mxu0 %v2321
      %v2793 = vpop.f32.mrb[0].mxu0
      %v2794 = vadd.f32 0.0, %v2793
      %v2795 = vpop.f32.mrb[0].mxu0
      %v2796 = vpop.f32.mrb[0].mxu0
      %v2797 = vadd.f32 0.0, %v2796
      %v2798 = vpop.f32.mrb[0].mxu0
      %2799 = vmatprep.mubr.bf16.mxu0 0
      %2800 = vmatmul.mubr.bf16.gmra.mrb[0].mxu0 %v2324
      %v2801 = vpop.f32.mrb[0].mxu0
      %v2802 = vadd.f32 0.0, %v2801
      %v2803 = vpop.f32.mrb[0].mxu0
      %v2804 = vpop.f32.mrb[0].mxu0
      %v2805 = vadd.f32 0.0, %v2804
      %v2806 = vpop.f32.mrb[0].mxu0
      %2807 = vmatprep.mubr.bf16.mxu0 0
      %2808 = vmatmul.mubr.bf16.gmra.mrb[0].mxu0 %v2327
      %v2809 = vpop.f32.mrb[0].mxu0
      %v2810 = vadd.f32 0.0, %v2809
      %v2811 = vpop.f32.mrb[0].mxu0
      %v2812 = vpop.f32.mrb[0].mxu0
      %v2813 = vadd.f32 0.0, %v2812
      %v2814 = vpop.f32.mrb[0].mxu0
      %2815 = vmatprep.mubr.bf16.mxu0 0
      %2816 = vmatmul.mubr.bf16.gmra.mrb[0].mxu0 %v2330
      %v2817 = vpop.f32.mrb[0].mxu0
      %v2818 = vadd.f32 0.0, %v2817
      %v2819 = vpop.f32.mrb[0].mxu0
      %v2820 = vpop.f32.mrb[0].mxu0
      %v2821 = vadd.f32 0.0, %v2820
      %v2822 = vpop.f32.mrb[0].mxu0
      %2823 = vmatprep.mubr.bf16.mxu0 0
      %2824 = vmatmul.mubr.bf16.gmra.mrb[0].mxu0 %v2333
      %v2825 = vpop.f32.mrb[0].mxu0
      %v2826 = vadd.f32 0.0, %v2825
      %v2827 = vpop.f32.mrb[0].mxu0
      %v2828 = vpop.f32.mrb[0].mxu0
      %v2829 = vadd.f32 0.0, %v2828
      %v2830 = vpop.f32.mrb[0].mxu0
      %2831 = vmatprep.mubr.bf16.mxu0 0
      %2832 = vmatmul.mubr.bf16.gmra.mrb[0].mxu0 %v2336
      %v2833 = vpop.f32.mrb[0].mxu0
      %v2834 = vadd.f32 0.0, %v2833
      %v2835 = vpop.f32.mrb[0].mxu0
      %v2836 = vpop.f32.mrb[0].mxu0
      %v2837 = vadd.f32 0.0, %v2836
      %v2838 = vpop.f32.mrb[0].mxu0
      %2839 = vmatprep.mubr.bf16.mxu0 0
      %2840 = vmatmul.mubr.bf16.gmra.mrb[0].mxu0 %v2339
      %v2841 = vpop.f32.mrb[0].mxu0
      %v2842 = vadd.f32 0.0, %v2841
      %v2843 = vpop.f32.mrb[0].mxu0
      %v2844 = vpop.f32.mrb[0].mxu0
      %v2845 = vadd.f32 0.0, %v2844
      %v2846 = vpop.f32.mrb[0].mxu0
      %2847 = vmatprep.mubr.bf16.mxu0 0
      %2848 = vmatmul.mubr.bf16.gmra.mrb[0].mxu0 %v2342
      %v2849 = vpop.f32.mrb[0].mxu0
      %v2850 = vadd.f32 0.0, %v2849
      %v2851 = vpop.f32.mrb[0].mxu0
      %v2852 = vpop.f32.mrb[0].mxu0
      %v2853 = vadd.f32 0.0, %v2852
      %v2854 = vpop.f32.mrb[0].mxu0
      %2855 = vmatprep.mubr.bf16.mxu0 0
      %2856 = vmatmul.mubr.bf16.gmra.mrb[0].mxu0 %v2345
      %v2857 = vpop.f32.mrb[0].mxu0
      %v2858 = vadd.f32 0.0, %v2857
      %v2859 = vpop.f32.mrb[0].mxu0
      %v2860 = vpop.f32.mrb[0].mxu0
      %v2861 = vadd.f32 0.0, %v2860
      %v2862 = vpop.f32.mrb[0].mxu0
      %2863 = vdwg.mxu0
      %v2864 = vpack.c.bf16 %v2389, %v2386
      %v2865 = vpack.c.bf16 %v2397, %v2394
      %v2866 = vpack.c.bf16 %v2405, %v2402
      %v2867 = vpack.c.bf16 %v2413, %v2410
      %v2868 = vpack.c.bf16 %v2421, %v2418
      %v2869 = vpack.c.bf16 %v2429, %v2426
      %v2870 = vpack.c.bf16 %v2437, %v2434
      %v2871 = vpack.c.bf16 %v2445, %v2442
      %v2872 = vpack.c.bf16 %v2453, %v2450
      %v2873 = vpack.c.bf16 %v2461, %v2458
      %v2874 = vpack.c.bf16 %v2469, %v2466
      %v2875 = vpack.c.bf16 %v2477, %v2474
      %v2876 = vpack.c.bf16 %v2485, %v2482
      %v2877 = vpack.c.bf16 %v2493, %v2490
      %v2878 = vpack.c.bf16 %v2501, %v2498
      %v2879 = vpack.c.bf16 %v2509, %v2506
      %v2880 = vpack.c.bf16 %v2517, %v2514
      %v2881 = vpack.c.bf16 %v2525, %v2522
      %v2882 = vpack.c.bf16 %v2533, %v2530
      %v2883 = vpack.c.bf16 %v2541, %v2538
      %v2884 = vpack.c.bf16 %v2549, %v2546
      %v2885 = vpack.c.bf16 %v2557, %v2554
      %v2886 = vpack.c.bf16 %v2565, %v2562
      %v2887 = vpack.c.bf16 %v2573, %v2570
      %v2888 = vpack.c.bf16 %v2581, %v2578
      %v2889 = vpack.c.bf16 %v2589, %v2586
      %v2890 = vpack.c.bf16 %v2597, %v2594
      %v2891 = vpack.c.bf16 %v2605, %v2602
      %v2892 = vpack.c.bf16 %v2613, %v2610
      %v2893 = vpack.c.bf16 %v2621, %v2618
      %v2894 = vpack.c.bf16 %v2629, %v2626
      %v2895 = vpack.c.bf16 %v2637, %v2634
      %v2896 = vpack.c.bf16 %v2645, %v2642
      %v2897 = vpack.c.bf16 %v2653, %v2650
      %v2898 = vpack.c.bf16 %v2661, %v2658
      %v2899 = vpack.c.bf16 %v2669, %v2666
      %v2900 = vpack.c.bf16 %v2677, %v2674
      %v2901 = vpack.c.bf16 %v2685, %v2682
      %v2902 = vpack.c.bf16 %v2693, %v2690
      %v2903 = vpack.c.bf16 %v2701, %v2698
      %v2904 = vpack.c.bf16 %v2709, %v2706
      %v2905 = vpack.c.bf16 %v2717, %v2714
      %v2906 = vpack.c.bf16 %v2725, %v2722
      %v2907 = vpack.c.bf16 %v2733, %v2730
      %v2908 = vpack.c.bf16 %v2741, %v2738
      %v2909 = vpack.c.bf16 %v2749, %v2746
      %v2910 = vpack.c.bf16 %v2757, %v2754
      %v2911 = vpack.c.bf16 %v2765, %v2762
      %v2912 = vpack.c.bf16 %v2773, %v2770
      %v2913 = vpack.c.bf16 %v2781, %v2778
      %v2914 = vpack.c.bf16 %v2789, %v2786
      %v2915 = vpack.c.bf16 %v2797, %v2794
      %v2916 = vpack.c.bf16 %v2805, %v2802
      %v2917 = vpack.c.bf16 %v2813, %v2810
      %v2918 = vpack.c.bf16 %v2821, %v2818
      %v2919 = vpack.c.bf16 %v2829, %v2826
      %v2920 = vpack.c.bf16 %v2837, %v2834
      %v2921 = vpack.c.bf16 %v2845, %v2842
      %v2922 = vpack.c.bf16 %v2853, %v2850
      %v2923 = vpack.c.bf16 %v2861, %v2858
      %v2924 = vld [vmem:[%s8] sm:$0xff]
      %v2925 = vld [vmem:[%s8 + $0x8] sm:$0xff]
      %v2926 = vld [vmem:[%s8 + $0x10] sm:$0xff]
      %v2927 = vld [vmem:[%s8 + $0x18] sm:$0xff]
      %v2928 = vld [vmem:[%s8 + $0x20] sm:$0xff]
      %v2929 = vld [vmem:[%s8 + $0x28] sm:$0xff]
      %v2930 = vld [vmem:[%s8 + $0x30] sm:$0xff]
      %v2931 = vld [vmem:[%s8 + $0x38] sm:$0xff]
      %v2932 = vld [vmem:[%s8 + $0x40] sm:$0xff]
      %v2933 = vld [vmem:[%s8 + $0x48] sm:$0xff]
      %v2934 = vld [vmem:[%s8 + $0x50] sm:$0xff]
      %v2935 = vld [vmem:[%s8 + $0x58] sm:$0xff]
      %v2936 = vld [vmem:[%s8 + $0x60] sm:$0xff]
      %v2937 = vld [vmem:[%s8 + $0x68] sm:$0xff]
      %v2938 = vld [vmem:[%s8 + $0x70] sm:$0xff]
      %v2939 = vld [vmem:[%s8 + $0x78] sm:$0xff]
      %v2940 = vld [vmem:[%s9] sm:$0xff]
      %v2941 = vld [vmem:[%s9 + $0x8] sm:$0xff]
      %v2942 = vld [vmem:[%s9 + $0x10] sm:$0xff]
      %v2943 = vld [vmem:[%s9 + $0x18] sm:$0xff]
      %2945 = vset.pattern.permute.xlu0 0
      %2946 = vperm.xlu0 %2945, %v2940
      %v2947 = vpop.permute.xlu0 %2946
      %2950 = vset.pattern.permute.xlu0 0
      %2951 = vperm.xlu0 %2950, %v2941
      %v2952 = vpop.permute.xlu0 %2951
      %2955 = vset.pattern.permute.xlu0 0
      %2956 = vperm.xlu0 %2955, %v2942
      %v2957 = vpop.permute.xlu0 %2956
      %2960 = vset.pattern.permute.xlu0 0
      %2961 = vperm.xlu0 %2960, %v2943
      %v2962 = vpop.permute.xlu0 %2961
      %v2980 = vunpack.c.l.b16 %v2924
      %v2981 = vunpack.c.h.b16 %v2924
      %v2982 = vunpack.c.l.b16 %v2925
      %v2983 = vunpack.c.h.b16 %v2925
      %v2984 = vunpack.c.l.b16 %v2926
      %v2985 = vunpack.c.h.b16 %v2926
      %v2986 = vunpack.c.l.b16 %v2927
      %v2987 = vunpack.c.h.b16 %v2927
      %v2988 = vunpack.c.l.b16 %v2928
      %v2989 = vunpack.c.h.b16 %v2928
      %v2990 = vunpack.c.l.b16 %v2929
      %v2991 = vunpack.c.h.b16 %v2929
      %v2992 = vunpack.c.l.b16 %v2930
      %v2993 = vunpack.c.h.b16 %v2930
      %v2994 = vunpack.c.l.b16 %v2931
      %v2995 = vunpack.c.h.b16 %v2931
      %v2996 = vunpack.c.l.b16 %v2932
      %v2997 = vunpack.c.h.b16 %v2932
      %v2998 = vunpack.c.l.b16 %v2933
      %v2999 = vunpack.c.h.b16 %v2933
      %v3000 = vunpack.c.l.b16 %v2934
      %v3001 = vunpack.c.h.b16 %v2934
      %v3002 = vunpack.c.l.b16 %v2935
      %v3003 = vunpack.c.h.b16 %v2935
      %v3004 = vunpack.c.l.b16 %v2936
      %v3005 = vunpack.c.h.b16 %v2936
      %v3006 = vunpack.c.l.b16 %v2937
      %v3007 = vunpack.c.h.b16 %v2937
      %v3008 = vunpack.c.l.b16 %v2938
      %v3009 = vunpack.c.h.b16 %v2938
      %v3010 = vunpack.c.l.b16 %v2939
      %v3011 = vunpack.c.h.b16 %v2939
      %v3012 = vpack.c.b16 %v2988, %v2980
      %v3013 = vpack.c.b16 %v2989, %v2981
      %v3014 = vpack.c.b16 %v2990, %v2982
      %v3015 = vpack.c.b16 %v2991, %v2983
      %v3016 = vpack.c.b16 %v2992, %v2984
      %v3017 = vpack.c.b16 %v2993, %v2985
      %v3018 = vpack.c.b16 %v2994, %v2986
      %v3019 = vpack.c.b16 %v2995, %v2987
      %v3020 = vpack.c.b16 %v3004, %v2996
      %v3021 = vpack.c.b16 %v3005, %v2997
      %v3022 = vpack.c.b16 %v3006, %v2998
      %v3023 = vpack.c.b16 %v3007, %v2999
      %v3024 = vpack.c.b16 %v3008, %v3000
      %v3025 = vpack.c.b16 %v3009, %v3001
      %v3026 = vpack.c.b16 %v3010, %v3002
      %v3027 = vpack.c.b16 %v3011, %v3003
      %vm3042 = vcmask 523264
      %v3044 = vsel %vm3042, %v3019, 0
      %v3047 = vsel %vm3042, %v3027, 0
      %3049 = vmatprep.subr.bf16.mxu0 0
      %3050 = vmatpush1.bf16.msra.mxu0 %v2864
      %3051 = vmatprep.subr.bf16.mxu0 0
      %3052 = vmatpush1.bf16.msra.mxu0 %v2865
      %3053 = vmatprep.subr.bf16.mxu0 0
      %3054 = vmatpush1.bf16.msra.mxu0 %v2866
      %3055 = vmatprep.subr.bf16.mxu0 0
      %3056 = vmatpush1.bf16.msra.mxu0 %v2867
      %3057 = vmatprep.subr.bf16.mxu0 0
      %3058 = vmatpush1.bf16.msra.mxu0 %v2868
      %3059 = vmatprep.subr.bf16.mxu0 0
      %3060 = vmatpush1.bf16.msra.mxu0 %v2869
      %3061 = vmatprep.subr.bf16.mxu0 0
      %3062 = vmatpush1.bf16.msra.mxu0 %v2870
      %3063 = vmatprep.subr.bf16.mxu0 0
      %3064 = vmatpush1.bf16.msra.mxu0 %v2871
      %3065 = vmatprep.subr.bf16.mxu0 0
      %3066 = vmatpush1.bf16.msra.mxu0 %v2872
      %3067 = vmatprep.subr.bf16.mxu0 0
      %3068 = vmatpush1.bf16.msra.mxu0 %v2873
      %3069 = vmatprep.subr.bf16.mxu0 0
      %3070 = vmatpush1.bf16.msra.mxu0 %v2874
      %3071 = vmatprep.subr.bf16.mxu0 0
      %3072 = vmatpush1.bf16.msra.mxu0 %v2875
      %3073 = vmatprep.subr.bf16.mxu0 0
      %3074 = vmatpush1.bf16.msra.mxu0 %v2876
      %3075 = vmatprep.subr.bf16.mxu0 0
      %3076 = vmatpush1.bf16.msra.mxu0 %v2877
      %3077 = vmatprep.subr.bf16.mxu0 0
      %3078 = vmatpush1.bf16.msra.mxu0 %v2878
      %3079 = vmatprep.subr.bf16.mxu0 0
      %3080 = vmatpush1.bf16.msra.mxu0 %v2879
      %3081 = vmatprep.mubr.bf16.mxu0 %v3013
      %3082 = vmatmul.mubr.bf16.gmra.mrb[0].mxu0 %v3012
      %v3083 = vpop.f32.mrb[0].mxu0
      %v3084 = vadd.f32 %v2947, %v3083
      %v3085 = vpop.f32.mrb[0].mxu0
      %v3086 = vpop.f32.mrb[0].mxu0
      %v3087 = vadd.f32 %v2952, %v3086
      %v3088 = vpop.f32.mrb[0].mxu0
      %3089 = vmatprep.mubr.bf16.mxu0 %v3021
      %3090 = vmatmul.mubr.bf16.gmra.mrb[0].mxu0 %v3020
      %v3091 = vpop.f32.mrb[0].mxu0
      %v3092 = vadd.f32 %v2957, %v3091
      %v3093 = vpop.f32.mrb[0].mxu0
      %v3094 = vpop.f32.mrb[0].mxu0
      %v3095 = vadd.f32 %v2962, %v3094
      %v3096 = vpop.f32.mrb[0].mxu0
      %3097 = vdwg.mxu0
      %3098 = vmatprep.subr.bf16.mxu0 0
      %3099 = vmatpush1.bf16.msra.mxu0 %v2880
      %3100 = vmatprep.subr.bf16.mxu0 0
      %3101 = vmatpush1.bf16.msra.mxu0 %v2881
      %3102 = vmatprep.subr.bf16.mxu0 0
      %3103 = vmatpush1.bf16.msra.mxu0 %v2882
      %3104 = vmatprep.subr.bf16.mxu0 0
      %3105 = vmatpush1.bf16.msra.mxu0 %v2883
      %3106 = vmatprep.subr.bf16.mxu0 0
      %3107 = vmatpush1.bf16.msra.mxu0 %v2884
      %3108 = vmatprep.subr.bf16.mxu0 0
      %3109 = vmatpush1.bf16.msra.mxu0 %v2885
      %3110 = vmatprep.subr.bf16.mxu0 0
      %3111 = vmatpush1.bf16.msra.mxu0 %v2886
      %3112 = vmatprep.subr.bf16.mxu0 0
      %3113 = vmatpush1.bf16.msra.mxu0 %v2887
      %3114 = vmatprep.subr.bf16.mxu0 0
      %3115 = vmatpush1.bf16.msra.mxu0 %v2888
      %3116 = vmatprep.subr.bf16.mxu0 0
      %3117 = vmatpush1.bf16.msra.mxu0 %v2889
      %3118 = vmatprep.subr.bf16.mxu0 0
      %3119 = vmatpush1.bf16.msra.mxu0 %v2890
      %3120 = vmatprep.subr.bf16.mxu0 0
      %3121 = vmatpush1.bf16.msra.mxu0 %v2891
      %3122 = vmatprep.subr.bf16.mxu0 0
      %3123 = vmatpush1.bf16.msra.mxu0 %v2892
      %3124 = vmatprep.subr.bf16.mxu0 0
      %3125 = vmatpush1.bf16.msra.mxu0 %v2893
      %3126 = vmatprep.subr.bf16.mxu0 0
      %3127 = vmatpush1.bf16.msra.mxu0 %v2894
      %3128 = vmatprep.subr.bf16.mxu0 0
      %3129 = vmatpush1.bf16.msra.mxu0 %v2895
      %3130 = vmatprep.mubr.bf16.mxu0 %v3015
      %3131 = vmatmul.mubr.bf16.gmra.mrb[0].mxu0 %v3014
      %v3132 = vpop.f32.mrb[0].mxu0
      %v3133 = vadd.f32 %v3084, %v3132
      %v3134 = vpop.f32.mrb[0].mxu0
      %v3135 = vpop.f32.mrb[0].mxu0
      %v3136 = vadd.f32 %v3087, %v3135
      %v3137 = vpop.f32.mrb[0].mxu0
      %3138 = vmatprep.mubr.bf16.mxu0 %v3023
      %3139 = vmatmul.mubr.bf16.gmra.mrb[0].mxu0 %v3022
      %v3140 = vpop.f32.mrb[0].mxu0
      %v3141 = vadd.f32 %v3092, %v3140
      %v3142 = vpop.f32.mrb[0].mxu0
      %v3143 = vpop.f32.mrb[0].mxu0
      %v3144 = vadd.f32 %v3095, %v3143
      %v3145 = vpop.f32.mrb[0].mxu0
      %3146 = vdwg.mxu0
      %3147 = vmatprep.subr.bf16.mxu0 0
      %3148 = vmatpush1.bf16.msra.mxu0 %v2896
      %3149 = vmatprep.subr.bf16.mxu0 0
      %3150 = vmatpush1.bf16.msra.mxu0 %v2897
      %3151 = vmatprep.subr.bf16.mxu0 0
      %3152 = vmatpush1.bf16.msra.mxu0 %v2898
      %3153 = vmatprep.subr.bf16.mxu0 0
      %3154 = vmatpush1.bf16.msra.mxu0 %v2899
      %3155 = vmatprep.subr.bf16.mxu0 0
      %3156 = vmatpush1.bf16.msra.mxu0 %v2900
      %3157 = vmatprep.subr.bf16.mxu0 0
      %3158 = vmatpush1.bf16.msra.mxu0 %v2901
      %3159 = vmatprep.subr.bf16.mxu0 0
      %3160 = vmatpush1.bf16.msra.mxu0 %v2902
      %3161 = vmatprep.subr.bf16.mxu0 0
      %3162 = vmatpush1.bf16.msra.mxu0 %v2903
      %3163 = vmatprep.subr.bf16.mxu0 0
      %3164 = vmatpush1.bf16.msra.mxu0 %v2904
      %3165 = vmatprep.subr.bf16.mxu0 0
      %3166 = vmatpush1.bf16.msra.mxu0 %v2905
      %3167 = vmatprep.subr.bf16.mxu0 0
      %3168 = vmatpush1.bf16.msra.mxu0 %v2906
      %3169 = vmatprep.subr.bf16.mxu0 0
      %3170 = vmatpush1.bf16.msra.mxu0 %v2907
      %3171 = vmatprep.subr.bf16.mxu0 0
      %3172 = vmatpush1.bf16.msra.mxu0 %v2908
      %3173 = vmatprep.subr.bf16.mxu0 0
      %3174 = vmatpush1.bf16.msra.mxu0 %v2909
      %3175 = vmatprep.subr.bf16.mxu0 0
      %3176 = vmatpush1.bf16.msra.mxu0 %v2910
      %3177 = vmatprep.subr.bf16.mxu0 0
      %3178 = vmatpush1.bf16.msra.mxu0 %v2911
      %3179 = vmatprep.mubr.bf16.mxu0 %v3017
      %3180 = vmatmul.mubr.bf16.gmra.mrb[0].mxu0 %v3016
      %v3181 = vpop.f32.mrb[0].mxu0
      %v3182 = vadd.f32 %v3133, %v3181
      %v3183 = vpop.f32.mrb[0].mxu0
      %v3184 = vpop.f32.mrb[0].mxu0
      %v3185 = vadd.f32 %v3136, %v3184
      %v3186 = vpop.f32.mrb[0].mxu0
      %3187 = vmatprep.mubr.bf16.mxu0 %v3025
      %3188 = vmatmul.mubr.bf16.gmra.mrb[0].mxu0 %v3024
      %v3189 = vpop.f32.mrb[0].mxu0
      %v3190 = vadd.f32 %v3141, %v3189
      %v3191 = vpop.f32.mrb[0].mxu0
      %v3192 = vpop.f32.mrb[0].mxu0
      %v3193 = vadd.f32 %v3144, %v3192
      %v3194 = vpop.f32.mrb[0].mxu0
      %3195 = vdwg.mxu0
      %3196 = vmatprep.subr.bf16.mxu0 0
      %3197 = vmatpush1.bf16.msra.mxu0 %v2912
      %3198 = vmatprep.subr.bf16.mxu0 0
      %3199 = vmatpush1.bf16.msra.mxu0 %v2913
      %3200 = vmatprep.subr.bf16.mxu0 0
      %3201 = vmatpush1.bf16.msra.mxu0 %v2914
      %3202 = vmatprep.subr.bf16.mxu0 0
      %3203 = vmatpush1.bf16.msra.mxu0 %v2915
      %3204 = vmatprep.subr.bf16.mxu0 0
      %3205 = vmatpush1.bf16.msra.mxu0 %v2916
      %3206 = vmatprep.subr.bf16.mxu0 0
      %3207 = vmatpush1.bf16.msra.mxu0 %v2917
      %3208 = vmatprep.subr.bf16.mxu0 0
      %3209 = vmatpush1.bf16.msra.mxu0 %v2918
      %3210 = vmatprep.subr.bf16.mxu0 0
      %3211 = vmatpush1.bf16.msra.mxu0 %v2919
      %3212 = vmatprep.subr.bf16.mxu0 0
      %3213 = vmatpush1.bf16.msra.mxu0 %v2920
      %3214 = vmatprep.subr.bf16.mxu0 0
      %3215 = vmatpush1.bf16.msra.mxu0 %v2921
      %3216 = vmatprep.subr.bf16.mxu0 0
      %3217 = vmatpush1.bf16.msra.mxu0 %v2922
      %3218 = vmatprep.subr.bf16.mxu0 0
      %3219 = vmatpush1.bf16.msra.mxu0 %v2923
      %3220 = vmatprep.subr.bf16.mxu0 0
      %3221 = vmatpush1.bf16.msra.mxu0 0
      %3222 = vmatprep.subr.bf16.mxu0 0
      %3223 = vmatpush1.bf16.msra.mxu0 0
      %3224 = vmatprep.subr.bf16.mxu0 0
      %3225 = vmatpush1.bf16.msra.mxu0 0
      %3226 = vmatprep.subr.bf16.mxu0 0
      %3227 = vmatpush1.bf16.msra.mxu0 0
      %3228 = vmatprep.mubr.bf16.mxu0 %v3044
      %3229 = vmatmul.mubr.bf16.gmra.mrb[0].mxu0 %v3018
      %v3230 = vpop.f32.mrb[0].mxu0
      %v3231 = vadd.f32 %v3182, %v3230
      %v3232 = vpop.f32.mrb[0].mxu0
      %v3233 = vpop.f32.mrb[0].mxu0
      %v3234 = vadd.f32 %v3185, %v3233
      %v3235 = vpop.f32.mrb[0].mxu0
      %3236 = vmatprep.mubr.bf16.mxu0 %v3047
      %3237 = vmatmul.mubr.bf16.gmra.mrb[0].mxu0 %v3026
      %v3238 = vpop.f32.mrb[0].mxu0
      %v3239 = vadd.f32 %v3190, %v3238
      %v3240 = vpop.f32.mrb[0].mxu0
      %v3241 = vpop.f32.mrb[0].mxu0
      %v3242 = vadd.f32 %v3193, %v3241
      %v3243 = vpop.f32.mrb[0].mxu0
      %3244 = vdwg.mxu0
      %vm3245 = vcmask 15360
      %3246 = vst.msk [vmem:[%s386] sm:$0xff] %vm3245, %v3231
      %3247 = vst.msk [vmem:[%s386 + $0x8] sm:$0xff] %vm3245, %v3234
      %3248 = vst.msk [vmem:[%s386 + $0x10] sm:$0xff] %vm3245, %v3239
      %3249 = vst.msk [vmem:[%s386 + $0x18] sm:$0xff] %vm3245, %v3242
      %p3250 = scmp.lt.s32.totalorder %s22, 1
      %s3251 = scalar_select %p3250, %s22, 1
      %s3252 = smul.addr %s3251, 4
      %s3253 = smul.addr %s3252, 8
      %s3254 = scalar_lea.vmem %s11, %s3253
      // Predicated region
      $region65: #{wav_encoder_forward.1} parent=63 // pred_check
        %p3255 = pneg %p276
      $region66: #{wav_encoder_forward.1} parent=63 // pred_check_branch
        %3257 = sbr.rel (%p3255) target = $region68
      $region67: #{wav_encoder_forward.1} parent=63 // pred_region
        _
      $region68: #{wav_encoder_forward.1} parent=63 // pred_fallthru
        _
    $region64: #{wav_encoder_forward.1} parent=5 // pred_fallthru
      _
    %p3258 = scmp.le.s32.totalorder 2, %s17
    // Predicated region
    $region69: #{wav_encoder_forward.1} parent=5 // pred_check
      %p3259 = pneg %p3258
    $region70: #{wav_encoder_forward.1} parent=5 // pred_check_branch
      %3261 = sbr.rel (%p3259) target = $region72
    $region71: #{wav_encoder_forward.1} parent=5 // pred_region
      %s3262 = ssub.s32 %s17, 2
      // Predicated region
      $region73: #{wav_encoder_forward.1} parent=71 // pred_check
        %p3263 = pneg %p282
      $region74: #{wav_encoder_forward.1} parent=71 // pred_check_branch
        %3265 = sbr.rel (%p3263) target = $region76
      $region75: #{wav_encoder_forward.1} parent=71 // pred_region
        %p3266 = scmp.lt.s32.totalorder %s23, 1
        %s3267 = scalar_select %p3266, %s23, 1
        %s3268 = smul.addr %s3267, 4
        %s3269 = smul.addr %s3268, 8
        %s3270 = scalar_lea.vmem %s11, %s3269
      $region76: #{wav_encoder_forward.1} parent=71 // pred_fallthru
        _
    $region72: #{wav_encoder_forward.1} parent=5 // pred_fallthru
      _
  $region6: #{wav_encoder_forward.1} parent=0 // loop_footer
    %s21 = sadd.s32 1, %s17
  $region7: #{wav_encoder_forward.1} parent=0 // loop_footer_branch
    %16 = sbr.rel target = $region3
  $region8: #{wav_encoder_forward.1} parent=0 // loop_exit
    _

</llo_original>
